<compile_context>
chip_gen: v5e
topology: v5e:2x2
jax: 0.10.0
libtpu: 0.0.40
codegen_flags: <defaults>
</compile_context>

<pallas_src>
import functools

import jax
import jax.numpy as jnp
from jax.experimental import pallas as pl
from jax.experimental.pallas import tpu as pltpu


HIDDEN = 32         # reference uses 128; small shapes per instructions
NUM_CLASSES = 2
F_FEAT = 32         # reference: drn22.fc.in_channels = resnet18.fc.in_features = 512
C_MID = 16          # mid channels of the reduced backbones
T_SEQ = 3


# ---------------------------------------------------------------------------
# Fused backbone kernel: conv1 + ReLU -> conv2 (in-kernel im2col) + ReLU -> GAP
# ---------------------------------------------------------------------------
def _backbone_kernel(p1_ref, w1_ref, b1_ref, w2_ref, b2_ref, o_ref, *,
                     nb, h2, cmid, cout):
    # conv1 as one fat matmul over all images of this branch (parity-grouped rows).
    y1 = jnp.dot(p1_ref[0], w1_ref[0], preferred_element_type=jnp.float32)
    y1 = jnp.maximum(y1 + b1_ref[0], 0.0).astype(jnp.bfloat16)   # (4*nb*h2*h2, cmid)
    # Rows are ordered (row-parity, col-parity, img, oh, ow): the stride-2 im2col
    # of conv2 becomes contiguous slices + single-row shifts of the VMEM tile.
    y1 = y1.reshape(4 * nb, h2, h2, cmid)

    def tap(di, dj):
        ph = 0 if di == 1 else 1            # input row 2*oh+di-1: even rows iff di==1
        pw = 0 if dj == 1 else 1
        q = ph * 2 + pw
        t = y1[q * nb:(q + 1) * nb]                                # (nb, h2, h2, cmid)
        if di == 0:                          # row 2*oh-1: shift down one, zero-pad top
            t = jnp.concatenate([jnp.zeros_like(t[:, :1]), t[:, :-1]], axis=1)
        if dj == 0:
            t = jnp.concatenate([jnp.zeros_like(t[:, :, :1]), t[:, :, :-1]], axis=2)
        return t

    p2 = jnp.concatenate([tap(di, dj) for di in range(3) for dj in range(3)],
                         axis=-1)                                  # (nb, h2, h2, 9*cmid)
    y2 = jnp.dot(p2.reshape(nb * h2 * h2, 9 * cmid), w2_ref[0],
                 preferred_element_type=jnp.float32)
    y2 = jnp.maximum(y2 + b2_ref[0], 0.0)                          # (nb*h2*h2, cout)
    # fused global-average-pool epilogue (per-image spatial mean)
    o_ref[0] = jnp.mean(y2.reshape(nb, h2 * h2, cout), axis=1)


def fused_backbone(patches, w1, b1, w2, b2, *, nb, s, cmid, cout):
    """patches:(2, nb*s*s, 9*cin) bf16 (parity-grouped rows) -> (2, nb, cout) f32."""
    k1 = patches.shape[-1]
    h2 = s // 2
    # TODO(synk): at real DRN-22 sizes add an inner spatial grid axis with a VMEM
    # accumulator scratch (a full-spatial block would exceed v7x's 64 MiB VMEM)
    # and move the conv1 im2col in-kernel as well.
    return pl.pallas_call(
        functools.partial(_backbone_kernel, nb=nb, h2=h2, cmid=cmid, cout=cout),
        out_shape=jax.ShapeDtypeStruct((2, nb, cout), jnp.float32),
        grid=(2,),                                   # one grid step per branch (drn / res)
        in_specs=[
            pl.BlockSpec((1, nb * s * s, k1), lambda b: (b, 0, 0)),
            pl.BlockSpec((1, k1, cmid), lambda b: (b, 0, 0)),
            pl.BlockSpec((1, 1, cmid), lambda b: (b, 0, 0)),
            pl.BlockSpec((1, 9 * cmid, cout), lambda b: (b, 0, 0)),
            pl.BlockSpec((1, 1, cout), lambda b: (b, 0, 0)),
        ],
        out_specs=pl.BlockSpec((1, nb, cout), lambda b: (b, 0, 0)),
        compiler_params=pltpu.CompilerParams(dimension_semantics=("parallel",)),
    )(patches, w1, b1, w2, b2)


# ---------------------------------------------------------------------------
# Whole-batch fused cat_fea + BiLSTM (gate order i,f,g,o) + last-step FC head
# ---------------------------------------------------------------------------
def _sigmoid(x):
    return 1.0 / (1.0 + jnp.exp(-x))


def _bilstm_fc_kernel(feat_ref, win_ref, bin_ref, wrec_ref, fcw_ref, fcb_ref,
                      o_ref, *, T, B, H):
    # cat_fea assembly fused: feats arrive as (branch, t*B+b, F); the input
    # projection weight is split by feature-source rows (drn rows / res rows).
    xp = (jnp.dot(feat_ref[0].astype(jnp.bfloat16), win_ref[0],
                  preferred_element_type=jnp.float32)
          + jnp.dot(feat_ref[1].astype(jnp.bfloat16), win_ref[1],
                    preferred_element_type=jnp.float32)
          + bin_ref[...])                              # (T*B, 8H), cols [fwd|rev]
    xp = xp.reshape(T, B, 8 * H)

    # Gate sub-slices are 32-lane chunks; fine at H=32 and self-resolving if the
    # kernel is scaled back to the reference HIDDEN=128 (lane-aligned).
    def cell(g, c):
        i = _sigmoid(g[:, 0 * H:1 * H])
        f = _sigmoid(g[:, 1 * H:2 * H])
        gg = jnp.tanh(g[:, 2 * H:3 * H])
        o = _sigmoid(g[:, 3 * H:4 * H])
        c_new = f * c + i * gg
        return o * jnp.tanh(c_new), c_new

    h_f = jnp.zeros((B, H), jnp.float32)
    c_f = jnp.zeros((B, H), jnp.float32)
    h_r = jnp.zeros((B, H), jnp.float32)
    c_r = jnp.zeros((B, H), jnp.float32)
    rev_last = None
    for t in range(T):                                 # statically unrolled (T == 3)
        tr = T - 1 - t
        # forward step t and reverse step tr in lock-step
        xg = jnp.concatenate([xp[t, :, 0:4 * H], xp[tr, :, 4 * H:8 * H]], axis=-1)
        if t == 0:
            gates = xg                                 # h == 0 -> recurrent term is zero
        else:
            h_cat = jnp.concatenate([h_f, h_r], axis=-1).astype(jnp.bfloat16)
            # single block-diagonal recurrent matmul: (B,2H) @ (2H,8H)
            gates = xg + jnp.dot(h_cat, wrec_ref[...],
                                 preferred_element_type=jnp.float32)
        h_f, c_f = cell(gates[:, 0:4 * H], c_f)
        h_r, c_r = cell(gates[:, 4 * H:8 * H], c_r)
        if t == 0:
            rev_last = h_r                             # reverse-direction output at time T-1

    # out[:, -1, :] == [forward h at T-1 | reverse h at T-1]; fused FC head.
    out_last = jnp.concatenate([h_f, rev_last], axis=-1)            # (B, 2H)
    o_ref[...] = (jnp.dot(out_last.astype(jnp.bfloat16), fcw_ref[...],
                          preferred_element_type=jnp.float32) + fcb_ref[...])


def bilstm_fc(feats, p, *, B, T):
    """feats:(2, T*B, F) f32 -> logits (B, NUM_CLASSES) f32."""
    H, NC, F = HIDDEN, NUM_CLASSES, feats.shape[-1]
    return pl.pallas_call(
        functools.partial(_bilstm_fc_kernel, T=T, B=B, H=H),
        out_shape=jax.ShapeDtypeStruct((B, NC), jnp.float32),
        grid=(1,),                                     # whole batch in a single block
        in_specs=[
            pl.BlockSpec((2, T * B, F), lambda i: (0, 0, 0)),
            pl.BlockSpec((2, F, 8 * H), lambda i: (0, 0, 0)),
            pl.BlockSpec((1, 8 * H), lambda i: (0, 0)),
            pl.BlockSpec((2 * H, 8 * H), lambda i: (0, 0)),
            pl.BlockSpec((2 * H, NC), lambda i: (0, 0)),
            pl.BlockSpec((1, NC), lambda i: (0, 0)),
        ],
        out_specs=pl.BlockSpec((B, NC), lambda i: (0, 0)),
        compiler_params=pltpu.CompilerParams(dimension_semantics=("arbitrary",)),
    )(feats, p["w_in"], p["b_in"], p["w_rec"], p["fc_w"], p["fc_b"])


# ---------------------------------------------------------------------------
# JAX glue: conv1 im2col with parity-grouped rows
# ---------------------------------------------------------------------------
def _conv1_patches_parity(x_nchw):
    """3x3/s1/p1 im2col, rows ordered (row-parity, col-parity, img, oh, ow) so the
    in-kernel stride-2 im2col of conv2 is pure contiguous slicing."""
    x = jnp.transpose(x_nchw, (0, 2, 3, 1))                        # NCHW -> NHWC
    nb, s, _, cin = x.shape
    assert s % 2 == 0
    xp = jnp.pad(x, ((0, 0), (1, 1), (1, 1), (0, 0)))
    taps = [xp[:, i:i + s, j:j + s, :] for i in range(3) for j in range(3)]
    p = jnp.stack(taps, axis=3).reshape(nb, s, s, 9 * cin)         # (img, h, w, K1)
    h2 = s // 2
    p = p.reshape(nb, h2, 2, h2, 2, 9 * cin)                       # (img, hh, ph, ww, pw, K1)
    p = jnp.transpose(p, (2, 4, 0, 1, 3, 5))                       # (ph, pw, img, hh, ww, K1)
    return p.reshape(nb * s * s, 9 * cin).astype(jnp.bfloat16)


# ---------------------------------------------------------------------------
# Parameters & forward pass
# ---------------------------------------------------------------------------
def init_params(key, c_in):
    ks = jax.random.split(key, 16)

    def nrm(k, shape, scale=0.1):
        return (scale * jax.random.normal(k, shape)).astype(jnp.float32)

    def conv_w(k, c_out, c_in_):
        w = nrm(k, (c_out, c_in_, 3, 3))                 # PyTorch OIHW layout
        return jnp.transpose(w, (2, 3, 1, 0)).reshape(9 * c_in_, c_out)

    # branch 0 = drn22 trunk (global crops), branch 1 = resnet18 trunk (local crops)
    conv = {
        "w1": jnp.stack([conv_w(ks[0], C_MID, c_in),
                         conv_w(ks[4], C_MID, c_in)]).astype(jnp.bfloat16),   # (2, 9C, C_MID)
        "b1": jnp.stack([nrm(ks[1], (1, C_MID)), nrm(ks[5], (1, C_MID))]),    # (2, 1, C_MID)
        "w2": jnp.stack([conv_w(ks[2], F_FEAT, C_MID),
                         conv_w(ks[6], F_FEAT, C_MID)]).astype(jnp.bfloat16),
        "b2": jnp.stack([nrm(ks[3], (1, F_FEAT)), nrm(ks[7], (1, F_FEAT))]),
    }

    D, H = 2 * F_FEAT, HIDDEN
    wih_f, whh_f = nrm(ks[8], (D, 4 * H)), nrm(ks[9], (H, 4 * H))
    b_f = nrm(ks[10], (1, 4 * H))
    wih_r, whh_r = nrm(ks[11], (D, 4 * H)), nrm(ks[12], (H, 4 * H))
    b_r = nrm(ks[13], (1, 4 * H))
    # TODO(synk): when porting real PyTorch LSTM weights, b_in must equal b_ih + b_hh
    # per direction, and the bf16 matmul operands need a documented tolerance vs f32.
    w_in_full = jnp.concatenate([wih_f, wih_r], axis=1)            # (D, 8H) cols [fwd|rev]
    w_in = jnp.stack([w_in_full[:F_FEAT], w_in_full[F_FEAT:]]      # rows split drn | res
                     ).astype(jnp.bfloat16)                        # (2, F, 8H)
    w_rec = jnp.zeros((2 * H, 8 * H), jnp.float32)                 # block-diagonal
    w_rec = w_rec.at[:H, :4 * H].set(whh_f)
    w_rec = w_rec.at[H:, 4 * H:].set(whh_r)
    lstm = {
        "w_in": w_in,
        "b_in": jnp.concatenate([b_f, b_r], axis=1),               # (1, 8H)
        "w_rec": w_rec.astype(jnp.bfloat16),
        "fc_w": nrm(ks[14], (2 * H, NUM_CLASSES)).astype(jnp.bfloat16),
        "fc_b": nrm(ks[15], (1, NUM_CLASSES)),
    }
    return {"conv": conv, "lstm": lstm}


@jax.jit
def drn22_lstm_forward(params, x_g, x_l, y_g, y_l, z_g, z_l):
    B, _, S, _ = x_g.shape
    # 6 trunk passes -> 1 pallas_call: the three time-steps stack along batch
    # (row index = t*B + b) and the two branches stack along the grid axis.
    g_stack = jnp.concatenate([x_g, y_g, z_g], axis=0)             # (3B, C, S, S)
    l_stack = jnp.concatenate([x_l, y_l, z_l], axis=0)
    patches = jnp.stack([_conv1_patches_parity(g_stack),
                         _conv1_patches_parity(l_stack)], axis=0)  # (2, 3B*S*S, 9C)
    c = params["conv"]
    feats = fused_backbone(patches, c["w1"], c["b1"], c["w2"], c["b2"],
                           nb=T_SEQ * B, s=S, cmid=C_MID, cout=F_FEAT)   # (2, 3B, F)
    # cat_fea assembly + BiLSTM + FC head all live inside one whole-batch kernel.
    return bilstm_fc(feats, params["lstm"], B=B, T=T_SEQ)          # (B, NUM_CLASSES)


# ---------------------------------------------------------------------------
if __name__ == "__main__":
    key = jax.random.PRNGKey(0)
    B, C, S = 2, 4, 16

    k_par, k_in = jax.random.split(key)
    params = init_params(k_par, C)

    in_keys = jax.random.split(k_in, 6)
    x_g, x_l, y_g, y_l, z_g, z_l = [
        jax.random.normal(k, (B, C, S, S), jnp.float32) for k in in_keys
    ]

    out = drn22_lstm_forward(params, x_g, x_l, y_g, y_l, z_g, z_l)
    out = jax.block_until_ready(out)
    assert out.shape == (B, NUM_CLASSES)
    assert bool(jnp.all(jnp.isfinite(out)))
    print("KERNEL_OK")
</pallas_src>

<mosaic_0001>
module attributes {stable_mosaic.version = 11 : i64} {
  func.func @_backbone_kernel(%arg0: i32, %arg1: memref<1x1536x36xbf16, #tpu.memory_space<vmem>>, %arg2: memref<1x36x16xbf16, #tpu.memory_space<vmem>>, %arg3: memref<1x1x16xf32, #tpu.memory_space<vmem>>, %arg4: memref<1x144x32xbf16, #tpu.memory_space<vmem>>, %arg5: memref<1x1x32xf32, #tpu.memory_space<vmem>>, %arg6: memref<1x6x32xf32, #tpu.memory_space<vmem>>) attributes {dimension_semantics = [#tpu.dimension_semantics<parallel>], iteration_bounds = array<i64: 2>, scalar_prefetch = 0 : i64, scratch_operands = 0 : i64, tpu.core_type = #tpu.core_type<tc>, window_params = [{transform_indices = @transform_0, window_bounds = array<i64: 1, 1536, 36>}, {transform_indices = @transform_1, window_bounds = array<i64: 1, 36, 16>}, {transform_indices = @transform_2, window_bounds = array<i64: 1, 1, 16>}, {transform_indices = @transform_3, window_bounds = array<i64: 1, 144, 32>}, {transform_indices = @transform_4, window_bounds = array<i64: 1, 1, 32>}, {transform_indices = @transform_5, window_bounds = array<i64: 1, 6, 32>}]} {
    %c0 = arith.constant 0 : index
    %c0_0 = arith.constant 0 : index
    %c0_1 = arith.constant 0 : index
    %0 = vector.load %arg1[%c0, %c0_0, %c0_1] : memref<1x1536x36xbf16, #tpu.memory_space<vmem>>, vector<1x1536x36xbf16>
    %1 = vector.shape_cast %0 : vector<1x1536x36xbf16> to vector<1536x36xbf16>
    %c0_2 = arith.constant 0 : index
    %c0_3 = arith.constant 0 : index
    %c0_4 = arith.constant 0 : index
    %2 = vector.load %arg2[%c0_2, %c0_3, %c0_4] : memref<1x36x16xbf16, #tpu.memory_space<vmem>>, vector<1x36x16xbf16>
    %3 = vector.shape_cast %2 : vector<1x36x16xbf16> to vector<36x16xbf16>
    %cst = arith.constant dense<0.000000e+00> : vector<1536x16xf32>
    %4 = tpu.matmul %1, %3, %cst {dimension_numbers = #tpu.dot_dimension_numbers<[1], [0], [0], [1], [0, 0, 1, 1], [], []>} : vector<1536x36xbf16>, vector<36x16xbf16>, vector<1536x16xf32> -> vector<1536x16xf32>
    %c0_5 = arith.constant 0 : index
    %c0_6 = arith.constant 0 : index
    %c0_7 = arith.constant 0 : index
    %5 = vector.load %arg3[%c0_5, %c0_6, %c0_7] : memref<1x1x16xf32, #tpu.memory_space<vmem>>, vector<1x1x16xf32>
    %6 = vector.shape_cast %5 : vector<1x1x16xf32> to vector<1x16xf32>
    %7 = vector.broadcast %6 : vector<1x16xf32> to vector<1536x16xf32>
    %8 = arith.addf %4, %7 : vector<1536x16xf32>
    %cst_8 = arith.constant 0.000000e+00 : f32
    %9 = vector.broadcast %cst_8 : f32 to vector<1536x16xf32>
    %10 = arith.maximumf %8, %9 : vector<1536x16xf32>
    %11 = arith.truncf %10 : vector<1536x16xf32> to vector<1536x16xbf16>
    %12 = vector.shape_cast %11 : vector<1536x16xbf16> to vector<24x8x8x16xbf16>
    %13 = vector.extract_strided_slice %12 {offsets = [18, 0, 0, 0], sizes = [6, 8, 8, 16], strides = [1, 1, 1, 1]} : vector<24x8x8x16xbf16> to vector<6x8x8x16xbf16>
    %cst_9 = arith.constant 0.000000e+00 : bf16
    %14 = vector.broadcast %cst_9 : bf16 to vector<6x1x8x16xbf16>
    %15 = vector.extract_strided_slice %13 {offsets = [0, 0, 0, 0], sizes = [6, 7, 8, 16], strides = [1, 1, 1, 1]} : vector<6x8x8x16xbf16> to vector<6x7x8x16xbf16>
    %16 = tpu.concatenate %14, %15 in 1 : vector<6x1x8x16xbf16>, vector<6x7x8x16xbf16> -> vector<6x8x8x16xbf16>
    %cst_10 = arith.constant 0.000000e+00 : bf16
    %17 = vector.broadcast %cst_10 : bf16 to vector<6x8x1x16xbf16>
    %18 = vector.extract_strided_slice %16 {offsets = [0, 0, 0, 0], sizes = [6, 8, 7, 16], strides = [1, 1, 1, 1]} : vector<6x8x8x16xbf16> to vector<6x8x7x16xbf16>
    %19 = tpu.concatenate %17, %18 in 2 : vector<6x8x1x16xbf16>, vector<6x8x7x16xbf16> -> vector<6x8x8x16xbf16>
    %20 = vector.extract_strided_slice %12 {offsets = [12, 0, 0, 0], sizes = [6, 8, 8, 16], strides = [1, 1, 1, 1]} : vector<24x8x8x16xbf16> to vector<6x8x8x16xbf16>
    %cst_11 = arith.constant 0.000000e+00 : bf16
    %21 = vector.broadcast %cst_11 : bf16 to vector<6x1x8x16xbf16>
    %22 = vector.extract_strided_slice %20 {offsets = [0, 0, 0, 0], sizes = [6, 7, 8, 16], strides = [1, 1, 1, 1]} : vector<6x8x8x16xbf16> to vector<6x7x8x16xbf16>
    %23 = tpu.concatenate %21, %22 in 1 : vector<6x1x8x16xbf16>, vector<6x7x8x16xbf16> -> vector<6x8x8x16xbf16>
    %24 = vector.extract_strided_slice %12 {offsets = [18, 0, 0, 0], sizes = [6, 8, 8, 16], strides = [1, 1, 1, 1]} : vector<24x8x8x16xbf16> to vector<6x8x8x16xbf16>
    %cst_12 = arith.constant 0.000000e+00 : bf16
    %25 = vector.broadcast %cst_12 : bf16 to vector<6x1x8x16xbf16>
    %26 = vector.extract_strided_slice %24 {offsets = [0, 0, 0, 0], sizes = [6, 7, 8, 16], strides = [1, 1, 1, 1]} : vector<6x8x8x16xbf16> to vector<6x7x8x16xbf16>
    %27 = tpu.concatenate %25, %26 in 1 : vector<6x1x8x16xbf16>, vector<6x7x8x16xbf16> -> vector<6x8x8x16xbf16>
    %28 = vector.extract_strided_slice %12 {offsets = [6, 0, 0, 0], sizes = [6, 8, 8, 16], strides = [1, 1, 1, 1]} : vector<24x8x8x16xbf16> to vector<6x8x8x16xbf16>
    %cst_13 = arith.constant 0.000000e+00 : bf16
    %29 = vector.broadcast %cst_13 : bf16 to vector<6x8x1x16xbf16>
    %30 = vector.extract_strided_slice %28 {offsets = [0, 0, 0, 0], sizes = [6, 8, 7, 16], strides = [1, 1, 1, 1]} : vector<6x8x8x16xbf16> to vector<6x8x7x16xbf16>
    %31 = tpu.concatenate %29, %30 in 2 : vector<6x8x1x16xbf16>, vector<6x8x7x16xbf16> -> vector<6x8x8x16xbf16>
    %32 = vector.extract_strided_slice %12 {offsets = [0, 0, 0, 0], sizes = [6, 8, 8, 16], strides = [1, 1, 1, 1]} : vector<24x8x8x16xbf16> to vector<6x8x8x16xbf16>
    %33 = vector.extract_strided_slice %12 {offsets = [6, 0, 0, 0], sizes = [6, 8, 8, 16], strides = [1, 1, 1, 1]} : vector<24x8x8x16xbf16> to vector<6x8x8x16xbf16>
    %34 = vector.extract_strided_slice %12 {offsets = [18, 0, 0, 0], sizes = [6, 8, 8, 16], strides = [1, 1, 1, 1]} : vector<24x8x8x16xbf16> to vector<6x8x8x16xbf16>
    %cst_14 = arith.constant 0.000000e+00 : bf16
    %35 = vector.broadcast %cst_14 : bf16 to vector<6x8x1x16xbf16>
    %36 = vector.extract_strided_slice %34 {offsets = [0, 0, 0, 0], sizes = [6, 8, 7, 16], strides = [1, 1, 1, 1]} : vector<6x8x8x16xbf16> to vector<6x8x7x16xbf16>
    %37 = tpu.concatenate %35, %36 in 2 : vector<6x8x1x16xbf16>, vector<6x8x7x16xbf16> -> vector<6x8x8x16xbf16>
    %38 = vector.extract_strided_slice %12 {offsets = [12, 0, 0, 0], sizes = [6, 8, 8, 16], strides = [1, 1, 1, 1]} : vector<24x8x8x16xbf16> to vector<6x8x8x16xbf16>
    %39 = vector.extract_strided_slice %12 {offsets = [18, 0, 0, 0], sizes = [6, 8, 8, 16], strides = [1, 1, 1, 1]} : vector<24x8x8x16xbf16> to vector<6x8x8x16xbf16>
    %40 = tpu.concatenate %19, %23, %27, %31, %32, %33, %37, %38, %39 in 3 : vector<6x8x8x16xbf16>, vector<6x8x8x16xbf16>, vector<6x8x8x16xbf16>, vector<6x8x8x16xbf16>, vector<6x8x8x16xbf16>, vector<6x8x8x16xbf16>, vector<6x8x8x16xbf16>, vector<6x8x8x16xbf16>, vector<6x8x8x16xbf16> -> vector<6x8x8x144xbf16>
    %41 = vector.shape_cast %40 : vector<6x8x8x144xbf16> to vector<384x144xbf16>
    %c0_15 = arith.constant 0 : index
    %c0_16 = arith.constant 0 : index
    %c0_17 = arith.constant 0 : index
    %42 = vector.load %arg4[%c0_15, %c0_16, %c0_17] : memref<1x144x32xbf16, #tpu.memory_space<vmem>>, vector<1x144x32xbf16>
    %43 = vector.shape_cast %42 : vector<1x144x32xbf16> to vector<144x32xbf16>
    %cst_18 = arith.constant dense<0.000000e+00> : vector<384x32xf32>
    %44 = tpu.matmul %41, %43, %cst_18 {dimension_numbers = #tpu.dot_dimension_numbers<[1], [0], [0], [1], [0, 0, 1, 1], [], []>} : vector<384x144xbf16>, vector<144x32xbf16>, vector<384x32xf32> -> vector<384x32xf32>
    %c0_19 = arith.constant 0 : index
    %c0_20 = arith.constant 0 : index
    %c0_21 = arith.constant 0 : index
    %45 = vector.load %arg5[%c0_19, %c0_20, %c0_21] : memref<1x1x32xf32, #tpu.memory_space<vmem>>, vector<1x1x32xf32>
    %46 = vector.shape_cast %45 : vector<1x1x32xf32> to vector<1x32xf32>
    %47 = vector.broadcast %46 : vector<1x32xf32> to vector<384x32xf32>
    %48 = arith.addf %44, %47 : vector<384x32xf32>
    %cst_22 = arith.constant 0.000000e+00 : f32
    %49 = vector.broadcast %cst_22 : f32 to vector<384x32xf32>
    %50 = arith.maximumf %48, %49 : vector<384x32xf32>
    %51 = vector.shape_cast %50 : vector<384x32xf32> to vector<6x64x32xf32>
    %cst_23 = arith.constant dense<0.000000e+00> : vector<6x32xf32>
    %52 = vector.multi_reduction <add>, %51, %cst_23 [1] : vector<6x64x32xf32> to vector<6x32xf32>
    %cst_24 = arith.constant 6.400000e+01 : f32
    %53 = vector.broadcast %cst_24 : f32 to vector<6x32xf32>
    %54 = arith.divf %52, %53 : vector<6x32xf32>
    %c0_25 = arith.constant 0 : index
    %c0_26 = arith.constant 0 : index
    %c0_27 = arith.constant 0 : index
    %55 = vector.load %arg6[%c0_25, %c0_26, %c0_27] : memref<1x6x32xf32, #tpu.memory_space<vmem>>, vector<1x6x32xf32>
    %56 = vector.shape_cast %55 : vector<1x6x32xf32> to vector<6x32xf32>
    %57 = vector.shape_cast %54 : vector<6x32xf32> to vector<1x6x32xf32>
    tpu.vector_store %arg6[%c0_25, %c0_26, %c0_27], %57 {strides = array<i32>} : memref<1x6x32xf32, #tpu.memory_space<vmem>>, vector<1x6x32xf32>,
    return
  }
  func.func @transform_0(%arg0: i32) -> (i32, i32, i32) {
    %c0_i32 = arith.constant 0 : i32
    %c0_i32_0 = arith.constant 0 : i32
    %c0_i32_1 = arith.constant 0 : i32
    return %arg0, %c0_i32, %c0_i32_0 : i32, i32, i32
  }
  func.func @transform_1(%arg0: i32) -> (i32, i32, i32) {
    %c0_i32 = arith.constant 0 : i32
    %c0_i32_0 = arith.constant 0 : i32
    %c0_i32_1 = arith.constant 0 : i32
    return %arg0, %c0_i32, %c0_i32_0 : i32, i32, i32
  }
  func.func @transform_2(%arg0: i32) -> (i32, i32, i32) {
    %c0_i32 = arith.constant 0 : i32
    %c0_i32_0 = arith.constant 0 : i32
    %c0_i32_1 = arith.constant 0 : i32
    return %arg0, %c0_i32, %c0_i32_0 : i32, i32, i32
  }
  func.func @transform_3(%arg0: i32) -> (i32, i32, i32) {
    %c0_i32 = arith.constant 0 : i32
    %c0_i32_0 = arith.constant 0 : i32
    %c0_i32_1 = arith.constant 0 : i32
    return %arg0, %c0_i32, %c0_i32_0 : i32, i32, i32
  }
  func.func @transform_4(%arg0: i32) -> (i32, i32, i32) {
    %c0_i32 = arith.constant 0 : i32
    %c0_i32_0 = arith.constant 0 : i32
    %c0_i32_1 = arith.constant 0 : i32
    return %arg0, %c0_i32, %c0_i32_0 : i32, i32, i32
  }
  func.func @transform_5(%arg0: i32) -> (i32, i32, i32) {
    %c0_i32 = arith.constant 0 : i32
    %c0_i32_0 = arith.constant 0 : i32
    %c0_i32_1 = arith.constant 0 : i32
    return %arg0, %c0_i32, %c0_i32_0 : i32, i32, i32
  }
}

module attributes {stable_mosaic.version = 11 : i64} {
  func.func @_bilstm_fc_kernel(%arg0: i32, %arg1: memref<2x6x32xf32, #tpu.memory_space<vmem>>, %arg2: memref<2x32x256xbf16, #tpu.memory_space<vmem>>, %arg3: memref<1x256xf32, #tpu.memory_space<vmem>>, %arg4: memref<64x256xbf16, #tpu.memory_space<vmem>>, %arg5: memref<64x2xbf16, #tpu.memory_space<vmem>>, %arg6: memref<1x2xf32, #tpu.memory_space<vmem>>, %arg7: memref<2x2xf32, #tpu.memory_space<vmem>>) attributes {dimension_semantics = [#tpu.dimension_semantics<arbitrary>], iteration_bounds = array<i64: 1>, scalar_prefetch = 0 : i64, scratch_operands = 0 : i64, tpu.core_type = #tpu.core_type<tc>, window_params = [{pipeline_mode = #tpu.pipeline_mode<synchronous>, transform_indices = @transform_0, window_bounds = array<i64: 2, 6, 32>}, {pipeline_mode = #tpu.pipeline_mode<synchronous>, transform_indices = @transform_1, window_bounds = array<i64: 2, 32, 256>}, {pipeline_mode = #tpu.pipeline_mode<synchronous>, transform_indices = @transform_2, window_bounds = array<i64: 1, 256>}, {pipeline_mode = #tpu.pipeline_mode<synchronous>, transform_indices = @transform_3, window_bounds = array<i64: 64, 256>}, {pipeline_mode = #tpu.pipeline_mode<synchronous>, transform_indices = @transform_4, window_bounds = array<i64: 64, 2>}, {pipeline_mode = #tpu.pipeline_mode<synchronous>, transform_indices = @transform_5, window_bounds = array<i64: 1, 2>}, {pipeline_mode = #tpu.pipeline_mode<synchronous>, transform_indices = @transform_6, window_bounds = array<i64: 2, 2>}]} {
    %c0 = arith.constant 0 : index
    %c0_0 = arith.constant 0 : index
    %c0_1 = arith.constant 0 : index
    %0 = vector.load %arg1[%c0, %c0_0, %c0_1] : memref<2x6x32xf32, #tpu.memory_space<vmem>>, vector<1x6x32xf32>
    %1 = vector.shape_cast %0 : vector<1x6x32xf32> to vector<6x32xf32>
    %2 = arith.truncf %1 : vector<6x32xf32> to vector<6x32xbf16>
    %c0_2 = arith.constant 0 : index
    %c0_3 = arith.constant 0 : index
    %c0_4 = arith.constant 0 : index
    %3 = vector.load %arg2[%c0_2, %c0_3, %c0_4] : memref<2x32x256xbf16, #tpu.memory_space<vmem>>, vector<1x32x256xbf16>
    %4 = vector.shape_cast %3 : vector<1x32x256xbf16> to vector<32x256xbf16>
    %cst = arith.constant dense<0.000000e+00> : vector<6x256xf32>
    %5 = tpu.matmul %2, %4, %cst {dimension_numbers = #tpu.dot_dimension_numbers<[1], [0], [0], [1], [0, 0, 1, 1], [], []>} : vector<6x32xbf16>, vector<32x256xbf16>, vector<6x256xf32> -> vector<6x256xf32>
    %c1 = arith.constant 1 : index
    %c0_5 = arith.constant 0 : index
    %c0_6 = arith.constant 0 : index
    %6 = vector.load %arg1[%c1, %c0_5, %c0_6] : memref<2x6x32xf32, #tpu.memory_space<vmem>>, vector<1x6x32xf32>
    %7 = vector.shape_cast %6 : vector<1x6x32xf32> to vector<6x32xf32>
    %8 = arith.truncf %7 : vector<6x32xf32> to vector<6x32xbf16>
    %c1_7 = arith.constant 1 : index
    %c0_8 = arith.constant 0 : index
    %c0_9 = arith.constant 0 : index
    %9 = vector.load %arg2[%c1_7, %c0_8, %c0_9] : memref<2x32x256xbf16, #tpu.memory_space<vmem>>, vector<1x32x256xbf16>
    %10 = vector.shape_cast %9 : vector<1x32x256xbf16> to vector<32x256xbf16>
    %cst_10 = arith.constant dense<0.000000e+00> : vector<6x256xf32>
    %11 = tpu.matmul %8, %10, %cst_10 {dimension_numbers = #tpu.dot_dimension_numbers<[1], [0], [0], [1], [0, 0, 1, 1], [], []>} : vector<6x32xbf16>, vector<32x256xbf16>, vector<6x256xf32> -> vector<6x256xf32>
    %12 = arith.addf %5, %11 : vector<6x256xf32>
    %c0_11 = arith.constant 0 : index
    %c0_12 = arith.constant 0 : index
    %13 = vector.load %arg3[%c0_11, %c0_12] : memref<1x256xf32, #tpu.memory_space<vmem>>, vector<1x256xf32>
    %14 = vector.broadcast %13 : vector<1x256xf32> to vector<6x256xf32>
    %15 = arith.addf %12, %14 : vector<6x256xf32>
    %16 = vector.shape_cast %15 : vector<6x256xf32> to vector<3x2x256xf32>
    %cst_13 = arith.constant 0.000000e+00 : f32
    %17 = vector.broadcast %cst_13 : f32 to vector<2x32xf32>
    %cst_14 = arith.constant 0.000000e+00 : f32
    %18 = vector.broadcast %cst_14 : f32 to vector<2x32xf32>
    %19 = vector.extract_strided_slice %16 {offsets = [0, 0, 0], sizes = [1, 2, 128], strides = [1, 1, 1]} : vector<3x2x256xf32> to vector<1x2x128xf32>
    %20 = vector.shape_cast %19 : vector<1x2x128xf32> to vector<2x128xf32>
    %21 = vector.extract_strided_slice %16 {offsets = [2, 0, 128], sizes = [1, 2, 128], strides = [1, 1, 1]} : vector<3x2x256xf32> to vector<1x2x128xf32>
    %22 = vector.shape_cast %21 : vector<1x2x128xf32> to vector<2x128xf32>
    %23 = tpu.concatenate %20, %22 in 1 : vector<2x128xf32>, vector<2x128xf32> -> vector<2x256xf32>
    %24 = vector.extract_strided_slice %23 {offsets = [0, 0], sizes = [2, 128], strides = [1, 1]} : vector<2x256xf32> to vector<2x128xf32>
    %25 = vector.extract_strided_slice %24 {offsets = [0, 0], sizes = [2, 32], strides = [1, 1]} : vector<2x128xf32> to vector<2x32xf32>
    %cst_15 = arith.constant 0.000000e+00 : f32
    %26 = vector.broadcast %cst_15 : f32 to vector<2x32xf32>
    %27 = arith.subf %26, %25 : vector<2x32xf32>
    %28 = math.exp %27 : vector<2x32xf32>
    %cst_16 = arith.constant 1.000000e+00 : f32
    %29 = vector.broadcast %cst_16 : f32 to vector<2x32xf32>
    %30 = arith.addf %29, %28 : vector<2x32xf32>
    %cst_17 = arith.constant 1.000000e+00 : f32
    %31 = vector.broadcast %cst_17 : f32 to vector<2x32xf32>
    %32 = arith.divf %31, %30 : vector<2x32xf32>
    %33 = vector.extract_strided_slice %24 {offsets = [0, 32], sizes = [2, 32], strides = [1, 1]} : vector<2x128xf32> to vector<2x32xf32>
    %cst_18 = arith.constant 0.000000e+00 : f32
    %34 = vector.broadcast %cst_18 : f32 to vector<2x32xf32>
    %35 = arith.subf %34, %33 : vector<2x32xf32>
    %36 = math.exp %35 : vector<2x32xf32>
    %cst_19 = arith.constant 1.000000e+00 : f32
    %37 = vector.broadcast %cst_19 : f32 to vector<2x32xf32>
    %38 = arith.addf %37, %36 : vector<2x32xf32>
    %cst_20 = arith.constant 1.000000e+00 : f32
    %39 = vector.broadcast %cst_20 : f32 to vector<2x32xf32>
    %40 = arith.divf %39, %38 : vector<2x32xf32>
    %41 = vector.extract_strided_slice %24 {offsets = [0, 64], sizes = [2, 32], strides = [1, 1]} : vector<2x128xf32> to vector<2x32xf32>
    %42 = math.tanh %41 : vector<2x32xf32>
    %43 = vector.extract_strided_slice %24 {offsets = [0, 96], sizes = [2, 32], strides = [1, 1]} : vector<2x128xf32> to vector<2x32xf32>
    %cst_21 = arith.constant 0.000000e+00 : f32
    %44 = vector.broadcast %cst_21 : f32 to vector<2x32xf32>
    %45 = arith.subf %44, %43 : vector<2x32xf32>
    %46 = math.exp %45 : vector<2x32xf32>
    %cst_22 = arith.constant 1.000000e+00 : f32
    %47 = vector.broadcast %cst_22 : f32 to vector<2x32xf32>
    %48 = arith.addf %47, %46 : vector<2x32xf32>
    %cst_23 = arith.constant 1.000000e+00 : f32
    %49 = vector.broadcast %cst_23 : f32 to vector<2x32xf32>
    %50 = arith.divf %49, %48 : vector<2x32xf32>
    %51 = arith.mulf %40, %17 : vector<2x32xf32>
    %52 = arith.mulf %32, %42 : vector<2x32xf32>
    %53 = arith.addf %51, %52 : vector<2x32xf32>
    %54 = math.tanh %53 : vector<2x32xf32>
    %55 = arith.mulf %50, %54 : vector<2x32xf32>
    %56 = vector.extract_strided_slice %23 {offsets = [0, 128], sizes = [2, 128], strides = [1, 1]} : vector<2x256xf32> to vector<2x128xf32>
    %57 = vector.extract_strided_slice %56 {offsets = [0, 0], sizes = [2, 32], strides = [1, 1]} : vector<2x128xf32> to vector<2x32xf32>
    %cst_24 = arith.constant 0.000000e+00 : f32
    %58 = vector.broadcast %cst_24 : f32 to vector<2x32xf32>
    %59 = arith.subf %58, %57 : vector<2x32xf32>
    %60 = math.exp %59 : vector<2x32xf32>
    %cst_25 = arith.constant 1.000000e+00 : f32
    %61 = vector.broadcast %cst_25 : f32 to vector<2x32xf32>
    %62 = arith.addf %61, %60 : vector<2x32xf32>
    %cst_26 = arith.constant 1.000000e+00 : f32
    %63 = vector.broadcast %cst_26 : f32 to vector<2x32xf32>
    %64 = arith.divf %63, %62 : vector<2x32xf32>
    %65 = vector.extract_strided_slice %56 {offsets = [0, 32], sizes = [2, 32], strides = [1, 1]} : vector<2x128xf32> to vector<2x32xf32>
    %cst_27 = arith.constant 0.000000e+00 : f32
    %66 = vector.broadcast %cst_27 : f32 to vector<2x32xf32>
    %67 = arith.subf %66, %65 : vector<2x32xf32>
    %68 = math.exp %67 : vector<2x32xf32>
    %cst_28 = arith.constant 1.000000e+00 : f32
    %69 = vector.broadcast %cst_28 : f32 to vector<2x32xf32>
    %70 = arith.addf %69, %68 : vector<2x32xf32>
    %cst_29 = arith.constant 1.000000e+00 : f32
    %71 = vector.broadcast %cst_29 : f32 to vector<2x32xf32>
    %72 = arith.divf %71, %70 : vector<2x32xf32>
    %73 = vector.extract_strided_slice %56 {offsets = [0, 64], sizes = [2, 32], strides = [1, 1]} : vector<2x128xf32> to vector<2x32xf32>
    %74 = math.tanh %73 : vector<2x32xf32>
    %75 = vector.extract_strided_slice %56 {offsets = [0, 96], sizes = [2, 32], strides = [1, 1]} : vector<2x128xf32> to vector<2x32xf32>
    %cst_30 = arith.constant 0.000000e+00 : f32
    %76 = vector.broadcast %cst_30 : f32 to vector<2x32xf32>
    %77 = arith.subf %76, %75 : vector<2x32xf32>
    %78 = math.exp %77 : vector<2x32xf32>
    %cst_31 = arith.constant 1.000000e+00 : f32
    %79 = vector.broadcast %cst_31 : f32 to vector<2x32xf32>
    %80 = arith.addf %79, %78 : vector<2x32xf32>
    %cst_32 = arith.constant 1.000000e+00 : f32
    %81 = vector.broadcast %cst_32 : f32 to vector<2x32xf32>
    %82 = arith.divf %81, %80 : vector<2x32xf32>
    %83 = arith.mulf %72, %18 : vector<2x32xf32>
    %84 = arith.mulf %64, %74 : vector<2x32xf32>
    %85 = arith.addf %83, %84 : vector<2x32xf32>
    %86 = math.tanh %85 : vector<2x32xf32>
    %87 = arith.mulf %82, %86 : vector<2x32xf32>
    %88 = vector.extract_strided_slice %16 {offsets = [1, 0, 0], sizes = [1, 2, 128], strides = [1, 1, 1]} : vector<3x2x256xf32> to vector<1x2x128xf32>
    %89 = vector.shape_cast %88 : vector<1x2x128xf32> to vector<2x128xf32>
    %90 = vector.extract_strided_slice %16 {offsets = [1, 0, 128], sizes = [1, 2, 128], strides = [1, 1, 1]} : vector<3x2x256xf32> to vector<1x2x128xf32>
    %91 = vector.shape_cast %90 : vector<1x2x128xf32> to vector<2x128xf32>
    %92 = tpu.concatenate %89, %91 in 1 : vector<2x128xf32>, vector<2x128xf32> -> vector<2x256xf32>
    %93 = tpu.concatenate %55, %87 in 1 : vector<2x32xf32>, vector<2x32xf32> -> vector<2x64xf32>
    %94 = arith.truncf %93 : vector<2x64xf32> to vector<2x64xbf16>
    %c0_33 = arith.constant 0 : index
    %c0_34 = arith.constant 0 : index
    %95 = vector.load %arg4[%c0_33, %c0_34] : memref<64x256xbf16, #tpu.memory_space<vmem>>, vector<64x256xbf16>
    %cst_35 = arith.constant dense<0.000000e+00> : vector<2x256xf32>
    %96 = tpu.matmul %94, %95, %cst_35 {dimension_numbers = #tpu.dot_dimension_numbers<[1], [0], [0], [1], [0, 0, 1, 1], [], []>} : vector<2x64xbf16>, vector<64x256xbf16>, vector<2x256xf32> -> vector<2x256xf32>
    %97 = arith.addf %92, %96 : vector<2x256xf32>
    %98 = vector.extract_strided_slice %97 {offsets = [0, 0], sizes = [2, 128], strides = [1, 1]} : vector<2x256xf32> to vector<2x128xf32>
    %99 = vector.extract_strided_slice %98 {offsets = [0, 0], sizes = [2, 32], strides = [1, 1]} : vector<2x128xf32> to vector<2x32xf32>
    %cst_36 = arith.constant 0.000000e+00 : f32
    %100 = vector.broadcast %cst_36 : f32 to vector<2x32xf32>
    %101 = arith.subf %100, %99 : vector<2x32xf32>
    %102 = math.exp %101 : vector<2x32xf32>
    %cst_37 = arith.constant 1.000000e+00 : f32
    %103 = vector.broadcast %cst_37 : f32 to vector<2x32xf32>
    %104 = arith.addf %103, %102 : vector<2x32xf32>
    %cst_38 = arith.constant 1.000000e+00 : f32
    %105 = vector.broadcast %cst_38 : f32 to vector<2x32xf32>
    %106 = arith.divf %105, %104 : vector<2x32xf32>
    %107 = vector.extract_strided_slice %98 {offsets = [0, 32], sizes = [2, 32], strides = [1, 1]} : vector<2x128xf32> to vector<2x32xf32>
    %cst_39 = arith.constant 0.000000e+00 : f32
    %108 = vector.broadcast %cst_39 : f32 to vector<2x32xf32>
    %109 = arith.subf %108, %107 : vector<2x32xf32>
    %110 = math.exp %109 : vector<2x32xf32>
    %cst_40 = arith.constant 1.000000e+00 : f32
    %111 = vector.broadcast %cst_40 : f32 to vector<2x32xf32>
    %112 = arith.addf %111, %110 : vector<2x32xf32>
    %cst_41 = arith.constant 1.000000e+00 : f32
    %113 = vector.broadcast %cst_41 : f32 to vector<2x32xf32>
    %114 = arith.divf %113, %112 : vector<2x32xf32>
    %115 = vector.extract_strided_slice %98 {offsets = [0, 64], sizes = [2, 32], strides = [1, 1]} : vector<2x128xf32> to vector<2x32xf32>
    %116 = math.tanh %115 : vector<2x32xf32>
    %117 = vector.extract_strided_slice %98 {offsets = [0, 96], sizes = [2, 32], strides = [1, 1]} : vector<2x128xf32> to vector<2x32xf32>
    %cst_42 = arith.constant 0.000000e+00 : f32
    %118 = vector.broadcast %cst_42 : f32 to vector<2x32xf32>
    %119 = arith.subf %118, %117 : vector<2x32xf32>
    %120 = math.exp %119 : vector<2x32xf32>
    %cst_43 = arith.constant 1.000000e+00 : f32
    %121 = vector.broadcast %cst_43 : f32 to vector<2x32xf32>
    %122 = arith.addf %121, %120 : vector<2x32xf32>
    %cst_44 = arith.constant 1.000000e+00 : f32
    %123 = vector.broadcast %cst_44 : f32 to vector<2x32xf32>
    %124 = arith.divf %123, %122 : vector<2x32xf32>
    %125 = arith.mulf %114, %53 : vector<2x32xf32>
    %126 = arith.mulf %106, %116 : vector<2x32xf32>
    %127 = arith.addf %125, %126 : vector<2x32xf32>
    %128 = math.tanh %127 : vector<2x32xf32>
    %129 = arith.mulf %124, %128 : vector<2x32xf32>
    %130 = vector.extract_strided_slice %97 {offsets = [0, 128], sizes = [2, 128], strides = [1, 1]} : vector<2x256xf32> to vector<2x128xf32>
    %131 = vector.extract_strided_slice %130 {offsets = [0, 0], sizes = [2, 32], strides = [1, 1]} : vector<2x128xf32> to vector<2x32xf32>
    %cst_45 = arith.constant 0.000000e+00 : f32
    %132 = vector.broadcast %cst_45 : f32 to vector<2x32xf32>
    %133 = arith.subf %132, %131 : vector<2x32xf32>
    %134 = math.exp %133 : vector<2x32xf32>
    %cst_46 = arith.constant 1.000000e+00 : f32
    %135 = vector.broadcast %cst_46 : f32 to vector<2x32xf32>
    %136 = arith.addf %135, %134 : vector<2x32xf32>
    %cst_47 = arith.constant 1.000000e+00 : f32
    %137 = vector.broadcast %cst_47 : f32 to vector<2x32xf32>
    %138 = arith.divf %137, %136 : vector<2x32xf32>
    %139 = vector.extract_strided_slice %130 {offsets = [0, 32], sizes = [2, 32], strides = [1, 1]} : vector<2x128xf32> to vector<2x32xf32>
    %cst_48 = arith.constant 0.000000e+00 : f32
    %140 = vector.broadcast %cst_48 : f32 to vector<2x32xf32>
    %141 = arith.subf %140, %139 : vector<2x32xf32>
    %142 = math.exp %141 : vector<2x32xf32>
    %cst_49 = arith.constant 1.000000e+00 : f32
    %143 = vector.broadcast %cst_49 : f32 to vector<2x32xf32>
    %144 = arith.addf %143, %142 : vector<2x32xf32>
    %cst_50 = arith.constant 1.000000e+00 : f32
    %145 = vector.broadcast %cst_50 : f32 to vector<2x32xf32>
    %146 = arith.divf %145, %144 : vector<2x32xf32>
    %147 = vector.extract_strided_slice %130 {offsets = [0, 64], sizes = [2, 32], strides = [1, 1]} : vector<2x128xf32> to vector<2x32xf32>
    %148 = math.tanh %147 : vector<2x32xf32>
    %149 = vector.extract_strided_slice %130 {offsets = [0, 96], sizes = [2, 32], strides = [1, 1]} : vector<2x128xf32> to vector<2x32xf32>
    %cst_51 = arith.constant 0.000000e+00 : f32
    %150 = vector.broadcast %cst_51 : f32 to vector<2x32xf32>
    %151 = arith.subf %150, %149 : vector<2x32xf32>
    %152 = math.exp %151 : vector<2x32xf32>
    %cst_52 = arith.constant 1.000000e+00 : f32
    %153 = vector.broadcast %cst_52 : f32 to vector<2x32xf32>
    %154 = arith.addf %153, %152 : vector<2x32xf32>
    %cst_53 = arith.constant 1.000000e+00 : f32
    %155 = vector.broadcast %cst_53 : f32 to vector<2x32xf32>
    %156 = arith.divf %155, %154 : vector<2x32xf32>
    %157 = arith.mulf %146, %85 : vector<2x32xf32>
    %158 = arith.mulf %138, %148 : vector<2x32xf32>
    %159 = arith.addf %157, %158 : vector<2x32xf32>
    %160 = math.tanh %159 : vector<2x32xf32>
    %161 = arith.mulf %156, %160 : vector<2x32xf32>
    %162 = vector.extract_strided_slice %16 {offsets = [2, 0, 0], sizes = [1, 2, 128], strides = [1, 1, 1]} : vector<3x2x256xf32> to vector<1x2x128xf32>
    %163 = vector.shape_cast %162 : vector<1x2x128xf32> to vector<2x128xf32>
    %164 = vector.extract_strided_slice %16 {offsets = [0, 0, 128], sizes = [1, 2, 128], strides = [1, 1, 1]} : vector<3x2x256xf32> to vector<1x2x128xf32>
    %165 = vector.shape_cast %164 : vector<1x2x128xf32> to vector<2x128xf32>
    %166 = tpu.concatenate %163, %165 in 1 : vector<2x128xf32>, vector<2x128xf32> -> vector<2x256xf32>
    %167 = tpu.concatenate %129, %161 in 1 : vector<2x32xf32>, vector<2x32xf32> -> vector<2x64xf32>
    %168 = arith.truncf %167 : vector<2x64xf32> to vector<2x64xbf16>
    %c0_54 = arith.constant 0 : index
    %c0_55 = arith.constant 0 : index
    %169 = vector.load %arg4[%c0_54, %c0_55] : memref<64x256xbf16, #tpu.memory_space<vmem>>, vector<64x256xbf16>
    %cst_56 = arith.constant dense<0.000000e+00> : vector<2x256xf32>
    %170 = tpu.matmul %168, %169, %cst_56 {dimension_numbers = #tpu.dot_dimension_numbers<[1], [0], [0], [1], [0, 0, 1, 1], [], []>} : vector<2x64xbf16>, vector<64x256xbf16>, vector<2x256xf32> -> vector<2x256xf32>
    %171 = arith.addf %166, %170 : vector<2x256xf32>
    %172 = vector.extract_strided_slice %171 {offsets = [0, 0], sizes = [2, 128], strides = [1, 1]} : vector<2x256xf32> to vector<2x128xf32>
    %173 = vector.extract_strided_slice %172 {offsets = [0, 0], sizes = [2, 32], strides = [1, 1]} : vector<2x128xf32> to vector<2x32xf32>
    %cst_57 = arith.constant 0.000000e+00 : f32
    %174 = vector.broadcast %cst_57 : f32 to vector<2x32xf32>
    %175 = arith.subf %174, %173 : vector<2x32xf32>
    %176 = math.exp %175 : vector<2x32xf32>
    %cst_58 = arith.constant 1.000000e+00 : f32
    %177 = vector.broadcast %cst_58 : f32 to vector<2x32xf32>
    %178 = arith.addf %177, %176 : vector<2x32xf32>
    %cst_59 = arith.constant 1.000000e+00 : f32
    %179 = vector.broadcast %cst_59 : f32 to vector<2x32xf32>
    %180 = arith.divf %179, %178 : vector<2x32xf32>
    %181 = vector.extract_strided_slice %172 {offsets = [0, 32], sizes = [2, 32], strides = [1, 1]} : vector<2x128xf32> to vector<2x32xf32>
    %cst_60 = arith.constant 0.000000e+00 : f32
    %182 = vector.broadcast %cst_60 : f32 to vector<2x32xf32>
    %183 = arith.subf %182, %181 : vector<2x32xf32>
    %184 = math.exp %183 : vector<2x32xf32>
    %cst_61 = arith.constant 1.000000e+00 : f32
    %185 = vector.broadcast %cst_61 : f32 to vector<2x32xf32>
    %186 = arith.addf %185, %184 : vector<2x32xf32>
    %cst_62 = arith.constant 1.000000e+00 : f32
    %187 = vector.broadcast %cst_62 : f32 to vector<2x32xf32>
    %188 = arith.divf %187, %186 : vector<2x32xf32>
    %189 = vector.extract_strided_slice %172 {offsets = [0, 64], sizes = [2, 32], strides = [1, 1]} : vector<2x128xf32> to vector<2x32xf32>
    %190 = math.tanh %189 : vector<2x32xf32>
    %191 = vector.extract_strided_slice %172 {offsets = [0, 96], sizes = [2, 32], strides = [1, 1]} : vector<2x128xf32> to vector<2x32xf32>
    %cst_63 = arith.constant 0.000000e+00 : f32
    %192 = vector.broadcast %cst_63 : f32 to vector<2x32xf32>
    %193 = arith.subf %192, %191 : vector<2x32xf32>
    %194 = math.exp %193 : vector<2x32xf32>
    %cst_64 = arith.constant 1.000000e+00 : f32
    %195 = vector.broadcast %cst_64 : f32 to vector<2x32xf32>
    %196 = arith.addf %195, %194 : vector<2x32xf32>
    %cst_65 = arith.constant 1.000000e+00 : f32
    %197 = vector.broadcast %cst_65 : f32 to vector<2x32xf32>
    %198 = arith.divf %197, %196 : vector<2x32xf32>
    %199 = arith.mulf %188, %127 : vector<2x32xf32>
    %200 = arith.mulf %180, %190 : vector<2x32xf32>
    %201 = arith.addf %199, %200 : vector<2x32xf32>
    %202 = math.tanh %201 : vector<2x32xf32>
    %203 = arith.mulf %198, %202 : vector<2x32xf32>
    %204 = tpu.concatenate %203, %87 in 1 : vector<2x32xf32>, vector<2x32xf32> -> vector<2x64xf32>
    %205 = arith.truncf %204 : vector<2x64xf32> to vector<2x64xbf16>
    %c0_66 = arith.constant 0 : index
    %c0_67 = arith.constant 0 : index
    %206 = vector.load %arg5[%c0_66, %c0_67] : memref<64x2xbf16, #tpu.memory_space<vmem>>, vector<64x2xbf16>
    %cst_68 = arith.constant dense<0.000000e+00> : vector<2x2xf32>
    %207 = tpu.matmul %205, %206, %cst_68 {dimension_numbers = #tpu.dot_dimension_numbers<[1], [0], [0], [1], [0, 0, 1, 1], [], []>} : vector<2x64xbf16>, vector<64x2xbf16>, vector<2x2xf32> -> vector<2x2xf32>
    %c0_69 = arith.constant 0 : index
    %c0_70 = arith.constant 0 : index
    %208 = vector.load %arg6[%c0_69, %c0_70] : memref<1x2xf32, #tpu.memory_space<vmem>>, vector<1x2xf32>
    %209 = vector.broadcast %208 : vector<1x2xf32> to vector<2x2xf32>
    %210 = arith.addf %207, %209 : vector<2x2xf32>
    %c0_71 = arith.constant 0 : index
    %c0_72 = arith.constant 0 : index
    %211 = vector.load %arg7[%c0_71, %c0_72] : memref<2x2xf32, #tpu.memory_space<vmem>>, vector<2x2xf32>
    tpu.vector_store %arg7[%c0_71, %c0_72], %210 {strides = array<i32>} : memref<2x2xf32, #tpu.memory_space<vmem>>, vector<2x2xf32>,
    return
  }
  func.func @transform_0(%arg0: i32) -> (i32, i32, i32) {
    %c0_i32 = arith.constant 0 : i32
    %c0_i32_0 = arith.constant 0 : i32
    %c0_i32_1 = arith.constant 0 : i32
    %c0_i32_2 = arith.constant 0 : i32
    return %c0_i32, %c0_i32_0, %c0_i32_1 : i32, i32, i32
  }
  func.func @transform_1(%arg0: i32) -> (i32, i32, i32) {
    %c0_i32 = arith.constant 0 : i32
    %c0_i32_0 = arith.constant 0 : i32
    %c0_i32_1 = arith.constant 0 : i32
    %c0_i32_2 = arith.constant 0 : i32
    return %c0_i32, %c0_i32_0, %c0_i32_1 : i32, i32, i32
  }
  func.func @transform_2(%arg0: i32) -> (i32, i32) {
    %c0_i32 = arith.constant 0 : i32
    %c0_i32_0 = arith.constant 0 : i32
    %c0_i32_1 = arith.constant 0 : i32
    return %c0_i32, %c0_i32_0 : i32, i32
  }
  func.func @transform_3(%arg0: i32) -> (i32, i32) {
    %c0_i32 = arith.constant 0 : i32
    %c0_i32_0 = arith.constant 0 : i32
    %c0_i32_1 = arith.constant 0 : i32
    return %c0_i32, %c0_i32_0 : i32, i32
  }
  func.func @transform_4(%arg0: i32) -> (i32, i32) {
    %c0_i32 = arith.constant 0 : i32
    %c0_i32_0 = arith.constant 0 : i32
    %c0_i32_1 = arith.constant 0 : i32
    return %c0_i32, %c0_i32_0 : i32, i32
  }
  func.func @transform_5(%arg0: i32) -> (i32, i32) {
    %c0_i32 = arith.constant 0 : i32
    %c0_i32_0 = arith.constant 0 : i32
    %c0_i32_1 = arith.constant 0 : i32
    return %c0_i32, %c0_i32_0 : i32, i32
  }
  func.func @transform_6(%arg0: i32) -> (i32, i32) {
    %c0_i32 = arith.constant 0 : i32
    %c0_i32_0 = arith.constant 0 : i32
    %c0_i32_1 = arith.constant 0 : i32
    return %c0_i32, %c0_i32_0 : i32, i32
  }
}

</mosaic_0001>

<llo_original>
// kernel: drn22_lstm_forward.3
$region0: #{drn22_lstm_forward.3}
  #allocation0 [shape = 'u32[]', space=smem, size = 0x4, offset = 0x4, fixed_abs, tag = 'smem constant byte address 0x4 - core index']
  #allocation1 [shape = 'u32[72,128]{1,0:T(1,128)}', space=vmem, size = 0x9000, scoped, tag = 'internal scratch']
  %s0 = inlined_call_operand.vmem [shape: f32[2,6,32], index: 0, kind: input, shape index: {}]
  %s1 = inlined_call_operand.vmem [shape: bf16[2,32,256], index: 1, kind: input, shape index: {}]
  %s2 = inlined_call_operand.vmem [shape: f32[1,256], index: 2, kind: input, shape index: {}]
  %s3 = inlined_call_operand.vmem [shape: bf16[64,256], index: 3, kind: input, shape index: {}]
  %s4 = inlined_call_operand.vmem [shape: bf16[64,2], index: 4, kind: input, shape index: {}]
  %s5 = inlined_call_operand.vmem [shape: f32[1,2], index: 5, kind: input, shape index: {}]
  %s6 = inlined_call_operand.hbm [shape: f32[2,2], index: 6, kind: output, shape index: {}]
  %s7 = sld [smem:[#allocation0]]
  $region34: #{drn22_lstm_forward.3} parent=0
    _
  %s9 = ssub.s32 1, %s7
  %s10 = scalar_select 0, %s9, %s7
  $region1: #{drn22_lstm_forward.3} parent=0
    #allocation2 [shape = 'u8[1024]{0}', space=vmem, size = 0x400, scoped, tag = 'output window, operand 0, single buffered']
    #allocation3 [shape = 's32[1]{0}', space=sflag, size = 0x4, scoped, tag = 'scoped memory for drn22_lstm_forward.3']
    %11 = vsyncpa [#allocation3], 0
    // Predicated region
    $region2: #{drn22_lstm_forward.3} parent=1 // pred_check
      _
    $region3: #{drn22_lstm_forward.3} parent=1 // pred_check_branch
      %13 = sbr.rel (0) target = $region5
    $region4: #{drn22_lstm_forward.3} parent=1 // pred_region
      _
    $region5: #{drn22_lstm_forward.3} parent=1 // pred_fallthru
      _
    // Predicated region
    $region6: #{drn22_lstm_forward.3} parent=1 // pred_check
      _
    $region7: #{drn22_lstm_forward.3} parent=1 // pred_check_branch
      %15 = sbr.rel (0) target = $region9
    $region8: #{drn22_lstm_forward.3} parent=1 // pred_region
      _
    $region9: #{drn22_lstm_forward.3} parent=1 // pred_fallthru
      _
    // Predicated region
    $region10: #{drn22_lstm_forward.3} parent=1 // pred_check
      _
    $region11: #{drn22_lstm_forward.3} parent=1 // pred_check_branch
      %17 = sbr.rel (0) target = $region13
    $region12: #{drn22_lstm_forward.3} parent=1 // pred_region
      _
    $region13: #{drn22_lstm_forward.3} parent=1 // pred_fallthru
      _
    // Predicated region
    $region14: #{drn22_lstm_forward.3} parent=1 // pred_check
      _
    $region15: #{drn22_lstm_forward.3} parent=1 // pred_check_branch
      %19 = sbr.rel (0) target = $region17
    $region16: #{drn22_lstm_forward.3} parent=1 // pred_region
      _
    $region17: #{drn22_lstm_forward.3} parent=1 // pred_fallthru
      _
    // Predicated region
    $region18: #{drn22_lstm_forward.3} parent=1 // pred_check
      _
    $region19: #{drn22_lstm_forward.3} parent=1 // pred_check_branch
      %21 = sbr.rel (0) target = $region21
    $region20: #{drn22_lstm_forward.3} parent=1 // pred_region
      _
    $region21: #{drn22_lstm_forward.3} parent=1 // pred_fallthru
      _
    // Predicated region
    $region22: #{drn22_lstm_forward.3} parent=1 // pred_check
      _
    $region23: #{drn22_lstm_forward.3} parent=1 // pred_check_branch
      %23 = sbr.rel (0) target = $region25
    $region24: #{drn22_lstm_forward.3} parent=1 // pred_region
      _
    $region25: #{drn22_lstm_forward.3} parent=1 // pred_fallthru
      _
    %v25 = vld [vmem:[%s0] sm:$0x3f]
    %v26 = vpack.c.bf16 %v25, %v25
    %v27 = vld [vmem:[%s1] sm:$0xff]
    %v28 = vld [vmem:[%s1 + $0x8] sm:$0xff]
    %v29 = vld [vmem:[%s1 + $0x10] sm:$0xff]
    %v30 = vld [vmem:[%s1 + $0x18] sm:$0xff]
    %s31 = scalar_lea.vmem %s0, 8
    %v32 = vld [vmem:[%s31] sm:$0x3f]
    %v33 = vpack.c.bf16 %v32, %v32
    %s34 = scalar_lea.vmem %s1, 32
    %v35 = vld [vmem:[%s34] sm:$0xff]
    %v36 = vld [vmem:[%s34 + $0x8] sm:$0xff]
    %v37 = vld [vmem:[%s34 + $0x10] sm:$0xff]
    %v38 = vld [vmem:[%s34 + $0x18] sm:$0xff]
    %v43 = vunpack.c.l.b16 %v35
    %v44 = vunpack.c.h.b16 %v35
    %v45 = vunpack.c.l.b16 %v36
    %v46 = vunpack.c.h.b16 %v36
    %v47 = vunpack.c.l.b16 %v37
    %v48 = vunpack.c.h.b16 %v37
    %v49 = vunpack.c.l.b16 %v38
    %v50 = vunpack.c.h.b16 %v38
    %v51 = vpack.c.b16 %v45, %v43
    %v52 = vpack.c.b16 %v46, %v44
    %v53 = vpack.c.b16 %v49, %v47
    %v54 = vpack.c.b16 %v50, %v48
    %vm59 = vcmask 261120
    %v61 = vsel %vm59, %v33, 0
    %63 = vmatpush.bf16.msra.mxu0 0
    %64 = vmatpush.bf16.msra.mxu0 0
    %65 = vmatpush.bf16.msra.mxu0 0
    %66 = vmatpush.bf16.msra.mxu0 0
    %67 = vmatpush.bf16.msra.mxu0 0
    %68 = vmatpush.bf16.msra.mxu0 0
    %69 = vmatpush.bf16.msra.mxu0 %v53
    %70 = vmatpush.bf16.msra.mxu0 %v51
    %71 = vmatmul.bf16.gmra.mxu0 %v61
    %v72 = vpop.f32.mrf.mxu0
    %v73 = vadd.f32 0.0, %v72
    %v74 = vpop.f32.mrf.mxu0
    %75 = vdwg.mxu0
    %76 = vmatpush.bf16.msra.mxu0 0
    %77 = vmatpush.bf16.msra.mxu0 0
    %78 = vmatpush.bf16.msra.mxu0 0
    %79 = vmatpush.bf16.msra.mxu0 0
    %80 = vmatpush.bf16.msra.mxu0 0
    %81 = vmatpush.bf16.msra.mxu0 0
    %82 = vmatpush.bf16.msra.mxu0 %v54
    %83 = vmatpush.bf16.msra.mxu0 %v52
    %84 = vmatmul.bf16.gmra.mxu0 %v61
    %v85 = vpop.f32.mrf.mxu0
    %v86 = vadd.f32 0.0, %v85
    %v87 = vpop.f32.mrf.mxu0
    %88 = vdwg.mxu0
    %v93 = vunpack.c.l.b16 %v27
    %v94 = vunpack.c.h.b16 %v27
    %v95 = vunpack.c.l.b16 %v28
    %v96 = vunpack.c.h.b16 %v28
    %v97 = vunpack.c.l.b16 %v29
    %v98 = vunpack.c.h.b16 %v29
    %v99 = vunpack.c.l.b16 %v30
    %v100 = vunpack.c.h.b16 %v30
    %v101 = vpack.c.b16 %v95, %v93
    %v102 = vpack.c.b16 %v96, %v94
    %v103 = vpack.c.b16 %v99, %v97
    %v104 = vpack.c.b16 %v100, %v98
    %v110 = vsel %vm59, %v26, 0
    %112 = vmatpush.bf16.msra.mxu0 0
    %113 = vmatpush.bf16.msra.mxu0 0
    %114 = vmatpush.bf16.msra.mxu0 0
    %115 = vmatpush.bf16.msra.mxu0 0
    %116 = vmatpush.bf16.msra.mxu0 0
    %117 = vmatpush.bf16.msra.mxu0 0
    %118 = vmatpush.bf16.msra.mxu0 %v103
    %119 = vmatpush.bf16.msra.mxu0 %v101
    %120 = vmatmul.bf16.gmra.mxu0 %v110
    %v121 = vpop.f32.mrf.mxu0
    %v122 = vadd.f32 %v73, %v121
    %v123 = vpop.f32.mrf.mxu0
    %124 = vdwg.mxu0
    %125 = vmatpush.bf16.msra.mxu0 0
    %126 = vmatpush.bf16.msra.mxu0 0
    %127 = vmatpush.bf16.msra.mxu0 0
    %128 = vmatpush.bf16.msra.mxu0 0
    %129 = vmatpush.bf16.msra.mxu0 0
    %130 = vmatpush.bf16.msra.mxu0 0
    %131 = vmatpush.bf16.msra.mxu0 %v104
    %132 = vmatpush.bf16.msra.mxu0 %v102
    %133 = vmatmul.bf16.gmra.mxu0 %v110
    %v134 = vpop.f32.mrf.mxu0
    %v135 = vadd.f32 %v86, %v134
    %v136 = vpop.f32.mrf.mxu0
    %137 = vdwg.mxu0
    %v138 = vld [vmem:[%s2] sm:$0x3]
    %v140 = vperm.slane %v138, 0
    %v141 = vperm.slane %v138, 1
    %v144 = vadd.f32 %v122, %v140
    %v145 = vadd.f32 %v135, %v141
    %v148 = vrot.slane %v145, 6
    %vm149 = vcmask 1041408
    %v150 = vsel %vm149, %v144, %v148
    %vm151 = vcmask 1043458
    %v152 = vsel %vm151, %v144, %v148
    %v153 = vrot.slane %v152, 2
    %vm154 = vcmask 1045508
    %v155 = vsel %vm154, %v144, %v148
    %v156 = vrot.slane %v155, 4
    %v160 = vrot.slane %v156, 2
    %v162 = vsub.f32 0.0, %v150
    %v163 = vmul.f32 %v162, 1.442695
    %v164 = vpow.pop %v163
    %v165 = vadd.f32 %v164, 1.0
    %v166 = vrcp.pop %v165
    %v167 = vmul.f32 %v165, %v166
    %v168 = vsub.f32 1.0, %v167
    %v169 = vmul.f32 %v166, %v168
    %v170 = vadd.f32 %v166, %v169
    %vm171 = vweird.f32 %v165
    %vm172 = vweird.f32 %v166
    %vm173 = vmor %vm171, %vm172
    %v174 = vsel %vm173, %v166, %v170
    %v175 = vand.u32 2147483647, %v165
    %vm176 = vcmp.eq.f32.partialorder %v175, 8.507059e+37
    %v177 = vand.u32 %v165, 2147483648
    %v178 = vor.u32 1.1754944e-38, %v177
    %v179 = vsel %vm176, %v178, %v174
    %v180 = vmul.f32 1.0, %v179
    %v181 = vtanh.pop %v150
    %v182 = vmul.f32 %v180, 0.0
    %184 = vrot.lane.b32.xlu0 %v181, 64
    %v185 = vpop.permute.xlu0 %184
    %v187 = vmul.f32 %v180, %v185
    %189 = vrot.lane.b32.xlu0 %v187, 32
    %v190 = vpop.permute.xlu0 %189
    %v192 = vadd.f32 %v182, %v190
    %v193 = vtanh.pop %v192
    %195 = vrot.lane.b32.xlu0 %v193, 64
    %v196 = vpop.permute.xlu0 %195
    %v198 = vmul.f32 %v180, %v196
    %v199 = vsub.f32 0.0, %v160
    %v200 = vmul.f32 %v199, 1.442695
    %v201 = vpow.pop %v200
    %v202 = vadd.f32 %v201, 1.0
    %v203 = vrcp.pop %v202
    %v204 = vmul.f32 %v202, %v203
    %v205 = vsub.f32 1.0, %v204
    %v206 = vmul.f32 %v203, %v205
    %v207 = vadd.f32 %v203, %v206
    %vm208 = vweird.f32 %v202
    %vm209 = vweird.f32 %v203
    %vm210 = vmor %vm208, %vm209
    %v211 = vsel %vm210, %v203, %v207
    %v212 = vand.u32 2147483647, %v202
    %vm213 = vcmp.eq.f32.partialorder %v212, 8.507059e+37
    %v214 = vand.u32 %v202, 2147483648
    %v215 = vor.u32 1.1754944e-38, %v214
    %v216 = vsel %vm213, %v215, %v211
    %v217 = vmul.f32 1.0, %v216
    %v218 = vtanh.pop %v160
    %v219 = vmul.f32 %v217, 0.0
    %221 = vrot.lane.b32.xlu0 %v218, 64
    %v222 = vpop.permute.xlu0 %221
    %v224 = vmul.f32 %v217, %v222
    %226 = vrot.lane.b32.xlu0 %v224, 32
    %v227 = vpop.permute.xlu0 %226
    %v229 = vadd.f32 %v219, %v227
    %v230 = vtanh.pop %v229
    %232 = vrot.lane.b32.xlu0 %v230, 64
    %v233 = vpop.permute.xlu0 %232
    %v235 = vmul.f32 %v217, %v233
    %v236 = vrot.slane %v153, 2
    %239 = vrot.lane.b32.xlu0 %v198, 32
    %v240 = vpop.permute.xlu0 %239
    %243 = vrot.lane.b32.xlu0 %v235, 64
    %v244 = vpop.permute.xlu0 %243
    %v246 = vsel %vm59, %v240, %v244
    %v247 = vpack.c.bf16 %v246, %v246
    %v248 = vld [vmem:[%s3] sm:$0xff]
    %v249 = vld [vmem:[%s3 + $0x8] sm:$0xff]
    %v250 = vld [vmem:[%s3 + $0x10] sm:$0xff]
    %v251 = vld [vmem:[%s3 + $0x18] sm:$0xff]
    %v252 = vld [vmem:[%s3 + $0x20] sm:$0xff]
    %v253 = vld [vmem:[%s3 + $0x28] sm:$0xff]
    %v254 = vld [vmem:[%s3 + $0x30] sm:$0xff]
    %v255 = vld [vmem:[%s3 + $0x38] sm:$0xff]
    %v264 = vunpack.c.l.b16 %v248
    %v265 = vunpack.c.h.b16 %v248
    %v266 = vunpack.c.l.b16 %v249
    %v267 = vunpack.c.h.b16 %v249
    %v268 = vunpack.c.l.b16 %v250
    %v269 = vunpack.c.h.b16 %v250
    %v270 = vunpack.c.l.b16 %v251
    %v271 = vunpack.c.h.b16 %v251
    %v272 = vunpack.c.l.b16 %v252
    %v273 = vunpack.c.h.b16 %v252
    %v274 = vunpack.c.l.b16 %v253
    %v275 = vunpack.c.h.b16 %v253
    %v276 = vunpack.c.l.b16 %v254
    %v277 = vunpack.c.h.b16 %v254
    %v278 = vunpack.c.l.b16 %v255
    %v279 = vunpack.c.h.b16 %v255
    %v280 = vpack.c.b16 %v266, %v264
    %v281 = vpack.c.b16 %v267, %v265
    %v282 = vpack.c.b16 %v270, %v268
    %v283 = vpack.c.b16 %v271, %v269
    %v284 = vpack.c.b16 %v274, %v272
    %v285 = vpack.c.b16 %v275, %v273
    %v286 = vpack.c.b16 %v278, %v276
    %v287 = vpack.c.b16 %v279, %v277
    %vm296 = vcmask 523264
    %v298 = vsel %vm296, %v247, 0
    %300 = vmatpush.bf16.msra.mxu0 0
    %301 = vmatpush.bf16.msra.mxu0 0
    %302 = vmatpush.bf16.msra.mxu0 0
    %303 = vmatpush.bf16.msra.mxu0 0
    %304 = vmatpush.bf16.msra.mxu0 %v286
    %305 = vmatpush.bf16.msra.mxu0 %v284
    %306 = vmatpush.bf16.msra.mxu0 %v282
    %307 = vmatpush.bf16.msra.mxu0 %v280
    %308 = vmatmul.bf16.gmra.mxu0 %v298
    %v309 = vpop.f32.mrf.mxu0
    %v310 = vadd.f32 0.0, %v309
    %v311 = vpop.f32.mrf.mxu0
    %312 = vdwg.mxu0
    %313 = vmatpush.bf16.msra.mxu0 0
    %314 = vmatpush.bf16.msra.mxu0 0
    %315 = vmatpush.bf16.msra.mxu0 0
    %316 = vmatpush.bf16.msra.mxu0 0
    %317 = vmatpush.bf16.msra.mxu0 %v287
    %318 = vmatpush.bf16.msra.mxu0 %v285
    %319 = vmatpush.bf16.msra.mxu0 %v283
    %320 = vmatpush.bf16.msra.mxu0 %v281
    %321 = vmatmul.bf16.gmra.mxu0 %v298
    %v322 = vpop.f32.mrf.mxu0
    %v323 = vadd.f32 0.0, %v322
    %v324 = vpop.f32.mrf.mxu0
    %325 = vdwg.mxu0
    %v326 = vadd.f32 %v153, %v310
    %v327 = vadd.f32 %v236, %v323
    %v328 = vsub.f32 0.0, %v326
    %v329 = vmul.f32 %v328, 1.442695
    %v330 = vpow.pop %v329
    %v331 = vadd.f32 %v330, 1.0
    %v332 = vrcp.pop %v331
    %v333 = vmul.f32 %v331, %v332
    %v334 = vsub.f32 1.0, %v333
    %v335 = vmul.f32 %v332, %v334
    %v336 = vadd.f32 %v332, %v335
    %vm337 = vweird.f32 %v331
    %vm338 = vweird.f32 %v332
    %vm339 = vmor %vm337, %vm338
    %v340 = vsel %vm339, %v332, %v336
    %v341 = vand.u32 2147483647, %v331
    %vm342 = vcmp.eq.f32.partialorder %v341, 8.507059e+37
    %v343 = vand.u32 %v331, 2147483648
    %v344 = vor.u32 1.1754944e-38, %v343
    %v345 = vsel %vm342, %v344, %v340
    %v346 = vmul.f32 1.0, %v345
    %v347 = vtanh.pop %v326
    %v348 = vmul.f32 %v346, %v192
    %350 = vrot.lane.b32.xlu0 %v347, 64
    %v351 = vpop.permute.xlu0 %350
    %v353 = vmul.f32 %v346, %v351
    %355 = vrot.lane.b32.xlu0 %v353, 32
    %v356 = vpop.permute.xlu0 %355
    %v358 = vadd.f32 %v348, %v356
    %v359 = vtanh.pop %v358
    %361 = vrot.lane.b32.xlu0 %v359, 64
    %v362 = vpop.permute.xlu0 %361
    %v364 = vmul.f32 %v346, %v362
    %v365 = vsub.f32 0.0, %v327
    %v366 = vmul.f32 %v365, 1.442695
    %v367 = vpow.pop %v366
    %v368 = vadd.f32 %v367, 1.0
    %v369 = vrcp.pop %v368
    %v370 = vmul.f32 %v368, %v369
    %v371 = vsub.f32 1.0, %v370
    %v372 = vmul.f32 %v369, %v371
    %v373 = vadd.f32 %v369, %v372
    %vm374 = vweird.f32 %v368
    %vm375 = vweird.f32 %v369
    %vm376 = vmor %vm374, %vm375
    %v377 = vsel %vm376, %v369, %v373
    %v378 = vand.u32 2147483647, %v368
    %vm379 = vcmp.eq.f32.partialorder %v378, 8.507059e+37
    %v380 = vand.u32 %v368, 2147483648
    %v381 = vor.u32 1.1754944e-38, %v380
    %v382 = vsel %vm379, %v381, %v377
    %v383 = vmul.f32 1.0, %v382
    %v384 = vtanh.pop %v327
    %v385 = vmul.f32 %v383, %v229
    %387 = vrot.lane.b32.xlu0 %v384, 64
    %v388 = vpop.permute.xlu0 %387
    %v390 = vmul.f32 %v383, %v388
    %392 = vrot.lane.b32.xlu0 %v390, 32
    %v393 = vpop.permute.xlu0 %392
    %v395 = vadd.f32 %v385, %v393
    %v396 = vtanh.pop %v395
    %398 = vrot.lane.b32.xlu0 %v396, 64
    %v399 = vpop.permute.xlu0 %398
    %v401 = vmul.f32 %v383, %v399
    %403 = vrot.lane.b32.xlu0 %v364, 32
    %v404 = vpop.permute.xlu0 %403
    %407 = vrot.lane.b32.xlu0 %v401, 64
    %v408 = vpop.permute.xlu0 %407
    %v410 = vsel %vm59, %v404, %v408
    %v411 = vpack.c.bf16 %v410, %v410
    %v413 = vsel %vm296, %v411, 0
    %415 = vmatpush.bf16.msra.mxu0 0
    %416 = vmatpush.bf16.msra.mxu0 0
    %417 = vmatpush.bf16.msra.mxu0 0
    %418 = vmatpush.bf16.msra.mxu0 0
    %419 = vmatpush.bf16.msra.mxu0 %v286
    %420 = vmatpush.bf16.msra.mxu0 %v284
    %421 = vmatpush.bf16.msra.mxu0 %v282
    %422 = vmatpush.bf16.msra.mxu0 %v280
    %423 = vmatmul.bf16.gmra.mxu0 %v413
    %v424 = vpop.f32.mrf.mxu0
    %v425 = vadd.f32 0.0, %v424
    %v426 = vpop.f32.mrf.mxu0
    %427 = vdwg.mxu0
    %v428 = vadd.f32 %v156, %v425
    %v429 = vsub.f32 0.0, %v428
    %v430 = vmul.f32 %v429, 1.442695
    %v431 = vpow.pop %v430
    %v432 = vadd.f32 %v431, 1.0
    %v433 = vrcp.pop %v432
    %v434 = vmul.f32 %v432, %v433
    %v435 = vsub.f32 1.0, %v434
    %v436 = vmul.f32 %v433, %v435
    %v437 = vadd.f32 %v433, %v436
    %vm438 = vweird.f32 %v432
    %vm439 = vweird.f32 %v433
    %vm440 = vmor %vm438, %vm439
    %v441 = vsel %vm440, %v433, %v437
    %v442 = vand.u32 2147483647, %v432
    %vm443 = vcmp.eq.f32.partialorder %v442, 8.507059e+37
    %v444 = vand.u32 %v432, 2147483648
    %v445 = vor.u32 1.1754944e-38, %v444
    %v446 = vsel %vm443, %v445, %v441
    %v447 = vmul.f32 1.0, %v446
    %v448 = vtanh.pop %v428
    %v449 = vmul.f32 %v447, %v358
    %451 = vrot.lane.b32.xlu0 %v448, 64
    %v452 = vpop.permute.xlu0 %451
    %v454 = vmul.f32 %v447, %v452
    %456 = vrot.lane.b32.xlu0 %v454, 32
    %v457 = vpop.permute.xlu0 %456
    %v459 = vadd.f32 %v449, %v457
    %v460 = vtanh.pop %v459
    %462 = vrot.lane.b32.xlu0 %v460, 64
    %v463 = vpop.permute.xlu0 %462
    %v465 = vmul.f32 %v447, %v463
    %467 = vrot.lane.b32.xlu0 %v465, 32
    %v468 = vpop.permute.xlu0 %467
    %v470 = vsel %vm59, %v468, %v244
    %v471 = vpack.c.bf16 %v470, %v470
    %v472 = vld [vmem:[%s4] sm:$0xf]
    %v473 = vld [vmem:[%s4 + $0x4] sm:$0xf]
    %v474 = vld [vmem:[%s4 + $0x8] sm:$0xf]
    %v475 = vld [vmem:[%s4 + $0xc] sm:$0xf]
    %v476 = vld [vmem:[%s4 + $0x10] sm:$0xf]
    %v477 = vld [vmem:[%s4 + $0x14] sm:$0xf]
    %v478 = vld [vmem:[%s4 + $0x18] sm:$0xf]
    %v479 = vld [vmem:[%s4 + $0x1c] sm:$0xf]
    %v480 = vld [vmem:[%s5] sm:$0x1]
    %v482 = vperm.slane %v480, 0
    %v492 = vunpack.c.l.b16 %v472
    %v493 = vunpack.c.l.b16 %v473
    %v494 = vunpack.c.l.b16 %v474
    %v495 = vunpack.c.l.b16 %v475
    %v496 = vunpack.c.l.b16 %v476
    %v497 = vunpack.c.l.b16 %v477
    %v498 = vunpack.c.l.b16 %v478
    %v499 = vunpack.c.l.b16 %v479
    %v500 = vpack.c.b16 %v493, %v492
    %v501 = vpack.c.b16 %v495, %v494
    %v502 = vpack.c.b16 %v497, %v496
    %v503 = vpack.c.b16 %v499, %v498
    %v509 = vsel %vm296, %v471, 0
    %511 = vmatpush.bf16.msra.mxu0 0
    %512 = vmatpush.bf16.msra.mxu0 0
    %513 = vmatpush.bf16.msra.mxu0 0
    %514 = vmatpush.bf16.msra.mxu0 0
    %515 = vmatpush.bf16.msra.mxu0 %v503
    %516 = vmatpush.bf16.msra.mxu0 %v502
    %517 = vmatpush.bf16.msra.mxu0 %v501
    %518 = vmatpush.bf16.msra.mxu0 %v500
    %519 = vmatmul.bf16.gmra.mxu0 %v509
    %v520 = vpop.f32.mrf.mxu0
    %v521 = vadd.f32 %v482, %v520
    %v522 = vpop.f32.mrf.mxu0
    %523 = vdwg.mxu0
    %vm524 = vcmask 9216
    %525 = vst.msk [vmem:[#allocation2] sm:$0x3] %vm524, %v521
    // Predicated region
    $region26: #{drn22_lstm_forward.3} parent=1 // pred_check
      _
    $region27: #{drn22_lstm_forward.3} parent=1 // pred_check_branch
      %527 = sbr.rel (0) target = $region29
    $region28: #{drn22_lstm_forward.3} parent=1 // pred_region
      %529 = vsyncadd [#allocation3], 0
      %s531 = sshll.u32 [#allocation2], 4
      %s532 = int_to_ptr.vmem [resolvable:$true] %s531
      %s533 = sshll.u32 %s6, 4
      %s534 = int_to_ptr.hbm [resolvable:$true] %s533
      %536 = dma.vmem_to_hbm [thread:$0]  %s532, 32, %s534, [#allocation3]
    $region29: #{drn22_lstm_forward.3} parent=1 // pred_fallthru
      _
    // Predicated region
    $region30: #{drn22_lstm_forward.3} parent=1 // pred_check
      _
    $region31: #{drn22_lstm_forward.3} parent=1 // pred_check_branch
      %538 = sbr.rel (0) target = $region33
    $region32: #{drn22_lstm_forward.3} parent=1 // pred_region
      %540 = dma.done [#allocation3], 32
    $region33: #{drn22_lstm_forward.3} parent=1 // pred_fallthru
      _
    %541 = vsyncpa [#allocation3], 1

// kernel: drn22_lstm_forward.2
$region0: #{drn22_lstm_forward.2}
  #allocation0 [shape = 'u32[]', space=smem, size = 0x4, offset = 0x4, fixed_abs, tag = 'smem constant byte address 0x4 - core index']
  #allocation1 [shape = 'u32[72,128]{1,0:T(1,128)}', space=vmem, size = 0x9000, scoped, tag = 'internal scratch']
  %s0 = inlined_call_operand.vmem [shape: bf16[2,1536,36], index: 0, kind: input, shape index: {}]
  %s1 = inlined_call_operand.vmem [shape: bf16[2,36,16], index: 1, kind: input, shape index: {}]
  %s2 = inlined_call_operand.vmem [shape: f32[2,1,16], index: 2, kind: input, shape index: {}]
  %s3 = inlined_call_operand.vmem [shape: bf16[2,144,32], index: 3, kind: input, shape index: {}]
  %s4 = inlined_call_operand.vmem [shape: f32[2,1,32], index: 4, kind: input, shape index: {}]
  %s5 = inlined_call_operand.vmem [shape: f32[2,6,32], index: 5, kind: output, shape index: {}]
  %s6 = sld [smem:[#allocation0]]
  $region53: #{drn22_lstm_forward.2} parent=0
    _
  %s8 = ssub.s32 1, %s6
  %s9 = scalar_select 0, %s8, %s6
  loop: start=0, step=1, limit=4
  $region2: #{drn22_lstm_forward.2} parent=0 // loop_pre_header
    _
  $region3: #{drn22_lstm_forward.2} parent=0 // loop_header
    %s11 = sphi 0, %s15
    %p12 = scmp.ge.s32.totalorder %s11, 4
    %s21 = sphi 0, %s23
    %s24 = sphi 0, %s21
    %s25 = sphi 0, %s24
    %s41 = sphi 0, %s25
    %s47 = sphi 0, %s49
    %s50 = sphi 0, %s47
    %s51 = sphi 0, %s50
    %s67 = sphi 0, %s51
    %s73 = sphi 0, %s75
    %s76 = sphi 0, %s73
    %s77 = sphi 0, %s76
    %s93 = sphi 0, %s77
    %s99 = sphi 0, %s101
    %s102 = sphi 0, %s99
    %s103 = sphi 0, %s102
    %s119 = sphi 0, %s103
    %s125 = sphi 0, %s127
    %s128 = sphi 0, %s125
    %s129 = sphi 0, %s128
    %s145 = sphi 0, %s129
    %s151 = sphi 0, %s153
    %s154 = sphi 0, %s151
    %s155 = sphi 0, %s154
    %s171 = sphi 0, %s155
  $region4: #{drn22_lstm_forward.2} parent=0 // loop_header_branch
    %14 = sbr.rel (%p12) target = $region8
  $region5: #{drn22_lstm_forward.2} parent=0 // loop_body
    %s16 = ssub.s32 %s11, 1
    %s17 = ssub.s32 %s11, 2
    %s18 = sadd.s32 %s11, 1
    %s19 = ssub.s32 %s11, %s18
    %p20 = scmp.eq.s32.totalorder %s19, 0
    %s22 = sadd.s32 %s21, 1
    %s23 = scalar_select %p20, %s21, %s22
    %p26 = pneg %p20
    %p27 = scmp.eq.s32.totalorder %s11, 1
    %p28 = por %p26, %p27
    %p29 = scmp.ne.s32.totalorder %s21, %s24
    %p30 = scmp.eq.s32.totalorder %s11, 0
    %p31 = por %p29, %p30
    %p32 = scmp.ne.s32.totalorder %s21, %s24
    %p33 = scmp.eq.s32.totalorder %s16, 1
    %p34 = por %p32, %p33
    %p35 = scmp.ne.s32.totalorder %s24, %s25
    %p36 = scmp.eq.s32.totalorder %s16, 0
    %p37 = por %p35, %p36
    %p38 = scmp.ne.s32.totalorder %s24, %s25
    %p39 = scmp.eq.s32.totalorder %s17, 1
    %p40 = por %p38, %p39
    %p42 = scmp.ne.s32.totalorder %s25, %s41
    %p43 = scmp.eq.s32.totalorder %s17, 0
    %p44 = por %p42, %p43
    %s45 = ssub.s32 %s11, %s18
    %p46 = scmp.eq.s32.totalorder %s45, 0
    %s48 = sadd.s32 %s47, 1
    %s49 = scalar_select %p46, %s47, %s48
    %p52 = pneg %p46
    %p53 = scmp.eq.s32.totalorder %s11, 1
    %p54 = por %p52, %p53
    %p55 = scmp.ne.s32.totalorder %s47, %s50
    %p56 = scmp.eq.s32.totalorder %s11, 0
    %p57 = por %p55, %p56
    %p58 = scmp.ne.s32.totalorder %s47, %s50
    %p59 = scmp.eq.s32.totalorder %s16, 1
    %p60 = por %p58, %p59
    %p61 = scmp.ne.s32.totalorder %s50, %s51
    %p62 = scmp.eq.s32.totalorder %s16, 0
    %p63 = por %p61, %p62
    %p64 = scmp.ne.s32.totalorder %s50, %s51
    %p65 = scmp.eq.s32.totalorder %s17, 1
    %p66 = por %p64, %p65
    %p68 = scmp.ne.s32.totalorder %s51, %s67
    %p69 = scmp.eq.s32.totalorder %s17, 0
    %p70 = por %p68, %p69
    %s71 = ssub.s32 %s11, %s18
    %p72 = scmp.eq.s32.totalorder %s71, 0
    %s74 = sadd.s32 %s73, 1
    %s75 = scalar_select %p72, %s73, %s74
    %p78 = pneg %p72
    %p79 = scmp.eq.s32.totalorder %s11, 1
    %p80 = por %p78, %p79
    %p81 = scmp.ne.s32.totalorder %s73, %s76
    %p82 = scmp.eq.s32.totalorder %s11, 0
    %p83 = por %p81, %p82
    %p84 = scmp.ne.s32.totalorder %s73, %s76
    %p85 = scmp.eq.s32.totalorder %s16, 1
    %p86 = por %p84, %p85
    %p87 = scmp.ne.s32.totalorder %s76, %s77
    %p88 = scmp.eq.s32.totalorder %s16, 0
    %p89 = por %p87, %p88
    %p90 = scmp.ne.s32.totalorder %s76, %s77
    %p91 = scmp.eq.s32.totalorder %s17, 1
    %p92 = por %p90, %p91
    %p94 = scmp.ne.s32.totalorder %s77, %s93
    %p95 = scmp.eq.s32.totalorder %s17, 0
    %p96 = por %p94, %p95
    %s97 = ssub.s32 %s11, %s18
    %p98 = scmp.eq.s32.totalorder %s97, 0
    %s100 = sadd.s32 %s99, 1
    %s101 = scalar_select %p98, %s99, %s100
    %p104 = pneg %p98
    %p105 = scmp.eq.s32.totalorder %s11, 1
    %p106 = por %p104, %p105
    %p107 = scmp.ne.s32.totalorder %s99, %s102
    %p108 = scmp.eq.s32.totalorder %s11, 0
    %p109 = por %p107, %p108
    %p110 = scmp.ne.s32.totalorder %s99, %s102
    %p111 = scmp.eq.s32.totalorder %s16, 1
    %p112 = por %p110, %p111
    %p113 = scmp.ne.s32.totalorder %s102, %s103
    %p114 = scmp.eq.s32.totalorder %s16, 0
    %p115 = por %p113, %p114
    %p116 = scmp.ne.s32.totalorder %s102, %s103
    %p117 = scmp.eq.s32.totalorder %s17, 1
    %p118 = por %p116, %p117
    %p120 = scmp.ne.s32.totalorder %s103, %s119
    %p121 = scmp.eq.s32.totalorder %s17, 0
    %p122 = por %p120, %p121
    %s123 = ssub.s32 %s11, %s18
    %p124 = scmp.eq.s32.totalorder %s123, 0
    %s126 = sadd.s32 %s125, 1
    %s127 = scalar_select %p124, %s125, %s126
    %p130 = pneg %p124
    %p131 = scmp.eq.s32.totalorder %s11, 1
    %p132 = por %p130, %p131
    %p133 = scmp.ne.s32.totalorder %s125, %s128
    %p134 = scmp.eq.s32.totalorder %s11, 0
    %p135 = por %p133, %p134
    %p136 = scmp.ne.s32.totalorder %s125, %s128
    %p137 = scmp.eq.s32.totalorder %s16, 1
    %p138 = por %p136, %p137
    %p139 = scmp.ne.s32.totalorder %s128, %s129
    %p140 = scmp.eq.s32.totalorder %s16, 0
    %p141 = por %p139, %p140
    %p142 = scmp.ne.s32.totalorder %s128, %s129
    %p143 = scmp.eq.s32.totalorder %s17, 1
    %p144 = por %p142, %p143
    %p146 = scmp.ne.s32.totalorder %s129, %s145
    %p147 = scmp.eq.s32.totalorder %s17, 0
    %p148 = por %p146, %p147
    %s149 = ssub.s32 %s11, %s18
    %p150 = scmp.eq.s32.totalorder %s149, 0
    %s152 = sadd.s32 %s151, 1
    %s153 = scalar_select %p150, %s151, %s152
    %p156 = pneg %p150
    %p157 = scmp.eq.s32.totalorder %s11, 1
    %p158 = por %p156, %p157
    %p159 = scmp.ne.s32.totalorder %s151, %s154
    %p160 = scmp.eq.s32.totalorder %s11, 0
    %p161 = por %p159, %p160
    %p162 = scmp.ne.s32.totalorder %s151, %s154
    %p163 = scmp.eq.s32.totalorder %s16, 1
    %p164 = por %p162, %p163
    %p165 = scmp.ne.s32.totalorder %s154, %s155
    %p166 = scmp.eq.s32.totalorder %s16, 0
    %p167 = por %p165, %p166
    %p168 = scmp.ne.s32.totalorder %s154, %s155
    %p169 = scmp.eq.s32.totalorder %s17, 1
    %p170 = por %p168, %p169
    %p172 = scmp.ne.s32.totalorder %s155, %s171
    %p173 = scmp.eq.s32.totalorder %s17, 0
    %p174 = por %p172, %p173
    %p175 = scmp.le.s32.totalorder 1, %s11
    %p176 = scmp.lt.s32.totalorder %s11, 3
    %p177 = pnand %p175, %p176
    %p178 = pneg %p177
    // Predicated region
    $region9: #{drn22_lstm_forward.2} parent=5 // pred_check
      _
    $region10: #{drn22_lstm_forward.2} parent=5 // pred_check_branch
      %180 = sbr.rel (%p177) target = $region12
    $region11: #{drn22_lstm_forward.2} parent=5 // pred_region
      %s181 = ssub.s32 %s11, 1
    $region12: #{drn22_lstm_forward.2} parent=5 // pred_fallthru
      _
    %p182 = scmp.lt.s32.totalorder %s11, 2
    // Predicated region
    $region13: #{drn22_lstm_forward.2} parent=5 // pred_check
      %p183 = pneg %p182
    $region14: #{drn22_lstm_forward.2} parent=5 // pred_check_branch
      %185 = sbr.rel (%p183) target = $region16
    $region15: #{drn22_lstm_forward.2} parent=5 // pred_region
      // Predicated region
      $region17: #{drn22_lstm_forward.2} parent=15 // pred_check
        %p186 = pneg %p31
      $region18: #{drn22_lstm_forward.2} parent=15 // pred_check_branch
        %188 = sbr.rel (%p186) target = $region20
      $region19: #{drn22_lstm_forward.2} parent=15 // pred_region
        %p189 = scmp.lt.s32.totalorder %s11, 1
        %s190 = scalar_select %p189, %s11, 1
        %s191 = smul.addr %s190, 192
        %s192 = smul.addr %s191, 4
        %s193 = scalar_lea.vmem %s0, %s192
      $region20: #{drn22_lstm_forward.2} parent=15 // pred_fallthru
        _
      // Predicated region
      $region21: #{drn22_lstm_forward.2} parent=15 // pred_check
        %p194 = pneg %p57
      $region22: #{drn22_lstm_forward.2} parent=15 // pred_check_branch
        %196 = sbr.rel (%p194) target = $region24
      $region23: #{drn22_lstm_forward.2} parent=15 // pred_region
        %p197 = scmp.lt.s32.totalorder %s11, 1
        %s198 = scalar_select %p197, %s11, 1
        %s199 = smul.addr %s198, 5
        %s200 = smul.addr %s199, 4
        %s201 = scalar_lea.vmem %s1, %s200
      $region24: #{drn22_lstm_forward.2} parent=15 // pred_fallthru
        _
      // Predicated region
      $region25: #{drn22_lstm_forward.2} parent=15 // pred_check
        %p202 = pneg %p83
      $region26: #{drn22_lstm_forward.2} parent=15 // pred_check_branch
        %204 = sbr.rel (%p202) target = $region28
      $region27: #{drn22_lstm_forward.2} parent=15 // pred_region
        %p205 = scmp.lt.s32.totalorder %s11, 1
        %s206 = scalar_select %p205, %s11, 1
        %s207 = scalar_lea.vmem %s2, %s206
      $region28: #{drn22_lstm_forward.2} parent=15 // pred_fallthru
        _
      // Predicated region
      $region29: #{drn22_lstm_forward.2} parent=15 // pred_check
        %p208 = pneg %p109
      $region30: #{drn22_lstm_forward.2} parent=15 // pred_check_branch
        %210 = sbr.rel (%p208) target = $region32
      $region31: #{drn22_lstm_forward.2} parent=15 // pred_region
        %p211 = scmp.lt.s32.totalorder %s11, 1
        %s212 = scalar_select %p211, %s11, 1
        %s213 = smul.addr %s212, 18
        %s214 = smul.addr %s213, 4
        %s215 = scalar_lea.vmem %s3, %s214
      $region32: #{drn22_lstm_forward.2} parent=15 // pred_fallthru
        _
      // Predicated region
      $region33: #{drn22_lstm_forward.2} parent=15 // pred_check
        %p216 = pneg %p135
      $region34: #{drn22_lstm_forward.2} parent=15 // pred_check_branch
        %218 = sbr.rel (%p216) target = $region36
      $region35: #{drn22_lstm_forward.2} parent=15 // pred_region
        %p219 = scmp.lt.s32.totalorder %s11, 1
        %s220 = scalar_select %p219, %s11, 1
        %s221 = scalar_lea.vmem %s4, %s220
      $region36: #{drn22_lstm_forward.2} parent=15 // pred_fallthru
        _
    $region16: #{drn22_lstm_forward.2} parent=5 // pred_fallthru
      _
    %p222 = scmp.le.s32.totalorder 1, %s11
    %p223 = scmp.lt.s32.totalorder %s11, 3
    %p224 = pnand %p222, %p223
    %p225 = pneg %p224
    // Predicated region
    $region37: #{drn22_lstm_forward.2} parent=5 // pred_check
      _
    $region38: #{drn22_lstm_forward.2} parent=5 // pred_check_branch
      %227 = sbr.rel (%p224) target = $region40
    $region39: #{drn22_lstm_forward.2} parent=5 // pred_region
      %s228 = ssub.s32 %s11, 1
      %p229 = scmp.lt.s32.totalorder %s16, 1
      %s230 = scalar_select %p229, %s16, 1
      %s231 = smul.addr %s230, 192
      %s232 = smul.addr %s231, 4
      %s233 = scalar_lea.vmem %s0, %s232
      %p234 = pneg %p37
      %p235 = pneg %p34
      %p236 = scmp.lt.s32.totalorder %s16, 1
      %s237 = scalar_select %p236, %s16, 1
      %s238 = smul.addr %s237, 5
      %s239 = smul.addr %s238, 4
      %s240 = scalar_lea.vmem %s1, %s239
      %p241 = pneg %p63
      %p242 = pneg %p60
      %p243 = scmp.lt.s32.totalorder %s16, 1
      %s244 = scalar_select %p243, %s16, 1
      %s245 = scalar_lea.vmem %s2, %s244
      %p246 = pneg %p89
      %p247 = pneg %p86
      %p248 = scmp.lt.s32.totalorder %s16, 1
      %s249 = scalar_select %p248, %s16, 1
      %s250 = smul.addr %s249, 18
      %s251 = smul.addr %s250, 4
      %s252 = scalar_lea.vmem %s3, %s251
      %p253 = pneg %p115
      %p254 = pneg %p112
      %p255 = scmp.lt.s32.totalorder %s16, 1
      %s256 = scalar_select %p255, %s16, 1
      %s257 = scalar_lea.vmem %s4, %s256
      %p258 = pneg %p141
      %p259 = pneg %p138
      %p260 = pneg %p167
      %p261 = pneg %p164
      %p262 = scmp.lt.s32.totalorder %s16, 1
      %s263 = scalar_select %p262, %s16, 1
      %s264 = smul.addr %s263, 8
      %s265 = scalar_lea.vmem %s5, %s264
      %p266 = scmp.lt.s32.totalorder %s16, 1
      %s267 = scalar_select %p266, %s16, 1
      %s268 = smul.addr %s267, 192
      %s269 = smul.addr %s268, 4
      %s270 = scalar_lea.vmem %s0, %s269
      %p271 = scmp.lt.s32.totalorder %s16, 1
      %s272 = scalar_select %p271, %s16, 1
      %s273 = smul.addr %s272, 5
      %s274 = smul.addr %s273, 4
      %s275 = scalar_lea.vmem %s1, %s274
      %p276 = scmp.lt.s32.totalorder %s16, 1
      %s277 = scalar_select %p276, %s16, 1
      %s278 = scalar_lea.vmem %s2, %s277
      %p279 = scmp.lt.s32.totalorder %s16, 1
      %s280 = scalar_select %p279, %s16, 1
      %s281 = smul.addr %s280, 18
      %s282 = smul.addr %s281, 4
      %s283 = scalar_lea.vmem %s3, %s282
      %p284 = scmp.lt.s32.totalorder %s16, 1
      %s285 = scalar_select %p284, %s16, 1
      %s286 = scalar_lea.vmem %s4, %s285
      %p287 = scmp.lt.s32.totalorder %s16, 1
      %s288 = scalar_select %p287, %s16, 1
      %s289 = smul.addr %s288, 8
      %s290 = scalar_lea.vmem %s5, %s289
      %v292 = vld [vmem:[%s270] sm:$0xf]
      %v293 = vld [vmem:[%s270 + $0x4] sm:$0xf]
      %v294 = vld [vmem:[%s270 + $0x8] sm:$0xf]
      %v295 = vld [vmem:[%s270 + $0xc] sm:$0xf]
      %v296 = vld [vmem:[%s270 + $0x10] sm:$0xf]
      %v297 = vld [vmem:[%s270 + $0x14] sm:$0xf]
      %v298 = vld [vmem:[%s270 + $0x18] sm:$0xf]
      %v299 = vld [vmem:[%s270 + $0x1c] sm:$0xf]
      %v300 = vld [vmem:[%s270 + $0x20] sm:$0xf]
      %v301 = vld [vmem:[%s270 + $0x24] sm:$0xf]
      %v302 = vld [vmem:[%s270 + $0x28] sm:$0xf]
      %v303 = vld [vmem:[%s270 + $0x2c] sm:$0xf]
      %v304 = vld [vmem:[%s270 + $0x30] sm:$0xf]
      %v305 = vld [vmem:[%s270 + $0x34] sm:$0xf]
      %v306 = vld [vmem:[%s270 + $0x38] sm:$0xf]
      %v307 = vld [vmem:[%s270 + $0x3c] sm:$0xf]
      %v308 = vld [vmem:[%s270 + $0x40] sm:$0xf]
      %v309 = vld [vmem:[%s270 + $0x44] sm:$0xf]
      %v310 = vld [vmem:[%s270 + $0x48] sm:$0xf]
      %v311 = vld [vmem:[%s270 + $0x4c] sm:$0xf]
      %v312 = vld [vmem:[%s270 + $0x50] sm:$0xf]
      %v313 = vld [vmem:[%s270 + $0x54] sm:$0xf]
      %v314 = vld [vmem:[%s270 + $0x58] sm:$0xf]
      %v315 = vld [vmem:[%s270 + $0x5c] sm:$0xf]
      %v316 = vld [vmem:[%s270 + $0x60] sm:$0xf]
      %v317 = vld [vmem:[%s270 + $0x64] sm:$0xf]
      %v318 = vld [vmem:[%s270 + $0x68] sm:$0xf]
      %v319 = vld [vmem:[%s270 + $0x6c] sm:$0xf]
      %v320 = vld [vmem:[%s270 + $0x70] sm:$0xf]
      %v321 = vld [vmem:[%s270 + $0x74] sm:$0xf]
      %v322 = vld [vmem:[%s270 + $0x78] sm:$0xf]
      %v323 = vld [vmem:[%s270 + $0x7c] sm:$0xf]
      %v324 = vld [vmem:[%s270 + $0x80] sm:$0xf]
      %v325 = vld [vmem:[%s270 + $0x84] sm:$0xf]
      %v326 = vld [vmem:[%s270 + $0x88] sm:$0xf]
      %v327 = vld [vmem:[%s270 + $0x8c] sm:$0xf]
      %v328 = vld [vmem:[%s270 + $0x90] sm:$0xf]
      %v329 = vld [vmem:[%s270 + $0x94] sm:$0xf]
      %v330 = vld [vmem:[%s270 + $0x98] sm:$0xf]
      %v331 = vld [vmem:[%s270 + $0x9c] sm:$0xf]
      %v332 = vld [vmem:[%s270 + $0xa0] sm:$0xf]
      %v333 = vld [vmem:[%s270 + $0xa4] sm:$0xf]
      %v334 = vld [vmem:[%s270 + $0xa8] sm:$0xf]
      %v335 = vld [vmem:[%s270 + $0xac] sm:$0xf]
      %v336 = vld [vmem:[%s270 + $0xb0] sm:$0xf]
      %v337 = vld [vmem:[%s270 + $0xb4] sm:$0xf]
      %v338 = vld [vmem:[%s270 + $0xb8] sm:$0xf]
      %v339 = vld [vmem:[%s270 + $0xbc] sm:$0xf]
      %v340 = vld [vmem:[%s270 + $0xc0] sm:$0xf]
      %v341 = vld [vmem:[%s270 + $0xc4] sm:$0xf]
      %v342 = vld [vmem:[%s270 + $0xc8] sm:$0xf]
      %v343 = vld [vmem:[%s270 + $0xcc] sm:$0xf]
      %v344 = vld [vmem:[%s270 + $0xd0] sm:$0xf]
      %v345 = vld [vmem:[%s270 + $0xd4] sm:$0xf]
      %v346 = vld [vmem:[%s270 + $0xd8] sm:$0xf]
      %v347 = vld [vmem:[%s270 + $0xdc] sm:$0xf]
      %v348 = vld [vmem:[%s270 + $0xe0] sm:$0xf]
      %v349 = vld [vmem:[%s270 + $0xe4] sm:$0xf]
      %v350 = vld [vmem:[%s270 + $0xe8] sm:$0xf]
      %v351 = vld [vmem:[%s270 + $0xec] sm:$0xf]
      %v352 = vld [vmem:[%s270 + $0xf0] sm:$0xf]
      %v353 = vld [vmem:[%s270 + $0xf4] sm:$0xf]
      %v354 = vld [vmem:[%s270 + $0xf8] sm:$0xf]
      %v355 = vld [vmem:[%s270 + $0xfc] sm:$0xf]
      %v356 = vld [vmem:[%s270 + $0x100] sm:$0xf]
      %v357 = vld [vmem:[%s270 + $0x104] sm:$0xf]
      %v358 = vld [vmem:[%s270 + $0x108] sm:$0xf]
      %v359 = vld [vmem:[%s270 + $0x10c] sm:$0xf]
      %v360 = vld [vmem:[%s270 + $0x110] sm:$0xf]
      %v361 = vld [vmem:[%s270 + $0x114] sm:$0xf]
      %v362 = vld [vmem:[%s270 + $0x118] sm:$0xf]
      %v363 = vld [vmem:[%s270 + $0x11c] sm:$0xf]
      %v364 = vld [vmem:[%s270 + $0x120] sm:$0xf]
      %v365 = vld [vmem:[%s270 + $0x124] sm:$0xf]
      %v366 = vld [vmem:[%s270 + $0x128] sm:$0xf]
      %v367 = vld [vmem:[%s270 + $0x12c] sm:$0xf]
      %v368 = vld [vmem:[%s270 + $0x130] sm:$0xf]
      %v369 = vld [vmem:[%s270 + $0x134] sm:$0xf]
      %v370 = vld [vmem:[%s270 + $0x138] sm:$0xf]
      %v371 = vld [vmem:[%s270 + $0x13c] sm:$0xf]
      %v372 = vld [vmem:[%s270 + $0x140] sm:$0xf]
      %v373 = vld [vmem:[%s270 + $0x144] sm:$0xf]
      %v374 = vld [vmem:[%s270 + $0x148] sm:$0xf]
      %v375 = vld [vmem:[%s270 + $0x14c] sm:$0xf]
      %v376 = vld [vmem:[%s270 + $0x150] sm:$0xf]
      %v377 = vld [vmem:[%s270 + $0x154] sm:$0xf]
      %v378 = vld [vmem:[%s270 + $0x158] sm:$0xf]
      %v379 = vld [vmem:[%s270 + $0x15c] sm:$0xf]
      %v380 = vld [vmem:[%s270 + $0x160] sm:$0xf]
      %v381 = vld [vmem:[%s270 + $0x164] sm:$0xf]
      %v382 = vld [vmem:[%s270 + $0x168] sm:$0xf]
      %v383 = vld [vmem:[%s270 + $0x16c] sm:$0xf]
      %v384 = vld [vmem:[%s270 + $0x170] sm:$0xf]
      %v385 = vld [vmem:[%s270 + $0x174] sm:$0xf]
      %v386 = vld [vmem:[%s270 + $0x178] sm:$0xf]
      %v387 = vld [vmem:[%s270 + $0x17c] sm:$0xf]
      %v388 = vld [vmem:[%s270 + $0x180] sm:$0xf]
      %v389 = vld [vmem:[%s270 + $0x184] sm:$0xf]
      %v390 = vld [vmem:[%s270 + $0x188] sm:$0xf]
      %v391 = vld [vmem:[%s270 + $0x18c] sm:$0xf]
      %v392 = vld [vmem:[%s270 + $0x190] sm:$0xf]
      %v393 = vld [vmem:[%s270 + $0x194] sm:$0xf]
      %v394 = vld [vmem:[%s270 + $0x198] sm:$0xf]
      %v395 = vld [vmem:[%s270 + $0x19c] sm:$0xf]
      %v396 = vld [vmem:[%s270 + $0x1a0] sm:$0xf]
      %v397 = vld [vmem:[%s270 + $0x1a4] sm:$0xf]
      %v398 = vld [vmem:[%s270 + $0x1a8] sm:$0xf]
      %v399 = vld [vmem:[%s270 + $0x1ac] sm:$0xf]
      %v400 = vld [vmem:[%s270 + $0x1b0] sm:$0xf]
      %v401 = vld [vmem:[%s270 + $0x1b4] sm:$0xf]
      %v402 = vld [vmem:[%s270 + $0x1b8] sm:$0xf]
      %v403 = vld [vmem:[%s270 + $0x1bc] sm:$0xf]
      %v404 = vld [vmem:[%s270 + $0x1c0] sm:$0xf]
      %v405 = vld [vmem:[%s270 + $0x1c4] sm:$0xf]
      %v406 = vld [vmem:[%s270 + $0x1c8] sm:$0xf]
      %v407 = vld [vmem:[%s270 + $0x1cc] sm:$0xf]
      %v408 = vld [vmem:[%s270 + $0x1d0] sm:$0xf]
      %v409 = vld [vmem:[%s270 + $0x1d4] sm:$0xf]
      %v410 = vld [vmem:[%s270 + $0x1d8] sm:$0xf]
      %v411 = vld [vmem:[%s270 + $0x1dc] sm:$0xf]
      %v412 = vld [vmem:[%s270 + $0x1e0] sm:$0xf]
      %v413 = vld [vmem:[%s270 + $0x1e4] sm:$0xf]
      %v414 = vld [vmem:[%s270 + $0x1e8] sm:$0xf]
      %v415 = vld [vmem:[%s270 + $0x1ec] sm:$0xf]
      %v416 = vld [vmem:[%s270 + $0x1f0] sm:$0xf]
      %v417 = vld [vmem:[%s270 + $0x1f4] sm:$0xf]
      %v418 = vld [vmem:[%s270 + $0x1f8] sm:$0xf]
      %v419 = vld [vmem:[%s270 + $0x1fc] sm:$0xf]
      %v420 = vld [vmem:[%s270 + $0x200] sm:$0xf]
      %v421 = vld [vmem:[%s270 + $0x204] sm:$0xf]
      %v422 = vld [vmem:[%s270 + $0x208] sm:$0xf]
      %v423 = vld [vmem:[%s270 + $0x20c] sm:$0xf]
      %v424 = vld [vmem:[%s270 + $0x210] sm:$0xf]
      %v425 = vld [vmem:[%s270 + $0x214] sm:$0xf]
      %v426 = vld [vmem:[%s270 + $0x218] sm:$0xf]
      %v427 = vld [vmem:[%s270 + $0x21c] sm:$0xf]
      %v428 = vld [vmem:[%s270 + $0x220] sm:$0xf]
      %v429 = vld [vmem:[%s270 + $0x224] sm:$0xf]
      %v430 = vld [vmem:[%s270 + $0x228] sm:$0xf]
      %v431 = vld [vmem:[%s270 + $0x22c] sm:$0xf]
      %v432 = vld [vmem:[%s270 + $0x230] sm:$0xf]
      %v433 = vld [vmem:[%s270 + $0x234] sm:$0xf]
      %v434 = vld [vmem:[%s270 + $0x238] sm:$0xf]
      %v435 = vld [vmem:[%s270 + $0x23c] sm:$0xf]
      %v436 = vld [vmem:[%s270 + $0x240] sm:$0xf]
      %v437 = vld [vmem:[%s270 + $0x244] sm:$0xf]
      %v438 = vld [vmem:[%s270 + $0x248] sm:$0xf]
      %v439 = vld [vmem:[%s270 + $0x24c] sm:$0xf]
      %v440 = vld [vmem:[%s270 + $0x250] sm:$0xf]
      %v441 = vld [vmem:[%s270 + $0x254] sm:$0xf]
      %v442 = vld [vmem:[%s270 + $0x258] sm:$0xf]
      %v443 = vld [vmem:[%s270 + $0x25c] sm:$0xf]
      %v444 = vld [vmem:[%s270 + $0x260] sm:$0xf]
      %v445 = vld [vmem:[%s270 + $0x264] sm:$0xf]
      %v446 = vld [vmem:[%s270 + $0x268] sm:$0xf]
      %v447 = vld [vmem:[%s270 + $0x26c] sm:$0xf]
      %v448 = vld [vmem:[%s270 + $0x270] sm:$0xf]
      %v449 = vld [vmem:[%s270 + $0x274] sm:$0xf]
      %v450 = vld [vmem:[%s270 + $0x278] sm:$0xf]
      %v451 = vld [vmem:[%s270 + $0x27c] sm:$0xf]
      %v452 = vld [vmem:[%s270 + $0x280] sm:$0xf]
      %v453 = vld [vmem:[%s270 + $0x284] sm:$0xf]
      %v454 = vld [vmem:[%s270 + $0x288] sm:$0xf]
      %v455 = vld [vmem:[%s270 + $0x28c] sm:$0xf]
      %v456 = vld [vmem:[%s270 + $0x290] sm:$0xf]
      %v457 = vld [vmem:[%s270 + $0x294] sm:$0xf]
      %v458 = vld [vmem:[%s270 + $0x298] sm:$0xf]
      %v459 = vld [vmem:[%s270 + $0x29c] sm:$0xf]
      %v460 = vld [vmem:[%s270 + $0x2a0] sm:$0xf]
      %v461 = vld [vmem:[%s270 + $0x2a4] sm:$0xf]
      %v462 = vld [vmem:[%s270 + $0x2a8] sm:$0xf]
      %v463 = vld [vmem:[%s270 + $0x2ac] sm:$0xf]
      %v464 = vld [vmem:[%s270 + $0x2b0] sm:$0xf]
      %v465 = vld [vmem:[%s270 + $0x2b4] sm:$0xf]
      %v466 = vld [vmem:[%s270 + $0x2b8] sm:$0xf]
      %v467 = vld [vmem:[%s270 + $0x2bc] sm:$0xf]
      %v468 = vld [vmem:[%s270 + $0x2c0] sm:$0xf]
      %v469 = vld [vmem:[%s270 + $0x2c4] sm:$0xf]
      %v470 = vld [vmem:[%s270 + $0x2c8] sm:$0xf]
      %v471 = vld [vmem:[%s270 + $0x2cc] sm:$0xf]
      %v472 = vld [vmem:[%s270 + $0x2d0] sm:$0xf]
      %v473 = vld [vmem:[%s270 + $0x2d4] sm:$0xf]
      %v474 = vld [vmem:[%s270 + $0x2d8] sm:$0xf]
      %v475 = vld [vmem:[%s270 + $0x2dc] sm:$0xf]
      %v476 = vld [vmem:[%s270 + $0x2e0] sm:$0xf]
      %v477 = vld [vmem:[%s270 + $0x2e4] sm:$0xf]
      %v478 = vld [vmem:[%s270 + $0x2e8] sm:$0xf]
      %v479 = vld [vmem:[%s270 + $0x2ec] sm:$0xf]
      %v480 = vld [vmem:[%s270 + $0x2f0] sm:$0xf]
      %v481 = vld [vmem:[%s270 + $0x2f4] sm:$0xf]
      %v482 = vld [vmem:[%s270 + $0x2f8] sm:$0xf]
      %v483 = vld [vmem:[%s270 + $0x2fc] sm:$0xf]
      %v484 = vld [vmem:[%s275] sm:$0xf]
      %v485 = vld [vmem:[%s275 + $0x4] sm:$0xf]
      %v486 = vld [vmem:[%s275 + $0x8] sm:$0xf]
      %v487 = vld [vmem:[%s275 + $0xc] sm:$0xf]
      %v488 = vld [vmem:[%s275 + $0x10] sm:$0x3]
      %v489 = vld [vmem:[%s278] sm:$0x1]
      %v491 = vperm.slane %v489, 0
      %v685 = vunpack.c.l.b16 %v292
      %v686 = vunpack.c.l.b16 %v293
      %v687 = vunpack.c.l.b16 %v294
      %v688 = vunpack.c.l.b16 %v295
      %v689 = vunpack.c.l.b16 %v296
      %v690 = vunpack.c.l.b16 %v297
      %v691 = vunpack.c.l.b16 %v298
      %v692 = vunpack.c.l.b16 %v299
      %v693 = vunpack.c.l.b16 %v300
      %v694 = vunpack.c.l.b16 %v301
      %v695 = vunpack.c.l.b16 %v302
      %v696 = vunpack.c.l.b16 %v303
      %v697 = vunpack.c.l.b16 %v304
      %v698 = vunpack.c.l.b16 %v305
      %v699 = vunpack.c.l.b16 %v306
      %v700 = vunpack.c.l.b16 %v307
      %v701 = vunpack.c.l.b16 %v308
      %v702 = vunpack.c.l.b16 %v309
      %v703 = vunpack.c.l.b16 %v310
      %v704 = vunpack.c.l.b16 %v311
      %v705 = vunpack.c.l.b16 %v312
      %v706 = vunpack.c.l.b16 %v313
      %v707 = vunpack.c.l.b16 %v314
      %v708 = vunpack.c.l.b16 %v315
      %v709 = vunpack.c.l.b16 %v316
      %v710 = vunpack.c.l.b16 %v317
      %v711 = vunpack.c.l.b16 %v318
      %v712 = vunpack.c.l.b16 %v319
      %v713 = vunpack.c.l.b16 %v320
      %v714 = vunpack.c.l.b16 %v321
      %v715 = vunpack.c.l.b16 %v322
      %v716 = vunpack.c.l.b16 %v323
      %v717 = vunpack.c.l.b16 %v324
      %v718 = vunpack.c.l.b16 %v325
      %v719 = vunpack.c.l.b16 %v326
      %v720 = vunpack.c.l.b16 %v327
      %v721 = vunpack.c.l.b16 %v328
      %v722 = vunpack.c.l.b16 %v329
      %v723 = vunpack.c.l.b16 %v330
      %v724 = vunpack.c.l.b16 %v331
      %v725 = vunpack.c.l.b16 %v332
      %v726 = vunpack.c.l.b16 %v333
      %v727 = vunpack.c.l.b16 %v334
      %v728 = vunpack.c.l.b16 %v335
      %v729 = vunpack.c.l.b16 %v336
      %v730 = vunpack.c.l.b16 %v337
      %v731 = vunpack.c.l.b16 %v338
      %v732 = vunpack.c.l.b16 %v339
      %v733 = vunpack.c.l.b16 %v340
      %v734 = vunpack.c.l.b16 %v341
      %v735 = vunpack.c.l.b16 %v342
      %v736 = vunpack.c.l.b16 %v343
      %v737 = vunpack.c.l.b16 %v344
      %v738 = vunpack.c.l.b16 %v345
      %v739 = vunpack.c.l.b16 %v346
      %v740 = vunpack.c.l.b16 %v347
      %v741 = vunpack.c.l.b16 %v348
      %v742 = vunpack.c.l.b16 %v349
      %v743 = vunpack.c.l.b16 %v350
      %v744 = vunpack.c.l.b16 %v351
      %v745 = vunpack.c.l.b16 %v352
      %v746 = vunpack.c.l.b16 %v353
      %v747 = vunpack.c.l.b16 %v354
      %v748 = vunpack.c.l.b16 %v355
      %v749 = vunpack.c.l.b16 %v356
      %v750 = vunpack.c.l.b16 %v357
      %v751 = vunpack.c.l.b16 %v358
      %v752 = vunpack.c.l.b16 %v359
      %v753 = vunpack.c.l.b16 %v360
      %v754 = vunpack.c.l.b16 %v361
      %v755 = vunpack.c.l.b16 %v362
      %v756 = vunpack.c.l.b16 %v363
      %v757 = vunpack.c.l.b16 %v364
      %v758 = vunpack.c.l.b16 %v365
      %v759 = vunpack.c.l.b16 %v366
      %v760 = vunpack.c.l.b16 %v367
      %v761 = vunpack.c.l.b16 %v368
      %v762 = vunpack.c.l.b16 %v369
      %v763 = vunpack.c.l.b16 %v370
      %v764 = vunpack.c.l.b16 %v371
      %v765 = vunpack.c.l.b16 %v372
      %v766 = vunpack.c.l.b16 %v373
      %v767 = vunpack.c.l.b16 %v374
      %v768 = vunpack.c.l.b16 %v375
      %v769 = vunpack.c.l.b16 %v376
      %v770 = vunpack.c.l.b16 %v377
      %v771 = vunpack.c.l.b16 %v378
      %v772 = vunpack.c.l.b16 %v379
      %v773 = vunpack.c.l.b16 %v380
      %v774 = vunpack.c.l.b16 %v381
      %v775 = vunpack.c.l.b16 %v382
      %v776 = vunpack.c.l.b16 %v383
      %v777 = vunpack.c.l.b16 %v384
      %v778 = vunpack.c.l.b16 %v385
      %v779 = vunpack.c.l.b16 %v386
      %v780 = vunpack.c.l.b16 %v387
      %v781 = vunpack.c.l.b16 %v388
      %v782 = vunpack.c.l.b16 %v389
      %v783 = vunpack.c.l.b16 %v390
      %v784 = vunpack.c.l.b16 %v391
      %v785 = vunpack.c.l.b16 %v392
      %v786 = vunpack.c.l.b16 %v393
      %v787 = vunpack.c.l.b16 %v394
      %v788 = vunpack.c.l.b16 %v395
      %v789 = vunpack.c.l.b16 %v396
      %v790 = vunpack.c.l.b16 %v397
      %v791 = vunpack.c.l.b16 %v398
      %v792 = vunpack.c.l.b16 %v399
      %v793 = vunpack.c.l.b16 %v400
      %v794 = vunpack.c.l.b16 %v401
      %v795 = vunpack.c.l.b16 %v402
      %v796 = vunpack.c.l.b16 %v403
      %v797 = vunpack.c.l.b16 %v404
      %v798 = vunpack.c.l.b16 %v405
      %v799 = vunpack.c.l.b16 %v406
      %v800 = vunpack.c.l.b16 %v407
      %v801 = vunpack.c.l.b16 %v408
      %v802 = vunpack.c.l.b16 %v409
      %v803 = vunpack.c.l.b16 %v410
      %v804 = vunpack.c.l.b16 %v411
      %v805 = vunpack.c.l.b16 %v412
      %v806 = vunpack.c.l.b16 %v413
      %v807 = vunpack.c.l.b16 %v414
      %v808 = vunpack.c.l.b16 %v415
      %v809 = vunpack.c.l.b16 %v416
      %v810 = vunpack.c.l.b16 %v417
      %v811 = vunpack.c.l.b16 %v418
      %v812 = vunpack.c.l.b16 %v419
      %v813 = vunpack.c.l.b16 %v420
      %v814 = vunpack.c.l.b16 %v421
      %v815 = vunpack.c.l.b16 %v422
      %v816 = vunpack.c.l.b16 %v423
      %v817 = vunpack.c.l.b16 %v424
      %v818 = vunpack.c.l.b16 %v425
      %v819 = vunpack.c.l.b16 %v426
      %v820 = vunpack.c.l.b16 %v427
      %v821 = vunpack.c.l.b16 %v428
      %v822 = vunpack.c.l.b16 %v429
      %v823 = vunpack.c.l.b16 %v430
      %v824 = vunpack.c.l.b16 %v431
      %v825 = vunpack.c.l.b16 %v432
      %v826 = vunpack.c.l.b16 %v433
      %v827 = vunpack.c.l.b16 %v434
      %v828 = vunpack.c.l.b16 %v435
      %v829 = vunpack.c.l.b16 %v436
      %v830 = vunpack.c.l.b16 %v437
      %v831 = vunpack.c.l.b16 %v438
      %v832 = vunpack.c.l.b16 %v439
      %v833 = vunpack.c.l.b16 %v440
      %v834 = vunpack.c.l.b16 %v441
      %v835 = vunpack.c.l.b16 %v442
      %v836 = vunpack.c.l.b16 %v443
      %v837 = vunpack.c.l.b16 %v444
      %v838 = vunpack.c.l.b16 %v445
      %v839 = vunpack.c.l.b16 %v446
      %v840 = vunpack.c.l.b16 %v447
      %v841 = vunpack.c.l.b16 %v448
      %v842 = vunpack.c.l.b16 %v449
      %v843 = vunpack.c.l.b16 %v450
      %v844 = vunpack.c.l.b16 %v451
      %v845 = vunpack.c.l.b16 %v452
      %v846 = vunpack.c.l.b16 %v453
      %v847 = vunpack.c.l.b16 %v454
      %v848 = vunpack.c.l.b16 %v455
      %v849 = vunpack.c.l.b16 %v456
      %v850 = vunpack.c.l.b16 %v457
      %v851 = vunpack.c.l.b16 %v458
      %v852 = vunpack.c.l.b16 %v459
      %v853 = vunpack.c.l.b16 %v460
      %v854 = vunpack.c.l.b16 %v461
      %v855 = vunpack.c.l.b16 %v462
      %v856 = vunpack.c.l.b16 %v463
      %v857 = vunpack.c.l.b16 %v464
      %v858 = vunpack.c.l.b16 %v465
      %v859 = vunpack.c.l.b16 %v466
      %v860 = vunpack.c.l.b16 %v467
      %v861 = vunpack.c.l.b16 %v468
      %v862 = vunpack.c.l.b16 %v469
      %v863 = vunpack.c.l.b16 %v470
      %v864 = vunpack.c.l.b16 %v471
      %v865 = vunpack.c.l.b16 %v472
      %v866 = vunpack.c.l.b16 %v473
      %v867 = vunpack.c.l.b16 %v474
      %v868 = vunpack.c.l.b16 %v475
      %v869 = vunpack.c.l.b16 %v476
      %v870 = vunpack.c.l.b16 %v477
      %v871 = vunpack.c.l.b16 %v478
      %v872 = vunpack.c.l.b16 %v479
      %v873 = vunpack.c.l.b16 %v480
      %v874 = vunpack.c.l.b16 %v481
      %v875 = vunpack.c.l.b16 %v482
      %v876 = vunpack.c.l.b16 %v483
      %v877 = vpack.c.b16 %v686, %v685
      %v878 = vpack.c.b16 %v688, %v687
      %v879 = vpack.c.b16 %v690, %v689
      %v880 = vpack.c.b16 %v692, %v691
      %v881 = vpack.c.b16 %v694, %v693
      %v882 = vpack.c.b16 %v696, %v695
      %v883 = vpack.c.b16 %v698, %v697
      %v884 = vpack.c.b16 %v700, %v699
      %v885 = vpack.c.b16 %v702, %v701
      %v886 = vpack.c.b16 %v704, %v703
      %v887 = vpack.c.b16 %v706, %v705
      %v888 = vpack.c.b16 %v708, %v707
      %v889 = vpack.c.b16 %v710, %v709
      %v890 = vpack.c.b16 %v712, %v711
      %v891 = vpack.c.b16 %v714, %v713
      %v892 = vpack.c.b16 %v716, %v715
      %v893 = vpack.c.b16 %v718, %v717
      %v894 = vpack.c.b16 %v720, %v719
      %v895 = vpack.c.b16 %v722, %v721
      %v896 = vpack.c.b16 %v724, %v723
      %v897 = vpack.c.b16 %v726, %v725
      %v898 = vpack.c.b16 %v728, %v727
      %v899 = vpack.c.b16 %v730, %v729
      %v900 = vpack.c.b16 %v732, %v731
      %v901 = vpack.c.b16 %v734, %v733
      %v902 = vpack.c.b16 %v736, %v735
      %v903 = vpack.c.b16 %v738, %v737
      %v904 = vpack.c.b16 %v740, %v739
      %v905 = vpack.c.b16 %v742, %v741
      %v906 = vpack.c.b16 %v744, %v743
      %v907 = vpack.c.b16 %v746, %v745
      %v908 = vpack.c.b16 %v748, %v747
      %v909 = vpack.c.b16 %v750, %v749
      %v910 = vpack.c.b16 %v752, %v751
      %v911 = vpack.c.b16 %v754, %v753
      %v912 = vpack.c.b16 %v756, %v755
      %v913 = vpack.c.b16 %v758, %v757
      %v914 = vpack.c.b16 %v760, %v759
      %v915 = vpack.c.b16 %v762, %v761
      %v916 = vpack.c.b16 %v764, %v763
      %v917 = vpack.c.b16 %v766, %v765
      %v918 = vpack.c.b16 %v768, %v767
      %v919 = vpack.c.b16 %v770, %v769
      %v920 = vpack.c.b16 %v772, %v771
      %v921 = vpack.c.b16 %v774, %v773
      %v922 = vpack.c.b16 %v776, %v775
      %v923 = vpack.c.b16 %v778, %v777
      %v924 = vpack.c.b16 %v780, %v779
      %v925 = vpack.c.b16 %v782, %v781
      %v926 = vpack.c.b16 %v784, %v783
      %v927 = vpack.c.b16 %v786, %v785
      %v928 = vpack.c.b16 %v788, %v787
      %v929 = vpack.c.b16 %v790, %v789
      %v930 = vpack.c.b16 %v792, %v791
      %v931 = vpack.c.b16 %v794, %v793
      %v932 = vpack.c.b16 %v796, %v795
      %v933 = vpack.c.b16 %v798, %v797
      %v934 = vpack.c.b16 %v800, %v799
      %v935 = vpack.c.b16 %v802, %v801
      %v936 = vpack.c.b16 %v804, %v803
      %v937 = vpack.c.b16 %v806, %v805
      %v938 = vpack.c.b16 %v808, %v807
      %v939 = vpack.c.b16 %v810, %v809
      %v940 = vpack.c.b16 %v812, %v811
      %v941 = vpack.c.b16 %v814, %v813
      %v942 = vpack.c.b16 %v816, %v815
      %v943 = vpack.c.b16 %v818, %v817
      %v944 = vpack.c.b16 %v820, %v819
      %v945 = vpack.c.b16 %v822, %v821
      %v946 = vpack.c.b16 %v824, %v823
      %v947 = vpack.c.b16 %v826, %v825
      %v948 = vpack.c.b16 %v828, %v827
      %v949 = vpack.c.b16 %v830, %v829
      %v950 = vpack.c.b16 %v832, %v831
      %v951 = vpack.c.b16 %v834, %v833
      %v952 = vpack.c.b16 %v836, %v835
      %v953 = vpack.c.b16 %v838, %v837
      %v954 = vpack.c.b16 %v840, %v839
      %v955 = vpack.c.b16 %v842, %v841
      %v956 = vpack.c.b16 %v844, %v843
      %v957 = vpack.c.b16 %v846, %v845
      %v958 = vpack.c.b16 %v848, %v847
      %v959 = vpack.c.b16 %v850, %v849
      %v960 = vpack.c.b16 %v852, %v851
      %v961 = vpack.c.b16 %v854, %v853
      %v962 = vpack.c.b16 %v856, %v855
      %v963 = vpack.c.b16 %v858, %v857
      %v964 = vpack.c.b16 %v860, %v859
      %v965 = vpack.c.b16 %v862, %v861
      %v966 = vpack.c.b16 %v864, %v863
      %v967 = vpack.c.b16 %v866, %v865
      %v968 = vpack.c.b16 %v868, %v867
      %v969 = vpack.c.b16 %v870, %v869
      %v970 = vpack.c.b16 %v872, %v871
      %v971 = vpack.c.b16 %v874, %v873
      %v972 = vpack.c.b16 %v876, %v875
      %v978 = vunpack.c.l.b16 %v484
      %v979 = vunpack.c.l.b16 %v485
      %v980 = vunpack.c.l.b16 %v486
      %v981 = vunpack.c.l.b16 %v487
      %v982 = vunpack.c.l.b16 %v488
      %v983 = vpack.c.b16 %v979, %v978
      %v984 = vpack.c.b16 %v981, %v980
      %v985 = vpack.c.b16 %v982, %v982
      %vm988 = vcmask 293888
      %v990 = vsel %vm988, %v877, 0
      %v993 = vsel %vm988, %v878, 0
      %v996 = vsel %vm988, %v879, 0
      %v999 = vsel %vm988, %v880, 0
      %v1002 = vsel %vm988, %v881, 0
      %v1005 = vsel %vm988, %v882, 0
      %v1008 = vsel %vm988, %v883, 0
      %v1011 = vsel %vm988, %v884, 0
      %v1014 = vsel %vm988, %v885, 0
      %v1017 = vsel %vm988, %v886, 0
      %v1020 = vsel %vm988, %v887, 0
      %v1023 = vsel %vm988, %v888, 0
      %v1026 = vsel %vm988, %v889, 0
      %v1029 = vsel %vm988, %v890, 0
      %v1032 = vsel %vm988, %v891, 0
      %v1035 = vsel %vm988, %v892, 0
      %v1038 = vsel %vm988, %v893, 0
      %v1041 = vsel %vm988, %v894, 0
      %v1044 = vsel %vm988, %v895, 0
      %v1047 = vsel %vm988, %v896, 0
      %v1050 = vsel %vm988, %v897, 0
      %v1053 = vsel %vm988, %v898, 0
      %v1056 = vsel %vm988, %v899, 0
      %v1059 = vsel %vm988, %v900, 0
      %v1062 = vsel %vm988, %v901, 0
      %v1065 = vsel %vm988, %v902, 0
      %v1068 = vsel %vm988, %v903, 0
      %v1071 = vsel %vm988, %v904, 0
      %v1074 = vsel %vm988, %v905, 0
      %v1077 = vsel %vm988, %v906, 0
      %v1080 = vsel %vm988, %v907, 0
      %v1083 = vsel %vm988, %v908, 0
      %v1086 = vsel %vm988, %v909, 0
      %v1089 = vsel %vm988, %v910, 0
      %v1092 = vsel %vm988, %v911, 0
      %v1095 = vsel %vm988, %v912, 0
      %v1098 = vsel %vm988, %v913, 0
      %v1101 = vsel %vm988, %v914, 0
      %v1104 = vsel %vm988, %v915, 0
      %v1107 = vsel %vm988, %v916, 0
      %v1110 = vsel %vm988, %v917, 0
      %v1113 = vsel %vm988, %v918, 0
      %v1116 = vsel %vm988, %v919, 0
      %v1119 = vsel %vm988, %v920, 0
      %v1122 = vsel %vm988, %v921, 0
      %v1125 = vsel %vm988, %v922, 0
      %v1128 = vsel %vm988, %v923, 0
      %v1131 = vsel %vm988, %v924, 0
      %v1134 = vsel %vm988, %v925, 0
      %v1137 = vsel %vm988, %v926, 0
      %v1140 = vsel %vm988, %v927, 0
      %v1143 = vsel %vm988, %v928, 0
      %v1146 = vsel %vm988, %v929, 0
      %v1149 = vsel %vm988, %v930, 0
      %v1152 = vsel %vm988, %v931, 0
      %v1155 = vsel %vm988, %v932, 0
      %v1158 = vsel %vm988, %v933, 0
      %v1161 = vsel %vm988, %v934, 0
      %v1164 = vsel %vm988, %v935, 0
      %v1167 = vsel %vm988, %v936, 0
      %v1170 = vsel %vm988, %v937, 0
      %v1173 = vsel %vm988, %v938, 0
      %v1176 = vsel %vm988, %v939, 0
      %v1179 = vsel %vm988, %v940, 0
      %v1182 = vsel %vm988, %v941, 0
      %v1185 = vsel %vm988, %v942, 0
      %v1188 = vsel %vm988, %v943, 0
      %v1191 = vsel %vm988, %v944, 0
      %v1194 = vsel %vm988, %v945, 0
      %v1197 = vsel %vm988, %v946, 0
      %v1200 = vsel %vm988, %v947, 0
      %v1203 = vsel %vm988, %v948, 0
      %v1206 = vsel %vm988, %v949, 0
      %v1209 = vsel %vm988, %v950, 0
      %v1212 = vsel %vm988, %v951, 0
      %v1215 = vsel %vm988, %v952, 0
      %v1218 = vsel %vm988, %v953, 0
      %v1221 = vsel %vm988, %v954, 0
      %v1224 = vsel %vm988, %v955, 0
      %v1227 = vsel %vm988, %v956, 0
      %v1230 = vsel %vm988, %v957, 0
      %v1233 = vsel %vm988, %v958, 0
      %v1236 = vsel %vm988, %v959, 0
      %v1239 = vsel %vm988, %v960, 0
      %v1242 = vsel %vm988, %v961, 0
      %v1245 = vsel %vm988, %v962, 0
      %v1248 = vsel %vm988, %v963, 0
      %v1251 = vsel %vm988, %v964, 0
      %v1254 = vsel %vm988, %v965, 0
      %v1257 = vsel %vm988, %v966, 0
      %v1260 = vsel %vm988, %v967, 0
      %v1263 = vsel %vm988, %v968, 0
      %v1266 = vsel %vm988, %v969, 0
      %v1269 = vsel %vm988, %v970, 0
      %v1272 = vsel %vm988, %v971, 0
      %v1275 = vsel %vm988, %v972, 0
      %vm1277 = vcmask 1041408
      %v1279 = vsel %vm1277, %v985, 0
      %1281 = vmatpush.bf16.msra.mxu0 0
      %1282 = vmatpush.bf16.msra.mxu0 0
      %1283 = vmatpush.bf16.msra.mxu0 0
      %1284 = vmatpush.bf16.msra.mxu0 0
      %1285 = vmatpush.bf16.msra.mxu0 0
      %1286 = vmatpush.bf16.msra.mxu0 %v1279
      %1287 = vmatpush.bf16.msra.mxu0 %v984
      %1288 = vmatpush.bf16.msra.mxu0 %v983
      %1289 = vmatmul.bf16.gmra.mxu0 %v990
      %v1290 = vpop.f32.mrf.mxu0
      %v1291 = vadd.f32 %v491, %v1290
      %v1292 = vpop.f32.mrf.mxu0
      %v1293 = vadd.f32 %v491, %v1292
      %1294 = vmatmul.bf16.gmra.mxu0 %v993
      %v1295 = vpop.f32.mrf.mxu0
      %v1296 = vadd.f32 %v491, %v1295
      %v1297 = vpop.f32.mrf.mxu0
      %v1298 = vadd.f32 %v491, %v1297
      %1299 = vmatmul.bf16.gmra.mxu0 %v996
      %v1300 = vpop.f32.mrf.mxu0
      %v1301 = vadd.f32 %v491, %v1300
      %v1302 = vpop.f32.mrf.mxu0
      %v1303 = vadd.f32 %v491, %v1302
      %1304 = vmatmul.bf16.gmra.mxu0 %v999
      %v1305 = vpop.f32.mrf.mxu0
      %v1306 = vadd.f32 %v491, %v1305
      %v1307 = vpop.f32.mrf.mxu0
      %v1308 = vadd.f32 %v491, %v1307
      %1309 = vmatmul.bf16.gmra.mxu0 %v1002
      %v1310 = vpop.f32.mrf.mxu0
      %v1311 = vadd.f32 %v491, %v1310
      %v1312 = vpop.f32.mrf.mxu0
      %v1313 = vadd.f32 %v491, %v1312
      %1314 = vmatmul.bf16.gmra.mxu0 %v1005
      %v1315 = vpop.f32.mrf.mxu0
      %v1316 = vadd.f32 %v491, %v1315
      %v1317 = vpop.f32.mrf.mxu0
      %v1318 = vadd.f32 %v491, %v1317
      %1319 = vmatmul.bf16.gmra.mxu0 %v1008
      %v1320 = vpop.f32.mrf.mxu0
      %v1321 = vadd.f32 %v491, %v1320
      %v1322 = vpop.f32.mrf.mxu0
      %v1323 = vadd.f32 %v491, %v1322
      %1324 = vmatmul.bf16.gmra.mxu0 %v1011
      %v1325 = vpop.f32.mrf.mxu0
      %v1326 = vadd.f32 %v491, %v1325
      %v1327 = vpop.f32.mrf.mxu0
      %v1328 = vadd.f32 %v491, %v1327
      %1329 = vmatmul.bf16.gmra.mxu0 %v1014
      %v1330 = vpop.f32.mrf.mxu0
      %v1331 = vadd.f32 %v491, %v1330
      %v1332 = vpop.f32.mrf.mxu0
      %v1333 = vadd.f32 %v491, %v1332
      %1334 = vmatmul.bf16.gmra.mxu0 %v1017
      %v1335 = vpop.f32.mrf.mxu0
      %v1336 = vadd.f32 %v491, %v1335
      %v1337 = vpop.f32.mrf.mxu0
      %v1338 = vadd.f32 %v491, %v1337
      %1339 = vmatmul.bf16.gmra.mxu0 %v1020
      %v1340 = vpop.f32.mrf.mxu0
      %v1341 = vadd.f32 %v491, %v1340
      %v1342 = vpop.f32.mrf.mxu0
      %v1343 = vadd.f32 %v491, %v1342
      %1344 = vmatmul.bf16.gmra.mxu0 %v1023
      %v1345 = vpop.f32.mrf.mxu0
      %v1346 = vadd.f32 %v491, %v1345
      %v1347 = vpop.f32.mrf.mxu0
      %v1348 = vadd.f32 %v491, %v1347
      %1349 = vmatmul.bf16.gmra.mxu0 %v1026
      %v1350 = vpop.f32.mrf.mxu0
      %v1351 = vadd.f32 %v491, %v1350
      %v1352 = vpop.f32.mrf.mxu0
      %v1353 = vadd.f32 %v491, %v1352
      %1354 = vmatmul.bf16.gmra.mxu0 %v1029
      %v1355 = vpop.f32.mrf.mxu0
      %v1356 = vadd.f32 %v491, %v1355
      %v1357 = vpop.f32.mrf.mxu0
      %v1358 = vadd.f32 %v491, %v1357
      %1359 = vmatmul.bf16.gmra.mxu0 %v1032
      %v1360 = vpop.f32.mrf.mxu0
      %v1361 = vadd.f32 %v491, %v1360
      %v1362 = vpop.f32.mrf.mxu0
      %v1363 = vadd.f32 %v491, %v1362
      %1364 = vmatmul.bf16.gmra.mxu0 %v1035
      %v1365 = vpop.f32.mrf.mxu0
      %v1366 = vadd.f32 %v491, %v1365
      %v1367 = vpop.f32.mrf.mxu0
      %v1368 = vadd.f32 %v491, %v1367
      %1369 = vmatmul.bf16.gmra.mxu0 %v1038
      %v1370 = vpop.f32.mrf.mxu0
      %v1371 = vadd.f32 %v491, %v1370
      %v1372 = vpop.f32.mrf.mxu0
      %v1373 = vadd.f32 %v491, %v1372
      %1374 = vmatmul.bf16.gmra.mxu0 %v1041
      %v1375 = vpop.f32.mrf.mxu0
      %v1376 = vadd.f32 %v491, %v1375
      %v1377 = vpop.f32.mrf.mxu0
      %v1378 = vadd.f32 %v491, %v1377
      %1379 = vmatmul.bf16.gmra.mxu0 %v1044
      %v1380 = vpop.f32.mrf.mxu0
      %v1381 = vadd.f32 %v491, %v1380
      %v1382 = vpop.f32.mrf.mxu0
      %v1383 = vadd.f32 %v491, %v1382
      %1384 = vmatmul.bf16.gmra.mxu0 %v1047
      %v1385 = vpop.f32.mrf.mxu0
      %v1386 = vadd.f32 %v491, %v1385
      %v1387 = vpop.f32.mrf.mxu0
      %v1388 = vadd.f32 %v491, %v1387
      %1389 = vmatmul.bf16.gmra.mxu0 %v1050
      %v1390 = vpop.f32.mrf.mxu0
      %v1391 = vadd.f32 %v491, %v1390
      %v1392 = vpop.f32.mrf.mxu0
      %v1393 = vadd.f32 %v491, %v1392
      %1394 = vmatmul.bf16.gmra.mxu0 %v1053
      %v1395 = vpop.f32.mrf.mxu0
      %v1396 = vadd.f32 %v491, %v1395
      %v1397 = vpop.f32.mrf.mxu0
      %v1398 = vadd.f32 %v491, %v1397
      %1399 = vmatmul.bf16.gmra.mxu0 %v1056
      %v1400 = vpop.f32.mrf.mxu0
      %v1401 = vadd.f32 %v491, %v1400
      %v1402 = vpop.f32.mrf.mxu0
      %v1403 = vadd.f32 %v491, %v1402
      %1404 = vmatmul.bf16.gmra.mxu0 %v1059
      %v1405 = vpop.f32.mrf.mxu0
      %v1406 = vadd.f32 %v491, %v1405
      %v1407 = vpop.f32.mrf.mxu0
      %v1408 = vadd.f32 %v491, %v1407
      %1409 = vmatmul.bf16.gmra.mxu0 %v1062
      %v1410 = vpop.f32.mrf.mxu0
      %v1411 = vadd.f32 %v491, %v1410
      %v1412 = vpop.f32.mrf.mxu0
      %v1413 = vadd.f32 %v491, %v1412
      %1414 = vmatmul.bf16.gmra.mxu0 %v1065
      %v1415 = vpop.f32.mrf.mxu0
      %v1416 = vadd.f32 %v491, %v1415
      %v1417 = vpop.f32.mrf.mxu0
      %v1418 = vadd.f32 %v491, %v1417
      %1419 = vmatmul.bf16.gmra.mxu0 %v1068
      %v1420 = vpop.f32.mrf.mxu0
      %v1421 = vadd.f32 %v491, %v1420
      %v1422 = vpop.f32.mrf.mxu0
      %v1423 = vadd.f32 %v491, %v1422
      %1424 = vmatmul.bf16.gmra.mxu0 %v1071
      %v1425 = vpop.f32.mrf.mxu0
      %v1426 = vadd.f32 %v491, %v1425
      %v1427 = vpop.f32.mrf.mxu0
      %v1428 = vadd.f32 %v491, %v1427
      %1429 = vmatmul.bf16.gmra.mxu0 %v1074
      %v1430 = vpop.f32.mrf.mxu0
      %v1431 = vadd.f32 %v491, %v1430
      %v1432 = vpop.f32.mrf.mxu0
      %v1433 = vadd.f32 %v491, %v1432
      %1434 = vmatmul.bf16.gmra.mxu0 %v1077
      %v1435 = vpop.f32.mrf.mxu0
      %v1436 = vadd.f32 %v491, %v1435
      %v1437 = vpop.f32.mrf.mxu0
      %v1438 = vadd.f32 %v491, %v1437
      %1439 = vmatmul.bf16.gmra.mxu0 %v1080
      %v1440 = vpop.f32.mrf.mxu0
      %v1441 = vadd.f32 %v491, %v1440
      %v1442 = vpop.f32.mrf.mxu0
      %v1443 = vadd.f32 %v491, %v1442
      %1444 = vmatmul.bf16.gmra.mxu0 %v1083
      %v1445 = vpop.f32.mrf.mxu0
      %v1446 = vadd.f32 %v491, %v1445
      %v1447 = vpop.f32.mrf.mxu0
      %v1448 = vadd.f32 %v491, %v1447
      %1449 = vmatmul.bf16.gmra.mxu0 %v1086
      %v1450 = vpop.f32.mrf.mxu0
      %v1451 = vadd.f32 %v491, %v1450
      %v1452 = vpop.f32.mrf.mxu0
      %v1453 = vadd.f32 %v491, %v1452
      %1454 = vmatmul.bf16.gmra.mxu0 %v1089
      %v1455 = vpop.f32.mrf.mxu0
      %v1456 = vadd.f32 %v491, %v1455
      %v1457 = vpop.f32.mrf.mxu0
      %v1458 = vadd.f32 %v491, %v1457
      %1459 = vmatmul.bf16.gmra.mxu0 %v1092
      %v1460 = vpop.f32.mrf.mxu0
      %v1461 = vadd.f32 %v491, %v1460
      %v1462 = vpop.f32.mrf.mxu0
      %v1463 = vadd.f32 %v491, %v1462
      %1464 = vmatmul.bf16.gmra.mxu0 %v1095
      %v1465 = vpop.f32.mrf.mxu0
      %v1466 = vadd.f32 %v491, %v1465
      %v1467 = vpop.f32.mrf.mxu0
      %v1468 = vadd.f32 %v491, %v1467
      %1469 = vmatmul.bf16.gmra.mxu0 %v1098
      %v1470 = vpop.f32.mrf.mxu0
      %v1471 = vadd.f32 %v491, %v1470
      %v1472 = vpop.f32.mrf.mxu0
      %v1473 = vadd.f32 %v491, %v1472
      %1474 = vmatmul.bf16.gmra.mxu0 %v1101
      %v1475 = vpop.f32.mrf.mxu0
      %v1476 = vadd.f32 %v491, %v1475
      %v1477 = vpop.f32.mrf.mxu0
      %v1478 = vadd.f32 %v491, %v1477
      %1479 = vmatmul.bf16.gmra.mxu0 %v1104
      %v1480 = vpop.f32.mrf.mxu0
      %v1481 = vadd.f32 %v491, %v1480
      %v1482 = vpop.f32.mrf.mxu0
      %v1483 = vadd.f32 %v491, %v1482
      %1484 = vmatmul.bf16.gmra.mxu0 %v1107
      %v1485 = vpop.f32.mrf.mxu0
      %v1486 = vadd.f32 %v491, %v1485
      %v1487 = vpop.f32.mrf.mxu0
      %v1488 = vadd.f32 %v491, %v1487
      %1489 = vmatmul.bf16.gmra.mxu0 %v1110
      %v1490 = vpop.f32.mrf.mxu0
      %v1491 = vadd.f32 %v491, %v1490
      %v1492 = vpop.f32.mrf.mxu0
      %v1493 = vadd.f32 %v491, %v1492
      %1494 = vmatmul.bf16.gmra.mxu0 %v1113
      %v1495 = vpop.f32.mrf.mxu0
      %v1496 = vadd.f32 %v491, %v1495
      %v1497 = vpop.f32.mrf.mxu0
      %v1498 = vadd.f32 %v491, %v1497
      %1499 = vmatmul.bf16.gmra.mxu0 %v1116
      %v1500 = vpop.f32.mrf.mxu0
      %v1501 = vadd.f32 %v491, %v1500
      %v1502 = vpop.f32.mrf.mxu0
      %v1503 = vadd.f32 %v491, %v1502
      %1504 = vmatmul.bf16.gmra.mxu0 %v1119
      %v1505 = vpop.f32.mrf.mxu0
      %v1506 = vadd.f32 %v491, %v1505
      %v1507 = vpop.f32.mrf.mxu0
      %v1508 = vadd.f32 %v491, %v1507
      %1509 = vmatmul.bf16.gmra.mxu0 %v1122
      %v1510 = vpop.f32.mrf.mxu0
      %v1511 = vadd.f32 %v491, %v1510
      %v1512 = vpop.f32.mrf.mxu0
      %v1513 = vadd.f32 %v491, %v1512
      %1514 = vmatmul.bf16.gmra.mxu0 %v1125
      %v1515 = vpop.f32.mrf.mxu0
      %v1516 = vadd.f32 %v491, %v1515
      %v1517 = vpop.f32.mrf.mxu0
      %v1518 = vadd.f32 %v491, %v1517
      %1519 = vmatmul.bf16.gmra.mxu0 %v1128
      %v1520 = vpop.f32.mrf.mxu0
      %v1521 = vadd.f32 %v491, %v1520
      %v1522 = vpop.f32.mrf.mxu0
      %v1523 = vadd.f32 %v491, %v1522
      %1524 = vmatmul.bf16.gmra.mxu0 %v1131
      %v1525 = vpop.f32.mrf.mxu0
      %v1526 = vadd.f32 %v491, %v1525
      %v1527 = vpop.f32.mrf.mxu0
      %v1528 = vadd.f32 %v491, %v1527
      %1529 = vmatmul.bf16.gmra.mxu0 %v1134
      %v1530 = vpop.f32.mrf.mxu0
      %v1531 = vadd.f32 %v491, %v1530
      %v1532 = vpop.f32.mrf.mxu0
      %v1533 = vadd.f32 %v491, %v1532
      %1534 = vmatmul.bf16.gmra.mxu0 %v1137
      %v1535 = vpop.f32.mrf.mxu0
      %v1536 = vadd.f32 %v491, %v1535
      %v1537 = vpop.f32.mrf.mxu0
      %v1538 = vadd.f32 %v491, %v1537
      %1539 = vmatmul.bf16.gmra.mxu0 %v1140
      %v1540 = vpop.f32.mrf.mxu0
      %v1541 = vadd.f32 %v491, %v1540
      %v1542 = vpop.f32.mrf.mxu0
      %v1543 = vadd.f32 %v491, %v1542
      %1544 = vmatmul.bf16.gmra.mxu0 %v1143
      %v1545 = vpop.f32.mrf.mxu0
      %v1546 = vadd.f32 %v491, %v1545
      %v1547 = vpop.f32.mrf.mxu0
      %v1548 = vadd.f32 %v491, %v1547
      %1549 = vmatmul.bf16.gmra.mxu0 %v1146
      %v1550 = vpop.f32.mrf.mxu0
      %v1551 = vadd.f32 %v491, %v1550
      %v1552 = vpop.f32.mrf.mxu0
      %v1553 = vadd.f32 %v491, %v1552
      %1554 = vmatmul.bf16.gmra.mxu0 %v1149
      %v1555 = vpop.f32.mrf.mxu0
      %v1556 = vadd.f32 %v491, %v1555
      %v1557 = vpop.f32.mrf.mxu0
      %v1558 = vadd.f32 %v491, %v1557
      %1559 = vmatmul.bf16.gmra.mxu0 %v1152
      %v1560 = vpop.f32.mrf.mxu0
      %v1561 = vadd.f32 %v491, %v1560
      %v1562 = vpop.f32.mrf.mxu0
      %v1563 = vadd.f32 %v491, %v1562
      %1564 = vmatmul.bf16.gmra.mxu0 %v1155
      %v1565 = vpop.f32.mrf.mxu0
      %v1566 = vadd.f32 %v491, %v1565
      %v1567 = vpop.f32.mrf.mxu0
      %v1568 = vadd.f32 %v491, %v1567
      %1569 = vmatmul.bf16.gmra.mxu0 %v1158
      %v1570 = vpop.f32.mrf.mxu0
      %v1571 = vadd.f32 %v491, %v1570
      %v1572 = vpop.f32.mrf.mxu0
      %v1573 = vadd.f32 %v491, %v1572
      %1574 = vmatmul.bf16.gmra.mxu0 %v1161
      %v1575 = vpop.f32.mrf.mxu0
      %v1576 = vadd.f32 %v491, %v1575
      %v1577 = vpop.f32.mrf.mxu0
      %v1578 = vadd.f32 %v491, %v1577
      %1579 = vmatmul.bf16.gmra.mxu0 %v1164
      %v1580 = vpop.f32.mrf.mxu0
      %v1581 = vadd.f32 %v491, %v1580
      %v1582 = vpop.f32.mrf.mxu0
      %v1583 = vadd.f32 %v491, %v1582
      %1584 = vmatmul.bf16.gmra.mxu0 %v1167
      %v1585 = vpop.f32.mrf.mxu0
      %v1586 = vadd.f32 %v491, %v1585
      %v1587 = vpop.f32.mrf.mxu0
      %v1588 = vadd.f32 %v491, %v1587
      %1589 = vmatmul.bf16.gmra.mxu0 %v1170
      %v1590 = vpop.f32.mrf.mxu0
      %v1591 = vadd.f32 %v491, %v1590
      %v1592 = vpop.f32.mrf.mxu0
      %v1593 = vadd.f32 %v491, %v1592
      %1594 = vmatmul.bf16.gmra.mxu0 %v1173
      %v1595 = vpop.f32.mrf.mxu0
      %v1596 = vadd.f32 %v491, %v1595
      %v1597 = vpop.f32.mrf.mxu0
      %v1598 = vadd.f32 %v491, %v1597
      %1599 = vmatmul.bf16.gmra.mxu0 %v1176
      %v1600 = vpop.f32.mrf.mxu0
      %v1601 = vadd.f32 %v491, %v1600
      %v1602 = vpop.f32.mrf.mxu0
      %v1603 = vadd.f32 %v491, %v1602
      %1604 = vmatmul.bf16.gmra.mxu0 %v1179
      %v1605 = vpop.f32.mrf.mxu0
      %v1606 = vadd.f32 %v491, %v1605
      %v1607 = vpop.f32.mrf.mxu0
      %v1608 = vadd.f32 %v491, %v1607
      %1609 = vmatmul.bf16.gmra.mxu0 %v1182
      %v1610 = vpop.f32.mrf.mxu0
      %v1611 = vadd.f32 %v491, %v1610
      %v1612 = vpop.f32.mrf.mxu0
      %v1613 = vadd.f32 %v491, %v1612
      %1614 = vmatmul.bf16.gmra.mxu0 %v1185
      %v1615 = vpop.f32.mrf.mxu0
      %v1616 = vadd.f32 %v491, %v1615
      %v1617 = vpop.f32.mrf.mxu0
      %v1618 = vadd.f32 %v491, %v1617
      %1619 = vmatmul.bf16.gmra.mxu0 %v1188
      %v1620 = vpop.f32.mrf.mxu0
      %v1621 = vadd.f32 %v491, %v1620
      %v1622 = vpop.f32.mrf.mxu0
      %v1623 = vadd.f32 %v491, %v1622
      %1624 = vmatmul.bf16.gmra.mxu0 %v1191
      %v1625 = vpop.f32.mrf.mxu0
      %v1626 = vadd.f32 %v491, %v1625
      %v1627 = vpop.f32.mrf.mxu0
      %v1628 = vadd.f32 %v491, %v1627
      %1629 = vmatmul.bf16.gmra.mxu0 %v1194
      %v1630 = vpop.f32.mrf.mxu0
      %v1631 = vadd.f32 %v491, %v1630
      %v1632 = vpop.f32.mrf.mxu0
      %v1633 = vadd.f32 %v491, %v1632
      %1634 = vmatmul.bf16.gmra.mxu0 %v1197
      %v1635 = vpop.f32.mrf.mxu0
      %v1636 = vadd.f32 %v491, %v1635
      %v1637 = vpop.f32.mrf.mxu0
      %v1638 = vadd.f32 %v491, %v1637
      %1639 = vmatmul.bf16.gmra.mxu0 %v1200
      %v1640 = vpop.f32.mrf.mxu0
      %v1641 = vadd.f32 %v491, %v1640
      %v1642 = vpop.f32.mrf.mxu0
      %v1643 = vadd.f32 %v491, %v1642
      %1644 = vmatmul.bf16.gmra.mxu0 %v1203
      %v1645 = vpop.f32.mrf.mxu0
      %v1646 = vadd.f32 %v491, %v1645
      %v1647 = vpop.f32.mrf.mxu0
      %v1648 = vadd.f32 %v491, %v1647
      %1649 = vmatmul.bf16.gmra.mxu0 %v1206
      %v1650 = vpop.f32.mrf.mxu0
      %v1651 = vadd.f32 %v491, %v1650
      %v1652 = vpop.f32.mrf.mxu0
      %v1653 = vadd.f32 %v491, %v1652
      %1654 = vmatmul.bf16.gmra.mxu0 %v1209
      %v1655 = vpop.f32.mrf.mxu0
      %v1656 = vadd.f32 %v491, %v1655
      %v1657 = vpop.f32.mrf.mxu0
      %v1658 = vadd.f32 %v491, %v1657
      %1659 = vmatmul.bf16.gmra.mxu0 %v1212
      %v1660 = vpop.f32.mrf.mxu0
      %v1661 = vadd.f32 %v491, %v1660
      %v1662 = vpop.f32.mrf.mxu0
      %v1663 = vadd.f32 %v491, %v1662
      %1664 = vmatmul.bf16.gmra.mxu0 %v1215
      %v1665 = vpop.f32.mrf.mxu0
      %v1666 = vadd.f32 %v491, %v1665
      %v1667 = vpop.f32.mrf.mxu0
      %v1668 = vadd.f32 %v491, %v1667
      %1669 = vmatmul.bf16.gmra.mxu0 %v1218
      %v1670 = vpop.f32.mrf.mxu0
      %v1671 = vadd.f32 %v491, %v1670
      %v1672 = vpop.f32.mrf.mxu0
      %v1673 = vadd.f32 %v491, %v1672
      %1674 = vmatmul.bf16.gmra.mxu0 %v1221
      %v1675 = vpop.f32.mrf.mxu0
      %v1676 = vadd.f32 %v491, %v1675
      %v1677 = vpop.f32.mrf.mxu0
      %v1678 = vadd.f32 %v491, %v1677
      %1679 = vmatmul.bf16.gmra.mxu0 %v1224
      %v1680 = vpop.f32.mrf.mxu0
      %v1681 = vadd.f32 %v491, %v1680
      %v1682 = vpop.f32.mrf.mxu0
      %v1683 = vadd.f32 %v491, %v1682
      %1684 = vmatmul.bf16.gmra.mxu0 %v1227
      %v1685 = vpop.f32.mrf.mxu0
      %v1686 = vadd.f32 %v491, %v1685
      %v1687 = vpop.f32.mrf.mxu0
      %v1688 = vadd.f32 %v491, %v1687
      %1689 = vmatmul.bf16.gmra.mxu0 %v1230
      %v1690 = vpop.f32.mrf.mxu0
      %v1691 = vadd.f32 %v491, %v1690
      %v1692 = vpop.f32.mrf.mxu0
      %v1693 = vadd.f32 %v491, %v1692
      %1694 = vmatmul.bf16.gmra.mxu0 %v1233
      %v1695 = vpop.f32.mrf.mxu0
      %v1696 = vadd.f32 %v491, %v1695
      %v1697 = vpop.f32.mrf.mxu0
      %v1698 = vadd.f32 %v491, %v1697
      %1699 = vmatmul.bf16.gmra.mxu0 %v1236
      %v1700 = vpop.f32.mrf.mxu0
      %v1701 = vadd.f32 %v491, %v1700
      %v1702 = vpop.f32.mrf.mxu0
      %v1703 = vadd.f32 %v491, %v1702
      %1704 = vmatmul.bf16.gmra.mxu0 %v1239
      %v1705 = vpop.f32.mrf.mxu0
      %v1706 = vadd.f32 %v491, %v1705
      %v1707 = vpop.f32.mrf.mxu0
      %v1708 = vadd.f32 %v491, %v1707
      %1709 = vmatmul.bf16.gmra.mxu0 %v1242
      %v1710 = vpop.f32.mrf.mxu0
      %v1711 = vadd.f32 %v491, %v1710
      %v1712 = vpop.f32.mrf.mxu0
      %v1713 = vadd.f32 %v491, %v1712
      %1714 = vmatmul.bf16.gmra.mxu0 %v1245
      %v1715 = vpop.f32.mrf.mxu0
      %v1716 = vadd.f32 %v491, %v1715
      %v1717 = vpop.f32.mrf.mxu0
      %v1718 = vadd.f32 %v491, %v1717
      %1719 = vmatmul.bf16.gmra.mxu0 %v1248
      %v1720 = vpop.f32.mrf.mxu0
      %v1721 = vadd.f32 %v491, %v1720
      %v1722 = vpop.f32.mrf.mxu0
      %v1723 = vadd.f32 %v491, %v1722
      %1724 = vmatmul.bf16.gmra.mxu0 %v1251
      %v1725 = vpop.f32.mrf.mxu0
      %v1726 = vadd.f32 %v491, %v1725
      %v1727 = vpop.f32.mrf.mxu0
      %v1728 = vadd.f32 %v491, %v1727
      %1729 = vmatmul.bf16.gmra.mxu0 %v1254
      %v1730 = vpop.f32.mrf.mxu0
      %v1731 = vadd.f32 %v491, %v1730
      %v1732 = vpop.f32.mrf.mxu0
      %v1733 = vadd.f32 %v491, %v1732
      %1734 = vmatmul.bf16.gmra.mxu0 %v1257
      %v1735 = vpop.f32.mrf.mxu0
      %v1736 = vadd.f32 %v491, %v1735
      %v1737 = vpop.f32.mrf.mxu0
      %v1738 = vadd.f32 %v491, %v1737
      %1739 = vmatmul.bf16.gmra.mxu0 %v1260
      %v1740 = vpop.f32.mrf.mxu0
      %v1741 = vadd.f32 %v491, %v1740
      %v1742 = vpop.f32.mrf.mxu0
      %v1743 = vadd.f32 %v491, %v1742
      %1744 = vmatmul.bf16.gmra.mxu0 %v1263
      %v1745 = vpop.f32.mrf.mxu0
      %v1746 = vadd.f32 %v491, %v1745
      %v1747 = vpop.f32.mrf.mxu0
      %v1748 = vadd.f32 %v491, %v1747
      %1749 = vmatmul.bf16.gmra.mxu0 %v1266
      %v1750 = vpop.f32.mrf.mxu0
      %v1751 = vadd.f32 %v491, %v1750
      %v1752 = vpop.f32.mrf.mxu0
      %v1753 = vadd.f32 %v491, %v1752
      %1754 = vmatmul.bf16.gmra.mxu0 %v1269
      %v1755 = vpop.f32.mrf.mxu0
      %v1756 = vadd.f32 %v491, %v1755
      %v1757 = vpop.f32.mrf.mxu0
      %v1758 = vadd.f32 %v491, %v1757
      %1759 = vmatmul.bf16.gmra.mxu0 %v1272
      %v1760 = vpop.f32.mrf.mxu0
      %v1761 = vadd.f32 %v491, %v1760
      %v1762 = vpop.f32.mrf.mxu0
      %v1763 = vadd.f32 %v491, %v1762
      %1764 = vmatmul.bf16.gmra.mxu0 %v1275
      %v1765 = vpop.f32.mrf.mxu0
      %v1766 = vadd.f32 %v491, %v1765
      %v1767 = vpop.f32.mrf.mxu0
      %v1768 = vadd.f32 %v491, %v1767
      %1769 = vdwg.mxu0
      %v1770 = vmax.f32 %v1291, 0.0
      %v1771 = vmax.f32 %v1293, 0.0
      %v1772 = vmax.f32 %v1296, 0.0
      %v1773 = vmax.f32 %v1298, 0.0
      %v1774 = vmax.f32 %v1301, 0.0
      %v1775 = vmax.f32 %v1303, 0.0
      %v1776 = vmax.f32 %v1306, 0.0
      %v1777 = vmax.f32 %v1308, 0.0
      %v1778 = vmax.f32 %v1311, 0.0
      %v1779 = vmax.f32 %v1313, 0.0
      %v1780 = vmax.f32 %v1316, 0.0
      %v1781 = vmax.f32 %v1318, 0.0
      %v1782 = vmax.f32 %v1321, 0.0
      %v1783 = vmax.f32 %v1323, 0.0
      %v1784 = vmax.f32 %v1326, 0.0
      %v1785 = vmax.f32 %v1328, 0.0
      %v1786 = vmax.f32 %v1331, 0.0
      %v1787 = vmax.f32 %v1333, 0.0
      %v1788 = vmax.f32 %v1336, 0.0
      %v1789 = vmax.f32 %v1338, 0.0
      %v1790 = vmax.f32 %v1341, 0.0
      %v1791 = vmax.f32 %v1343, 0.0
      %v1792 = vmax.f32 %v1346, 0.0
      %v1793 = vmax.f32 %v1348, 0.0
      %v1794 = vmax.f32 %v1351, 0.0
      %v1795 = vmax.f32 %v1353, 0.0
      %v1796 = vmax.f32 %v1356, 0.0
      %v1797 = vmax.f32 %v1358, 0.0
      %v1798 = vmax.f32 %v1361, 0.0
      %v1799 = vmax.f32 %v1363, 0.0
      %v1800 = vmax.f32 %v1366, 0.0
      %v1801 = vmax.f32 %v1368, 0.0
      %v1802 = vmax.f32 %v1371, 0.0
      %v1803 = vmax.f32 %v1373, 0.0
      %v1804 = vmax.f32 %v1376, 0.0
      %v1805 = vmax.f32 %v1378, 0.0
      %v1806 = vmax.f32 %v1381, 0.0
      %v1807 = vmax.f32 %v1383, 0.0
      %v1808 = vmax.f32 %v1386, 0.0
      %v1809 = vmax.f32 %v1388, 0.0
      %v1810 = vmax.f32 %v1391, 0.0
      %v1811 = vmax.f32 %v1393, 0.0
      %v1812 = vmax.f32 %v1396, 0.0
      %v1813 = vmax.f32 %v1398, 0.0
      %v1814 = vmax.f32 %v1401, 0.0
      %v1815 = vmax.f32 %v1403, 0.0
      %v1816 = vmax.f32 %v1406, 0.0
      %v1817 = vmax.f32 %v1408, 0.0
      %v1818 = vmax.f32 %v1411, 0.0
      %v1819 = vmax.f32 %v1413, 0.0
      %v1820 = vmax.f32 %v1416, 0.0
      %v1821 = vmax.f32 %v1418, 0.0
      %v1822 = vmax.f32 %v1421, 0.0
      %v1823 = vmax.f32 %v1423, 0.0
      %v1824 = vmax.f32 %v1426, 0.0
      %v1825 = vmax.f32 %v1428, 0.0
      %v1826 = vmax.f32 %v1431, 0.0
      %v1827 = vmax.f32 %v1433, 0.0
      %v1828 = vmax.f32 %v1436, 0.0
      %v1829 = vmax.f32 %v1438, 0.0
      %v1830 = vmax.f32 %v1441, 0.0
      %v1831 = vmax.f32 %v1443, 0.0
      %v1832 = vmax.f32 %v1446, 0.0
      %v1833 = vmax.f32 %v1448, 0.0
      %v1834 = vmax.f32 %v1451, 0.0
      %v1835 = vmax.f32 %v1453, 0.0
      %v1836 = vmax.f32 %v1456, 0.0
      %v1837 = vmax.f32 %v1458, 0.0
      %v1838 = vmax.f32 %v1461, 0.0
      %v1839 = vmax.f32 %v1463, 0.0
      %v1840 = vmax.f32 %v1466, 0.0
      %v1841 = vmax.f32 %v1468, 0.0
      %v1842 = vmax.f32 %v1471, 0.0
      %v1843 = vmax.f32 %v1473, 0.0
      %v1844 = vmax.f32 %v1476, 0.0
      %v1845 = vmax.f32 %v1478, 0.0
      %v1846 = vmax.f32 %v1481, 0.0
      %v1847 = vmax.f32 %v1483, 0.0
      %v1848 = vmax.f32 %v1486, 0.0
      %v1849 = vmax.f32 %v1488, 0.0
      %v1850 = vmax.f32 %v1491, 0.0
      %v1851 = vmax.f32 %v1493, 0.0
      %v1852 = vmax.f32 %v1496, 0.0
      %v1853 = vmax.f32 %v1498, 0.0
      %v1854 = vmax.f32 %v1501, 0.0
      %v1855 = vmax.f32 %v1503, 0.0
      %v1856 = vmax.f32 %v1506, 0.0
      %v1857 = vmax.f32 %v1508, 0.0
      %v1858 = vmax.f32 %v1511, 0.0
      %v1859 = vmax.f32 %v1513, 0.0
      %v1860 = vmax.f32 %v1516, 0.0
      %v1861 = vmax.f32 %v1518, 0.0
      %v1862 = vmax.f32 %v1521, 0.0
      %v1863 = vmax.f32 %v1523, 0.0
      %v1864 = vmax.f32 %v1526, 0.0
      %v1865 = vmax.f32 %v1528, 0.0
      %v1866 = vmax.f32 %v1531, 0.0
      %v1867 = vmax.f32 %v1533, 0.0
      %v1868 = vmax.f32 %v1536, 0.0
      %v1869 = vmax.f32 %v1538, 0.0
      %v1870 = vmax.f32 %v1541, 0.0
      %v1871 = vmax.f32 %v1543, 0.0
      %v1872 = vmax.f32 %v1546, 0.0
      %v1873 = vmax.f32 %v1548, 0.0
      %v1874 = vmax.f32 %v1551, 0.0
      %v1875 = vmax.f32 %v1553, 0.0
      %v1876 = vmax.f32 %v1556, 0.0
      %v1877 = vmax.f32 %v1558, 0.0
      %v1878 = vmax.f32 %v1561, 0.0
      %v1879 = vmax.f32 %v1563, 0.0
      %v1880 = vmax.f32 %v1566, 0.0
      %v1881 = vmax.f32 %v1568, 0.0
      %v1882 = vmax.f32 %v1571, 0.0
      %v1883 = vmax.f32 %v1573, 0.0
      %v1884 = vmax.f32 %v1576, 0.0
      %v1885 = vmax.f32 %v1578, 0.0
      %v1886 = vmax.f32 %v1581, 0.0
      %v1887 = vmax.f32 %v1583, 0.0
      %v1888 = vmax.f32 %v1586, 0.0
      %v1889 = vmax.f32 %v1588, 0.0
      %v1890 = vmax.f32 %v1591, 0.0
      %v1891 = vmax.f32 %v1593, 0.0
      %v1892 = vmax.f32 %v1596, 0.0
      %v1893 = vmax.f32 %v1598, 0.0
      %v1894 = vmax.f32 %v1601, 0.0
      %v1895 = vmax.f32 %v1603, 0.0
      %v1896 = vmax.f32 %v1606, 0.0
      %v1897 = vmax.f32 %v1608, 0.0
      %v1898 = vmax.f32 %v1611, 0.0
      %v1899 = vmax.f32 %v1613, 0.0
      %v1900 = vmax.f32 %v1616, 0.0
      %v1901 = vmax.f32 %v1618, 0.0
      %v1902 = vmax.f32 %v1621, 0.0
      %v1903 = vmax.f32 %v1623, 0.0
      %v1904 = vmax.f32 %v1626, 0.0
      %v1905 = vmax.f32 %v1628, 0.0
      %v1906 = vmax.f32 %v1631, 0.0
      %v1907 = vmax.f32 %v1633, 0.0
      %v1908 = vmax.f32 %v1636, 0.0
      %v1909 = vmax.f32 %v1638, 0.0
      %v1910 = vmax.f32 %v1641, 0.0
      %v1911 = vmax.f32 %v1643, 0.0
      %v1912 = vmax.f32 %v1646, 0.0
      %v1913 = vmax.f32 %v1648, 0.0
      %v1914 = vmax.f32 %v1651, 0.0
      %v1915 = vmax.f32 %v1653, 0.0
      %v1916 = vmax.f32 %v1656, 0.0
      %v1917 = vmax.f32 %v1658, 0.0
      %v1918 = vmax.f32 %v1661, 0.0
      %v1919 = vmax.f32 %v1663, 0.0
      %v1920 = vmax.f32 %v1666, 0.0
      %v1921 = vmax.f32 %v1668, 0.0
      %v1922 = vmax.f32 %v1671, 0.0
      %v1923 = vmax.f32 %v1673, 0.0
      %v1924 = vmax.f32 %v1676, 0.0
      %v1925 = vmax.f32 %v1678, 0.0
      %v1926 = vmax.f32 %v1681, 0.0
      %v1927 = vmax.f32 %v1683, 0.0
      %v1928 = vmax.f32 %v1686, 0.0
      %v1929 = vmax.f32 %v1688, 0.0
      %v1930 = vmax.f32 %v1691, 0.0
      %v1931 = vmax.f32 %v1693, 0.0
      %v1932 = vmax.f32 %v1696, 0.0
      %v1933 = vmax.f32 %v1698, 0.0
      %v1934 = vmax.f32 %v1701, 0.0
      %v1935 = vmax.f32 %v1703, 0.0
      %v1936 = vmax.f32 %v1706, 0.0
      %v1937 = vmax.f32 %v1708, 0.0
      %v1938 = vmax.f32 %v1711, 0.0
      %v1939 = vmax.f32 %v1713, 0.0
      %v1940 = vmax.f32 %v1716, 0.0
      %v1941 = vmax.f32 %v1718, 0.0
      %v1942 = vmax.f32 %v1721, 0.0
      %v1943 = vmax.f32 %v1723, 0.0
      %v1944 = vmax.f32 %v1726, 0.0
      %v1945 = vmax.f32 %v1728, 0.0
      %v1946 = vmax.f32 %v1731, 0.0
      %v1947 = vmax.f32 %v1733, 0.0
      %v1948 = vmax.f32 %v1736, 0.0
      %v1949 = vmax.f32 %v1738, 0.0
      %v1950 = vmax.f32 %v1741, 0.0
      %v1951 = vmax.f32 %v1743, 0.0
      %v1952 = vmax.f32 %v1746, 0.0
      %v1953 = vmax.f32 %v1748, 0.0
      %v1954 = vmax.f32 %v1751, 0.0
      %v1955 = vmax.f32 %v1753, 0.0
      %v1956 = vmax.f32 %v1756, 0.0
      %v1957 = vmax.f32 %v1758, 0.0
      %v1958 = vmax.f32 %v1761, 0.0
      %v1959 = vmax.f32 %v1763, 0.0
      %v1960 = vmax.f32 %v1766, 0.0
      %v1961 = vmax.f32 %v1768, 0.0
      %v1962 = vpack.c.bf16 %v1770, %v1770
      %v1963 = vpack.c.bf16 %v1771, %v1771
      %v1964 = vpack.c.bf16 %v1772, %v1772
      %v1965 = vpack.c.bf16 %v1773, %v1773
      %v1966 = vpack.c.bf16 %v1774, %v1774
      %v1967 = vpack.c.bf16 %v1775, %v1775
      %v1968 = vpack.c.bf16 %v1776, %v1776
      %v1969 = vpack.c.bf16 %v1777, %v1777
      %v1970 = vpack.c.bf16 %v1778, %v1778
      %v1971 = vpack.c.bf16 %v1779, %v1779
      %v1972 = vpack.c.bf16 %v1780, %v1780
      %v1973 = vpack.c.bf16 %v1781, %v1781
      %v1974 = vpack.c.bf16 %v1782, %v1782
      %v1975 = vpack.c.bf16 %v1783, %v1783
      %v1976 = vpack.c.bf16 %v1784, %v1784
      %v1977 = vpack.c.bf16 %v1785, %v1785
      %v1978 = vpack.c.bf16 %v1786, %v1786
      %v1979 = vpack.c.bf16 %v1787, %v1787
      %v1980 = vpack.c.bf16 %v1788, %v1788
      %v1981 = vpack.c.bf16 %v1789, %v1789
      %v1982 = vpack.c.bf16 %v1790, %v1790
      %v1983 = vpack.c.bf16 %v1791, %v1791
      %v1984 = vpack.c.bf16 %v1792, %v1792
      %v1985 = vpack.c.bf16 %v1793, %v1793
      %v1986 = vpack.c.bf16 %v1794, %v1794
      %v1987 = vpack.c.bf16 %v1795, %v1795
      %v1988 = vpack.c.bf16 %v1796, %v1796
      %v1989 = vpack.c.bf16 %v1797, %v1797
      %v1990 = vpack.c.bf16 %v1798, %v1798
      %v1991 = vpack.c.bf16 %v1799, %v1799
      %v1992 = vpack.c.bf16 %v1800, %v1800
      %v1993 = vpack.c.bf16 %v1801, %v1801
      %v1994 = vpack.c.bf16 %v1802, %v1802
      %v1995 = vpack.c.bf16 %v1803, %v1803
      %v1996 = vpack.c.bf16 %v1804, %v1804
      %v1997 = vpack.c.bf16 %v1805, %v1805
      %v1998 = vpack.c.bf16 %v1806, %v1806
      %v1999 = vpack.c.bf16 %v1807, %v1807
      %v2000 = vpack.c.bf16 %v1808, %v1808
      %v2001 = vpack.c.bf16 %v1809, %v1809
      %v2002 = vpack.c.bf16 %v1810, %v1810
      %v2003 = vpack.c.bf16 %v1811, %v1811
      %v2004 = vpack.c.bf16 %v1812, %v1812
      %v2005 = vpack.c.bf16 %v1813, %v1813
      %v2006 = vpack.c.bf16 %v1814, %v1814
      %v2007 = vpack.c.bf16 %v1815, %v1815
      %v2008 = vpack.c.bf16 %v1816, %v1816
      %v2009 = vpack.c.bf16 %v1817, %v1817
      %v2010 = vpack.c.bf16 %v1818, %v1818
      %v2011 = vpack.c.bf16 %v1819, %v1819
      %v2012 = vpack.c.bf16 %v1820, %v1820
      %v2013 = vpack.c.bf16 %v1821, %v1821
      %v2014 = vpack.c.bf16 %v1822, %v1822
      %v2015 = vpack.c.bf16 %v1823, %v1823
      %v2016 = vpack.c.bf16 %v1824, %v1824
      %v2017 = vpack.c.bf16 %v1825, %v1825
      %v2018 = vpack.c.bf16 %v1826, %v1826
      %v2019 = vpack.c.bf16 %v1827, %v1827
      %v2020 = vpack.c.bf16 %v1828, %v1828
      %v2021 = vpack.c.bf16 %v1829, %v1829
      %v2022 = vpack.c.bf16 %v1830, %v1830
      %v2023 = vpack.c.bf16 %v1831, %v1831
      %v2024 = vpack.c.bf16 %v1832, %v1832
      %v2025 = vpack.c.bf16 %v1833, %v1833
      %v2026 = vpack.c.bf16 %v1834, %v1834
      %v2027 = vpack.c.bf16 %v1835, %v1835
      %v2028 = vpack.c.bf16 %v1836, %v1836
      %v2029 = vpack.c.bf16 %v1837, %v1837
      %v2030 = vpack.c.bf16 %v1838, %v1838
      %v2031 = vpack.c.bf16 %v1839, %v1839
      %v2032 = vpack.c.bf16 %v1840, %v1840
      %v2033 = vpack.c.bf16 %v1841, %v1841
      %v2034 = vpack.c.bf16 %v1842, %v1842
      %v2035 = vpack.c.bf16 %v1843, %v1843
      %v2036 = vpack.c.bf16 %v1844, %v1844
      %v2037 = vpack.c.bf16 %v1845, %v1845
      %v2038 = vpack.c.bf16 %v1846, %v1846
      %v2039 = vpack.c.bf16 %v1847, %v1847
      %v2040 = vpack.c.bf16 %v1848, %v1848
      %v2041 = vpack.c.bf16 %v1849, %v1849
      %v2042 = vpack.c.bf16 %v1850, %v1850
      %v2043 = vpack.c.bf16 %v1851, %v1851
      %v2044 = vpack.c.bf16 %v1852, %v1852
      %v2045 = vpack.c.bf16 %v1853, %v1853
      %v2046 = vpack.c.bf16 %v1854, %v1854
      %v2047 = vpack.c.bf16 %v1855, %v1855
      %v2048 = vpack.c.bf16 %v1856, %v1856
      %v2049 = vpack.c.bf16 %v1857, %v1857
      %v2050 = vpack.c.bf16 %v1858, %v1858
      %v2051 = vpack.c.bf16 %v1859, %v1859
      %v2052 = vpack.c.bf16 %v1860, %v1860
      %v2053 = vpack.c.bf16 %v1861, %v1861
      %v2054 = vpack.c.bf16 %v1862, %v1862
      %v2055 = vpack.c.bf16 %v1863, %v1863
      %v2056 = vpack.c.bf16 %v1864, %v1864
      %v2057 = vpack.c.bf16 %v1865, %v1865
      %v2058 = vpack.c.bf16 %v1866, %v1866
      %v2059 = vpack.c.bf16 %v1867, %v1867
      %v2060 = vpack.c.bf16 %v1868, %v1868
      %v2061 = vpack.c.bf16 %v1869, %v1869
      %v2062 = vpack.c.bf16 %v1870, %v1870
      %v2063 = vpack.c.bf16 %v1871, %v1871
      %v2064 = vpack.c.bf16 %v1872, %v1872
      %v2065 = vpack.c.bf16 %v1873, %v1873
      %v2066 = vpack.c.bf16 %v1874, %v1874
      %v2067 = vpack.c.bf16 %v1875, %v1875
      %v2068 = vpack.c.bf16 %v1876, %v1876
      %v2069 = vpack.c.bf16 %v1877, %v1877
      %v2070 = vpack.c.bf16 %v1878, %v1878
      %v2071 = vpack.c.bf16 %v1879, %v1879
      %v2072 = vpack.c.bf16 %v1880, %v1880
      %v2073 = vpack.c.bf16 %v1881, %v1881
      %v2074 = vpack.c.bf16 %v1882, %v1882
      %v2075 = vpack.c.bf16 %v1883, %v1883
      %v2076 = vpack.c.bf16 %v1884, %v1884
      %v2077 = vpack.c.bf16 %v1885, %v1885
      %v2078 = vpack.c.bf16 %v1886, %v1886
      %v2079 = vpack.c.bf16 %v1887, %v1887
      %v2080 = vpack.c.bf16 %v1888, %v1888
      %v2081 = vpack.c.bf16 %v1889, %v1889
      %v2082 = vpack.c.bf16 %v1890, %v1890
      %v2083 = vpack.c.bf16 %v1891, %v1891
      %v2084 = vpack.c.bf16 %v1892, %v1892
      %v2085 = vpack.c.bf16 %v1893, %v1893
      %v2086 = vpack.c.bf16 %v1894, %v1894
      %v2087 = vpack.c.bf16 %v1895, %v1895
      %v2088 = vpack.c.bf16 %v1896, %v1896
      %v2089 = vpack.c.bf16 %v1897, %v1897
      %v2090 = vpack.c.bf16 %v1898, %v1898
      %v2091 = vpack.c.bf16 %v1899, %v1899
      %v2092 = vpack.c.bf16 %v1900, %v1900
      %v2093 = vpack.c.bf16 %v1901, %v1901
      %v2094 = vpack.c.bf16 %v1902, %v1902
      %v2095 = vpack.c.bf16 %v1903, %v1903
      %v2096 = vpack.c.bf16 %v1904, %v1904
      %v2097 = vpack.c.bf16 %v1905, %v1905
      %v2098 = vpack.c.bf16 %v1906, %v1906
      %v2099 = vpack.c.bf16 %v1907, %v1907
      %v2100 = vpack.c.bf16 %v1908, %v1908
      %v2101 = vpack.c.bf16 %v1909, %v1909
      %v2102 = vpack.c.bf16 %v1910, %v1910
      %v2103 = vpack.c.bf16 %v1911, %v1911
      %v2104 = vpack.c.bf16 %v1912, %v1912
      %v2105 = vpack.c.bf16 %v1913, %v1913
      %v2106 = vpack.c.bf16 %v1914, %v1914
      %v2107 = vpack.c.bf16 %v1915, %v1915
      %v2108 = vpack.c.bf16 %v1916, %v1916
      %v2109 = vpack.c.bf16 %v1917, %v1917
      %v2110 = vpack.c.bf16 %v1918, %v1918
      %v2111 = vpack.c.bf16 %v1919, %v1919
      %v2112 = vpack.c.bf16 %v1920, %v1920
      %v2113 = vpack.c.bf16 %v1921, %v1921
      %v2114 = vpack.c.bf16 %v1922, %v1922
      %v2115 = vpack.c.bf16 %v1923, %v1923
      %v2116 = vpack.c.bf16 %v1924, %v1924
      %v2117 = vpack.c.bf16 %v1925, %v1925
      %v2118 = vpack.c.bf16 %v1926, %v1926
      %v2119 = vpack.c.bf16 %v1927, %v1927
      %v2120 = vpack.c.bf16 %v1928, %v1928
      %v2121 = vpack.c.bf16 %v1929, %v1929
      %v2122 = vpack.c.bf16 %v1930, %v1930
      %v2123 = vpack.c.bf16 %v1931, %v1931
      %v2124 = vpack.c.bf16 %v1932, %v1932
      %v2125 = vpack.c.bf16 %v1933, %v1933
      %v2126 = vpack.c.bf16 %v1934, %v1934
      %v2127 = vpack.c.bf16 %v1935, %v1935
      %v2128 = vpack.c.bf16 %v1936, %v1936
      %v2129 = vpack.c.bf16 %v1937, %v1937
      %v2130 = vpack.c.bf16 %v1938, %v1938
      %v2131 = vpack.c.bf16 %v1939, %v1939
      %v2132 = vpack.c.bf16 %v1940, %v1940
      %v2133 = vpack.c.bf16 %v1941, %v1941
      %v2134 = vpack.c.bf16 %v1942, %v1942
      %v2135 = vpack.c.bf16 %v1943, %v1943
      %v2136 = vpack.c.bf16 %v1944, %v1944
      %v2137 = vpack.c.bf16 %v1945, %v1945
      %v2138 = vpack.c.bf16 %v1946, %v1946
      %v2139 = vpack.c.bf16 %v1947, %v1947
      %v2140 = vpack.c.bf16 %v1948, %v1948
      %v2141 = vpack.c.bf16 %v1949, %v1949
      %v2142 = vpack.c.bf16 %v1950, %v1950
      %v2143 = vpack.c.bf16 %v1951, %v1951
      %v2144 = vpack.c.bf16 %v1952, %v1952
      %v2145 = vpack.c.bf16 %v1953, %v1953
      %v2146 = vpack.c.bf16 %v1954, %v1954
      %v2147 = vpack.c.bf16 %v1955, %v1955
      %v2148 = vpack.c.bf16 %v1956, %v1956
      %v2149 = vpack.c.bf16 %v1957, %v1957
      %v2150 = vpack.c.bf16 %v1958, %v1958
      %v2151 = vpack.c.bf16 %v1959, %v1959
      %v2152 = vpack.c.bf16 %v1960, %v1960
      %v2153 = vpack.c.bf16 %v1961, %v1961
      %v2155 = vshrl.u32 0, 16
      %v2157 = vrot.slane %v2155, 7
      %v2158 = vshll.u32 0, 16
      %v2160 = vor.u32 %v2157, %v2158
      %v2162 = vshrl.u32 %v2106, 16
      %v2164 = vrot.slane %v2162, 7
      %v2165 = vshll.u32 %v2106, 16
      %v2167 = vor.u32 %v2164, %v2165
      %v2169 = vshrl.u32 %v2107, 16
      %v2171 = vrot.slane %v2169, 7
      %v2172 = vshll.u32 %v2107, 16
      %v2174 = vor.u32 %v2171, %v2172
      %v2176 = vshrl.u32 %v2108, 16
      %v2178 = vrot.slane %v2176, 7
      %v2179 = vshll.u32 %v2108, 16
      %v2181 = vor.u32 %v2178, %v2179
      %v2183 = vshrl.u32 %v2109, 16
      %v2185 = vrot.slane %v2183, 7
      %v2186 = vshll.u32 %v2109, 16
      %v2188 = vor.u32 %v2185, %v2186
      %v2190 = vshrl.u32 %v2110, 16
      %v2192 = vrot.slane %v2190, 7
      %v2193 = vshll.u32 %v2110, 16
      %v2195 = vor.u32 %v2192, %v2193
      %v2197 = vshrl.u32 %v2111, 16
      %v2199 = vrot.slane %v2197, 7
      %v2200 = vshll.u32 %v2111, 16
      %v2202 = vor.u32 %v2199, %v2200
      %v2204 = vshrl.u32 %v2112, 16
      %v2206 = vrot.slane %v2204, 7
      %v2207 = vshll.u32 %v2112, 16
      %v2209 = vor.u32 %v2206, %v2207
      %v2211 = vshrl.u32 %v2114, 16
      %v2213 = vrot.slane %v2211, 7
      %v2214 = vshll.u32 %v2114, 16
      %v2216 = vor.u32 %v2213, %v2214
      %v2218 = vshrl.u32 %v2115, 16
      %v2220 = vrot.slane %v2218, 7
      %v2221 = vshll.u32 %v2115, 16
      %v2223 = vor.u32 %v2220, %v2221
      %v2225 = vshrl.u32 %v2116, 16
      %v2227 = vrot.slane %v2225, 7
      %v2228 = vshll.u32 %v2116, 16
      %v2230 = vor.u32 %v2227, %v2228
      %v2232 = vshrl.u32 %v2117, 16
      %v2234 = vrot.slane %v2232, 7
      %v2235 = vshll.u32 %v2117, 16
      %v2237 = vor.u32 %v2234, %v2235
      %v2239 = vshrl.u32 %v2118, 16
      %v2241 = vrot.slane %v2239, 7
      %v2242 = vshll.u32 %v2118, 16
      %v2244 = vor.u32 %v2241, %v2242
      %v2246 = vshrl.u32 %v2119, 16
      %v2248 = vrot.slane %v2246, 7
      %v2249 = vshll.u32 %v2119, 16
      %v2251 = vor.u32 %v2248, %v2249
      %v2253 = vshrl.u32 %v2120, 16
      %v2255 = vrot.slane %v2253, 7
      %v2256 = vshll.u32 %v2120, 16
      %v2258 = vor.u32 %v2255, %v2256
      %v2260 = vshrl.u32 %v2122, 16
      %v2262 = vrot.slane %v2260, 7
      %v2263 = vshll.u32 %v2122, 16
      %v2265 = vor.u32 %v2262, %v2263
      %v2267 = vshrl.u32 %v2123, 16
      %v2269 = vrot.slane %v2267, 7
      %v2270 = vshll.u32 %v2123, 16
      %v2272 = vor.u32 %v2269, %v2270
      %v2274 = vshrl.u32 %v2124, 16
      %v2276 = vrot.slane %v2274, 7
      %v2277 = vshll.u32 %v2124, 16
      %v2279 = vor.u32 %v2276, %v2277
      %v2281 = vshrl.u32 %v2125, 16
      %v2283 = vrot.slane %v2281, 7
      %v2284 = vshll.u32 %v2125, 16
      %v2286 = vor.u32 %v2283, %v2284
      %v2288 = vshrl.u32 %v2126, 16
      %v2290 = vrot.slane %v2288, 7
      %v2291 = vshll.u32 %v2126, 16
      %v2293 = vor.u32 %v2290, %v2291
      %v2295 = vshrl.u32 %v2127, 16
      %v2297 = vrot.slane %v2295, 7
      %v2298 = vshll.u32 %v2127, 16
      %v2300 = vor.u32 %v2297, %v2298
      %v2302 = vshrl.u32 %v2128, 16
      %v2304 = vrot.slane %v2302, 7
      %v2305 = vshll.u32 %v2128, 16
      %v2307 = vor.u32 %v2304, %v2305
      %v2309 = vshrl.u32 %v2130, 16
      %v2311 = vrot.slane %v2309, 7
      %v2312 = vshll.u32 %v2130, 16
      %v2314 = vor.u32 %v2311, %v2312
      %v2316 = vshrl.u32 %v2131, 16
      %v2318 = vrot.slane %v2316, 7
      %v2319 = vshll.u32 %v2131, 16
      %v2321 = vor.u32 %v2318, %v2319
      %v2323 = vshrl.u32 %v2132, 16
      %v2325 = vrot.slane %v2323, 7
      %v2326 = vshll.u32 %v2132, 16
      %v2328 = vor.u32 %v2325, %v2326
      %v2330 = vshrl.u32 %v2133, 16
      %v2332 = vrot.slane %v2330, 7
      %v2333 = vshll.u32 %v2133, 16
      %v2335 = vor.u32 %v2332, %v2333
      %v2337 = vshrl.u32 %v2134, 16
      %v2339 = vrot.slane %v2337, 7
      %v2340 = vshll.u32 %v2134, 16
      %v2342 = vor.u32 %v2339, %v2340
      %v2344 = vshrl.u32 %v2135, 16
      %v2346 = vrot.slane %v2344, 7
      %v2347 = vshll.u32 %v2135, 16
      %v2349 = vor.u32 %v2346, %v2347
      %v2351 = vshrl.u32 %v2136, 16
      %v2353 = vrot.slane %v2351, 7
      %v2354 = vshll.u32 %v2136, 16
      %v2356 = vor.u32 %v2353, %v2354
      %v2358 = vshrl.u32 %v2138, 16
      %v2360 = vrot.slane %v2358, 7
      %v2361 = vshll.u32 %v2138, 16
      %v2363 = vor.u32 %v2360, %v2361
      %v2365 = vshrl.u32 %v2139, 16
      %v2367 = vrot.slane %v2365, 7
      %v2368 = vshll.u32 %v2139, 16
      %v2370 = vor.u32 %v2367, %v2368
      %v2372 = vshrl.u32 %v2140, 16
      %v2374 = vrot.slane %v2372, 7
      %v2375 = vshll.u32 %v2140, 16
      %v2377 = vor.u32 %v2374, %v2375
      %v2379 = vshrl.u32 %v2141, 16
      %v2381 = vrot.slane %v2379, 7
      %v2382 = vshll.u32 %v2141, 16
      %v2384 = vor.u32 %v2381, %v2382
      %v2386 = vshrl.u32 %v2142, 16
      %v2388 = vrot.slane %v2386, 7
      %v2389 = vshll.u32 %v2142, 16
      %v2391 = vor.u32 %v2388, %v2389
      %v2393 = vshrl.u32 %v2143, 16
      %v2395 = vrot.slane %v2393, 7
      %v2396 = vshll.u32 %v2143, 16
      %v2398 = vor.u32 %v2395, %v2396
      %v2400 = vshrl.u32 %v2144, 16
      %v2402 = vrot.slane %v2400, 7
      %v2403 = vshll.u32 %v2144, 16
      %v2405 = vor.u32 %v2402, %v2403
      %v2407 = vshrl.u32 %v2146, 16
      %v2409 = vrot.slane %v2407, 7
      %v2410 = vshll.u32 %v2146, 16
      %v2412 = vor.u32 %v2409, %v2410
      %v2414 = vshrl.u32 %v2147, 16
      %v2416 = vrot.slane %v2414, 7
      %v2417 = vshll.u32 %v2147, 16
      %v2419 = vor.u32 %v2416, %v2417
      %v2421 = vshrl.u32 %v2148, 16
      %v2423 = vrot.slane %v2421, 7
      %v2424 = vshll.u32 %v2148, 16
      %v2426 = vor.u32 %v2423, %v2424
      %v2428 = vshrl.u32 %v2149, 16
      %v2430 = vrot.slane %v2428, 7
      %v2431 = vshll.u32 %v2149, 16
      %v2433 = vor.u32 %v2430, %v2431
      %v2435 = vshrl.u32 %v2150, 16
      %v2437 = vrot.slane %v2435, 7
      %v2438 = vshll.u32 %v2150, 16
      %v2440 = vor.u32 %v2437, %v2438
      %v2442 = vshrl.u32 %v2151, 16
      %v2444 = vrot.slane %v2442, 7
      %v2445 = vshll.u32 %v2151, 16
      %v2447 = vor.u32 %v2444, %v2445
      %v2449 = vshrl.u32 %v2152, 16
      %v2451 = vrot.slane %v2449, 7
      %v2452 = vshll.u32 %v2152, 16
      %v2454 = vor.u32 %v2451, %v2452
      %vm2498 = vcmask 1040384
      %vm2499 = vsmask.f32 256
      %vm2500 = vmand %vm2498, %vm2499
      %v2501 = vsel %vm2500, 0, %v2160
      %v2502 = vsel %vm2500, 0, %v2167
      %v2503 = vsel %vm2500, 0, %v2174
      %v2504 = vsel %vm2500, 0, %v2181
      %v2505 = vsel %vm2500, 0, %v2188
      %v2506 = vsel %vm2500, 0, %v2195
      %v2507 = vsel %vm2500, 0, %v2202
      %v2508 = vsel %vm2500, 0, %v2209
      %v2509 = vsel %vm2500, 0, %v2216
      %v2510 = vsel %vm2500, 0, %v2223
      %v2511 = vsel %vm2500, 0, %v2230
      %v2512 = vsel %vm2500, 0, %v2237
      %v2513 = vsel %vm2500, 0, %v2244
      %v2514 = vsel %vm2500, 0, %v2251
      %v2515 = vsel %vm2500, 0, %v2258
      %v2516 = vsel %vm2500, 0, %v2265
      %v2517 = vsel %vm2500, 0, %v2272
      %v2518 = vsel %vm2500, 0, %v2279
      %v2519 = vsel %vm2500, 0, %v2286
      %v2520 = vsel %vm2500, 0, %v2293
      %v2521 = vsel %vm2500, 0, %v2300
      %v2522 = vsel %vm2500, 0, %v2307
      %v2523 = vsel %vm2500, 0, %v2314
      %v2524 = vsel %vm2500, 0, %v2321
      %v2525 = vsel %vm2500, 0, %v2328
      %v2526 = vsel %vm2500, 0, %v2335
      %v2527 = vsel %vm2500, 0, %v2342
      %v2528 = vsel %vm2500, 0, %v2349
      %v2529 = vsel %vm2500, 0, %v2356
      %v2530 = vsel %vm2500, 0, %v2363
      %v2531 = vsel %vm2500, 0, %v2370
      %v2532 = vsel %vm2500, 0, %v2377
      %v2533 = vsel %vm2500, 0, %v2384
      %v2534 = vsel %vm2500, 0, %v2391
      %v2535 = vsel %vm2500, 0, %v2398
      %v2536 = vsel %vm2500, 0, %v2405
      %v2537 = vsel %vm2500, 0, %v2412
      %v2538 = vsel %vm2500, 0, %v2419
      %v2539 = vsel %vm2500, 0, %v2426
      %v2540 = vsel %vm2500, 0, %v2433
      %v2541 = vsel %vm2500, 0, %v2440
      %v2542 = vsel %vm2500, 0, %v2447
      %v2543 = vsel %vm2500, 0, %v2454
      %v2592 = vunpack.c.l.b16 %v2010
      %v2593 = vunpack.c.l.b16 %v2011
      %v2594 = vunpack.c.l.b16 %v2012
      %v2595 = vunpack.c.l.b16 %v2013
      %v2596 = vunpack.c.l.b16 %v2014
      %v2597 = vunpack.c.l.b16 %v2015
      %v2598 = vunpack.c.l.b16 %v2016
      %v2599 = vunpack.c.l.b16 %v2017
      %v2600 = vunpack.c.l.b16 %v2018
      %v2601 = vunpack.c.l.b16 %v2019
      %v2602 = vunpack.c.l.b16 %v2020
      %v2603 = vunpack.c.l.b16 %v2021
      %v2604 = vunpack.c.l.b16 %v2022
      %v2605 = vunpack.c.l.b16 %v2023
      %v2606 = vunpack.c.l.b16 %v2024
      %v2607 = vunpack.c.l.b16 %v2025
      %v2608 = vunpack.c.l.b16 %v2026
      %v2609 = vunpack.c.l.b16 %v2027
      %v2610 = vunpack.c.l.b16 %v2028
      %v2611 = vunpack.c.l.b16 %v2029
      %v2612 = vunpack.c.l.b16 %v2030
      %v2613 = vunpack.c.l.b16 %v2031
      %v2614 = vunpack.c.l.b16 %v2032
      %v2615 = vunpack.c.l.b16 %v2033
      %v2616 = vunpack.c.l.b16 %v2034
      %v2617 = vunpack.c.l.b16 %v2035
      %v2618 = vunpack.c.l.b16 %v2036
      %v2619 = vunpack.c.l.b16 %v2037
      %v2620 = vunpack.c.l.b16 %v2038
      %v2621 = vunpack.c.l.b16 %v2039
      %v2622 = vunpack.c.l.b16 %v2040
      %v2623 = vunpack.c.l.b16 %v2041
      %v2624 = vunpack.c.l.b16 %v2042
      %v2625 = vunpack.c.l.b16 %v2043
      %v2626 = vunpack.c.l.b16 %v2044
      %v2627 = vunpack.c.l.b16 %v2045
      %v2628 = vunpack.c.l.b16 %v2046
      %v2629 = vunpack.c.l.b16 %v2047
      %v2630 = vunpack.c.l.b16 %v2048
      %v2631 = vunpack.c.l.b16 %v2049
      %v2632 = vunpack.c.l.b16 %v2050
      %v2633 = vunpack.c.l.b16 %v2051
      %v2634 = vunpack.c.l.b16 %v2052
      %v2635 = vunpack.c.l.b16 %v2053
      %v2636 = vunpack.c.l.b16 %v2054
      %v2637 = vunpack.c.l.b16 %v2055
      %v2638 = vunpack.c.l.b16 %v2056
      %v2639 = vunpack.c.l.b16 %v2057
      %v2640 = vpack.c.b16 %v2592, %v2592
      %v2641 = vpack.c.b16 %v2593, %v2593
      %v2642 = vpack.c.b16 %v2594, %v2594
      %v2643 = vpack.c.b16 %v2595, %v2595
      %v2644 = vpack.c.b16 %v2596, %v2596
      %v2645 = vpack.c.b16 %v2597, %v2597
      %v2646 = vpack.c.b16 %v2598, %v2598
      %v2647 = vpack.c.b16 %v2599, %v2599
      %v2648 = vpack.c.b16 %v2600, %v2600
      %v2649 = vpack.c.b16 %v2601, %v2601
      %v2650 = vpack.c.b16 %v2602, %v2602
      %v2651 = vpack.c.b16 %v2603, %v2603
      %v2652 = vpack.c.b16 %v2604, %v2604
      %v2653 = vpack.c.b16 %v2605, %v2605
      %v2654 = vpack.c.b16 %v2606, %v2606
      %v2655 = vpack.c.b16 %v2607, %v2607
      %v2656 = vpack.c.b16 %v2608, %v2608
      %v2657 = vpack.c.b16 %v2609, %v2609
      %v2658 = vpack.c.b16 %v2610, %v2610
      %v2659 = vpack.c.b16 %v2611, %v2611
      %v2660 = vpack.c.b16 %v2612, %v2612
      %v2661 = vpack.c.b16 %v2613, %v2613
      %v2662 = vpack.c.b16 %v2614, %v2614
      %v2663 = vpack.c.b16 %v2615, %v2615
      %v2664 = vpack.c.b16 %v2616, %v2616
      %v2665 = vpack.c.b16 %v2617, %v2617
      %v2666 = vpack.c.b16 %v2618, %v2618
      %v2667 = vpack.c.b16 %v2619, %v2619
      %v2668 = vpack.c.b16 %v2620, %v2620
      %v2669 = vpack.c.b16 %v2621, %v2621
      %v2670 = vpack.c.b16 %v2622, %v2622
      %v2671 = vpack.c.b16 %v2623, %v2623
      %v2672 = vpack.c.b16 %v2624, %v2624
      %v2673 = vpack.c.b16 %v2625, %v2625
      %v2674 = vpack.c.b16 %v2626, %v2626
      %v2675 = vpack.c.b16 %v2627, %v2627
      %v2676 = vpack.c.b16 %v2628, %v2628
      %v2677 = vpack.c.b16 %v2629, %v2629
      %v2678 = vpack.c.b16 %v2630, %v2630
      %v2679 = vpack.c.b16 %v2631, %v2631
      %v2680 = vpack.c.b16 %v2632, %v2632
      %v2681 = vpack.c.b16 %v2633, %v2633
      %v2682 = vpack.c.b16 %v2634, %v2634
      %v2683 = vpack.c.b16 %v2635, %v2635
      %v2684 = vpack.c.b16 %v2636, %v2636
      %v2685 = vpack.c.b16 %v2637, %v2637
      %v2686 = vpack.c.b16 %v2638, %v2638
      %v2687 = vpack.c.b16 %v2639, %v2639
      %v2689 = vshrl.u32 %v2640, 16
      %v2691 = vrot.slane %v2689, 7
      %v2692 = vshll.u32 %v2640, 16
      %v2694 = vor.u32 %v2691, %v2692
      %v2696 = vshrl.u32 %v2641, 16
      %v2698 = vrot.slane %v2696, 7
      %v2699 = vshll.u32 %v2641, 16
      %v2701 = vor.u32 %v2698, %v2699
      %v2703 = vshrl.u32 %v2642, 16
      %v2705 = vrot.slane %v2703, 7
      %v2706 = vshll.u32 %v2642, 16
      %v2708 = vor.u32 %v2705, %v2706
      %v2710 = vshrl.u32 %v2643, 16
      %v2712 = vrot.slane %v2710, 7
      %v2713 = vshll.u32 %v2643, 16
      %v2715 = vor.u32 %v2712, %v2713
      %v2717 = vshrl.u32 %v2644, 16
      %v2719 = vrot.slane %v2717, 7
      %v2720 = vshll.u32 %v2644, 16
      %v2722 = vor.u32 %v2719, %v2720
      %v2724 = vshrl.u32 %v2645, 16
      %v2726 = vrot.slane %v2724, 7
      %v2727 = vshll.u32 %v2645, 16
      %v2729 = vor.u32 %v2726, %v2727
      %v2731 = vshrl.u32 %v2646, 16
      %v2733 = vrot.slane %v2731, 7
      %v2734 = vshll.u32 %v2646, 16
      %v2736 = vor.u32 %v2733, %v2734
      %v2738 = vshrl.u32 %v2647, 16
      %v2740 = vrot.slane %v2738, 7
      %v2741 = vshll.u32 %v2647, 16
      %v2743 = vor.u32 %v2740, %v2741
      %v2745 = vshrl.u32 %v2648, 16
      %v2747 = vrot.slane %v2745, 7
      %v2748 = vshll.u32 %v2648, 16
      %v2750 = vor.u32 %v2747, %v2748
      %v2752 = vshrl.u32 %v2649, 16
      %v2754 = vrot.slane %v2752, 7
      %v2755 = vshll.u32 %v2649, 16
      %v2757 = vor.u32 %v2754, %v2755
      %v2759 = vshrl.u32 %v2650, 16
      %v2761 = vrot.slane %v2759, 7
      %v2762 = vshll.u32 %v2650, 16
      %v2764 = vor.u32 %v2761, %v2762
      %v2766 = vshrl.u32 %v2651, 16
      %v2768 = vrot.slane %v2766, 7
      %v2769 = vshll.u32 %v2651, 16
      %v2771 = vor.u32 %v2768, %v2769
      %v2773 = vshrl.u32 %v2652, 16
      %v2775 = vrot.slane %v2773, 7
      %v2776 = vshll.u32 %v2652, 16
      %v2778 = vor.u32 %v2775, %v2776
      %v2780 = vshrl.u32 %v2653, 16
      %v2782 = vrot.slane %v2780, 7
      %v2783 = vshll.u32 %v2653, 16
      %v2785 = vor.u32 %v2782, %v2783
      %v2787 = vshrl.u32 %v2654, 16
      %v2789 = vrot.slane %v2787, 7
      %v2790 = vshll.u32 %v2654, 16
      %v2792 = vor.u32 %v2789, %v2790
      %v2794 = vshrl.u32 %v2655, 16
      %v2796 = vrot.slane %v2794, 7
      %v2797 = vshll.u32 %v2655, 16
      %v2799 = vor.u32 %v2796, %v2797
      %v2801 = vshrl.u32 %v2656, 16
      %v2803 = vrot.slane %v2801, 7
      %v2804 = vshll.u32 %v2656, 16
      %v2806 = vor.u32 %v2803, %v2804
      %v2808 = vshrl.u32 %v2657, 16
      %v2810 = vrot.slane %v2808, 7
      %v2811 = vshll.u32 %v2657, 16
      %v2813 = vor.u32 %v2810, %v2811
      %v2815 = vshrl.u32 %v2658, 16
      %v2817 = vrot.slane %v2815, 7
      %v2818 = vshll.u32 %v2658, 16
      %v2820 = vor.u32 %v2817, %v2818
      %v2822 = vshrl.u32 %v2659, 16
      %v2824 = vrot.slane %v2822, 7
      %v2825 = vshll.u32 %v2659, 16
      %v2827 = vor.u32 %v2824, %v2825
      %v2829 = vshrl.u32 %v2660, 16
      %v2831 = vrot.slane %v2829, 7
      %v2832 = vshll.u32 %v2660, 16
      %v2834 = vor.u32 %v2831, %v2832
      %v2836 = vshrl.u32 %v2661, 16
      %v2838 = vrot.slane %v2836, 7
      %v2839 = vshll.u32 %v2661, 16
      %v2841 = vor.u32 %v2838, %v2839
      %v2843 = vshrl.u32 %v2662, 16
      %v2845 = vrot.slane %v2843, 7
      %v2846 = vshll.u32 %v2662, 16
      %v2848 = vor.u32 %v2845, %v2846
      %v2850 = vshrl.u32 %v2663, 16
      %v2852 = vrot.slane %v2850, 7
      %v2853 = vshll.u32 %v2663, 16
      %v2855 = vor.u32 %v2852, %v2853
      %v2857 = vshrl.u32 %v2664, 16
      %v2859 = vrot.slane %v2857, 7
      %v2860 = vshll.u32 %v2664, 16
      %v2862 = vor.u32 %v2859, %v2860
      %v2864 = vshrl.u32 %v2665, 16
      %v2866 = vrot.slane %v2864, 7
      %v2867 = vshll.u32 %v2665, 16
      %v2869 = vor.u32 %v2866, %v2867
      %v2871 = vshrl.u32 %v2666, 16
      %v2873 = vrot.slane %v2871, 7
      %v2874 = vshll.u32 %v2666, 16
      %v2876 = vor.u32 %v2873, %v2874
      %v2878 = vshrl.u32 %v2667, 16
      %v2880 = vrot.slane %v2878, 7
      %v2881 = vshll.u32 %v2667, 16
      %v2883 = vor.u32 %v2880, %v2881
      %v2885 = vshrl.u32 %v2668, 16
      %v2887 = vrot.slane %v2885, 7
      %v2888 = vshll.u32 %v2668, 16
      %v2890 = vor.u32 %v2887, %v2888
      %v2892 = vshrl.u32 %v2669, 16
      %v2894 = vrot.slane %v2892, 7
      %v2895 = vshll.u32 %v2669, 16
      %v2897 = vor.u32 %v2894, %v2895
      %v2899 = vshrl.u32 %v2670, 16
      %v2901 = vrot.slane %v2899, 7
      %v2902 = vshll.u32 %v2670, 16
      %v2904 = vor.u32 %v2901, %v2902
      %v2906 = vshrl.u32 %v2671, 16
      %v2908 = vrot.slane %v2906, 7
      %v2909 = vshll.u32 %v2671, 16
      %v2911 = vor.u32 %v2908, %v2909
      %v2913 = vshrl.u32 %v2672, 16
      %v2915 = vrot.slane %v2913, 7
      %v2916 = vshll.u32 %v2672, 16
      %v2918 = vor.u32 %v2915, %v2916
      %v2920 = vshrl.u32 %v2673, 16
      %v2922 = vrot.slane %v2920, 7
      %v2923 = vshll.u32 %v2673, 16
      %v2925 = vor.u32 %v2922, %v2923
      %v2927 = vshrl.u32 %v2674, 16
      %v2929 = vrot.slane %v2927, 7
      %v2930 = vshll.u32 %v2674, 16
      %v2932 = vor.u32 %v2929, %v2930
      %v2934 = vshrl.u32 %v2675, 16
      %v2936 = vrot.slane %v2934, 7
      %v2937 = vshll.u32 %v2675, 16
      %v2939 = vor.u32 %v2936, %v2937
      %v2941 = vshrl.u32 %v2676, 16
      %v2943 = vrot.slane %v2941, 7
      %v2944 = vshll.u32 %v2676, 16
      %v2946 = vor.u32 %v2943, %v2944
      %v2948 = vshrl.u32 %v2677, 16
      %v2950 = vrot.slane %v2948, 7
      %v2951 = vshll.u32 %v2677, 16
      %v2953 = vor.u32 %v2950, %v2951
      %v2955 = vshrl.u32 %v2678, 16
      %v2957 = vrot.slane %v2955, 7
      %v2958 = vshll.u32 %v2678, 16
      %v2960 = vor.u32 %v2957, %v2958
      %v2962 = vshrl.u32 %v2679, 16
      %v2964 = vrot.slane %v2962, 7
      %v2965 = vshll.u32 %v2679, 16
      %v2967 = vor.u32 %v2964, %v2965
      %v2969 = vshrl.u32 %v2680, 16
      %v2971 = vrot.slane %v2969, 7
      %v2972 = vshll.u32 %v2680, 16
      %v2974 = vor.u32 %v2971, %v2972
      %v2976 = vshrl.u32 %v2681, 16
      %v2978 = vrot.slane %v2976, 7
      %v2979 = vshll.u32 %v2681, 16
      %v2981 = vor.u32 %v2978, %v2979
      %v2983 = vshrl.u32 %v2682, 16
      %v2985 = vrot.slane %v2983, 7
      %v2986 = vshll.u32 %v2682, 16
      %v2988 = vor.u32 %v2985, %v2986
      %v2990 = vshrl.u32 %v2683, 16
      %v2992 = vrot.slane %v2990, 7
      %v2993 = vshll.u32 %v2683, 16
      %v2995 = vor.u32 %v2992, %v2993
      %v2997 = vshrl.u32 %v2684, 16
      %v2999 = vrot.slane %v2997, 7
      %v3000 = vshll.u32 %v2684, 16
      %v3002 = vor.u32 %v2999, %v3000
      %v3004 = vshrl.u32 %v2685, 16
      %v3006 = vrot.slane %v3004, 7
      %v3007 = vshll.u32 %v2685, 16
      %v3009 = vor.u32 %v3006, %v3007
      %v3011 = vshrl.u32 %v2686, 16
      %v3013 = vrot.slane %v3011, 7
      %v3014 = vshll.u32 %v2686, 16
      %v3016 = vor.u32 %v3013, %v3014
      %v3018 = vshrl.u32 %v2687, 16
      %v3020 = vrot.slane %v3018, 7
      %v3021 = vshll.u32 %v2687, 16
      %v3023 = vor.u32 %v3020, %v3021
      %v3072 = vsel %vm2500, 0, %v2694
      %v3073 = vsel %vm2500, 0, %v2701
      %v3074 = vsel %vm2500, 0, %v2708
      %v3075 = vsel %vm2500, 0, %v2715
      %v3076 = vsel %vm2500, 0, %v2722
      %v3077 = vsel %vm2500, 0, %v2729
      %v3078 = vsel %vm2500, 0, %v2736
      %v3079 = vsel %vm2500, 0, %v2743
      %v3080 = vsel %vm2500, 0, %v2750
      %v3081 = vsel %vm2500, 0, %v2757
      %v3082 = vsel %vm2500, 0, %v2764
      %v3083 = vsel %vm2500, 0, %v2771
      %v3084 = vsel %vm2500, 0, %v2778
      %v3085 = vsel %vm2500, 0, %v2785
      %v3086 = vsel %vm2500, 0, %v2792
      %v3087 = vsel %vm2500, 0, %v2799
      %v3088 = vsel %vm2500, 0, %v2806
      %v3089 = vsel %vm2500, 0, %v2813
      %v3090 = vsel %vm2500, 0, %v2820
      %v3091 = vsel %vm2500, 0, %v2827
      %v3092 = vsel %vm2500, 0, %v2834
      %v3093 = vsel %vm2500, 0, %v2841
      %v3094 = vsel %vm2500, 0, %v2848
      %v3095 = vsel %vm2500, 0, %v2855
      %v3096 = vsel %vm2500, 0, %v2862
      %v3097 = vsel %vm2500, 0, %v2869
      %v3098 = vsel %vm2500, 0, %v2876
      %v3099 = vsel %vm2500, 0, %v2883
      %v3100 = vsel %vm2500, 0, %v2890
      %v3101 = vsel %vm2500, 0, %v2897
      %v3102 = vsel %vm2500, 0, %v2904
      %v3103 = vsel %vm2500, 0, %v2911
      %v3104 = vsel %vm2500, 0, %v2918
      %v3105 = vsel %vm2500, 0, %v2925
      %v3106 = vsel %vm2500, 0, %v2932
      %v3107 = vsel %vm2500, 0, %v2939
      %v3108 = vsel %vm2500, 0, %v2946
      %v3109 = vsel %vm2500, 0, %v2953
      %v3110 = vsel %vm2500, 0, %v2960
      %v3111 = vsel %vm2500, 0, %v2967
      %v3112 = vsel %vm2500, 0, %v2974
      %v3113 = vsel %vm2500, 0, %v2981
      %v3114 = vsel %vm2500, 0, %v2988
      %v3115 = vsel %vm2500, 0, %v2995
      %v3116 = vsel %vm2500, 0, %v3002
      %v3117 = vsel %vm2500, 0, %v3009
      %v3118 = vsel %vm2500, 0, %v3016
      %v3119 = vsel %vm2500, 0, %v3023
      %v3168 = vunpack.c.l.b16 %v2106
      %v3169 = vunpack.c.l.b16 %v2107
      %v3170 = vunpack.c.l.b16 %v2108
      %v3171 = vunpack.c.l.b16 %v2109
      %v3172 = vunpack.c.l.b16 %v2110
      %v3173 = vunpack.c.l.b16 %v2111
      %v3174 = vunpack.c.l.b16 %v2112
      %v3175 = vunpack.c.l.b16 %v2113
      %v3176 = vunpack.c.l.b16 %v2114
      %v3177 = vunpack.c.l.b16 %v2115
      %v3178 = vunpack.c.l.b16 %v2116
      %v3179 = vunpack.c.l.b16 %v2117
      %v3180 = vunpack.c.l.b16 %v2118
      %v3181 = vunpack.c.l.b16 %v2119
      %v3182 = vunpack.c.l.b16 %v2120
      %v3183 = vunpack.c.l.b16 %v2121
      %v3184 = vunpack.c.l.b16 %v2122
      %v3185 = vunpack.c.l.b16 %v2123
      %v3186 = vunpack.c.l.b16 %v2124
      %v3187 = vunpack.c.l.b16 %v2125
      %v3188 = vunpack.c.l.b16 %v2126
      %v3189 = vunpack.c.l.b16 %v2127
      %v3190 = vunpack.c.l.b16 %v2128
      %v3191 = vunpack.c.l.b16 %v2129
      %v3192 = vunpack.c.l.b16 %v2130
      %v3193 = vunpack.c.l.b16 %v2131
      %v3194 = vunpack.c.l.b16 %v2132
      %v3195 = vunpack.c.l.b16 %v2133
      %v3196 = vunpack.c.l.b16 %v2134
      %v3197 = vunpack.c.l.b16 %v2135
      %v3198 = vunpack.c.l.b16 %v2136
      %v3199 = vunpack.c.l.b16 %v2137
      %v3200 = vunpack.c.l.b16 %v2138
      %v3201 = vunpack.c.l.b16 %v2139
      %v3202 = vunpack.c.l.b16 %v2140
      %v3203 = vunpack.c.l.b16 %v2141
      %v3204 = vunpack.c.l.b16 %v2142
      %v3205 = vunpack.c.l.b16 %v2143
      %v3206 = vunpack.c.l.b16 %v2144
      %v3207 = vunpack.c.l.b16 %v2145
      %v3208 = vunpack.c.l.b16 %v2146
      %v3209 = vunpack.c.l.b16 %v2147
      %v3210 = vunpack.c.l.b16 %v2148
      %v3211 = vunpack.c.l.b16 %v2149
      %v3212 = vunpack.c.l.b16 %v2150
      %v3213 = vunpack.c.l.b16 %v2151
      %v3214 = vunpack.c.l.b16 %v2152
      %v3215 = vunpack.c.l.b16 %v2153
      %v3216 = vpack.c.b16 %v3168, %v3168
      %v3217 = vpack.c.b16 %v3169, %v3169
      %v3218 = vpack.c.b16 %v3170, %v3170
      %v3219 = vpack.c.b16 %v3171, %v3171
      %v3220 = vpack.c.b16 %v3172, %v3172
      %v3221 = vpack.c.b16 %v3173, %v3173
      %v3222 = vpack.c.b16 %v3174, %v3174
      %v3223 = vpack.c.b16 %v3175, %v3175
      %v3224 = vpack.c.b16 %v3176, %v3176
      %v3225 = vpack.c.b16 %v3177, %v3177
      %v3226 = vpack.c.b16 %v3178, %v3178
      %v3227 = vpack.c.b16 %v3179, %v3179
      %v3228 = vpack.c.b16 %v3180, %v3180
      %v3229 = vpack.c.b16 %v3181, %v3181
      %v3230 = vpack.c.b16 %v3182, %v3182
      %v3231 = vpack.c.b16 %v3183, %v3183
      %v3232 = vpack.c.b16 %v3184, %v3184
      %v3233 = vpack.c.b16 %v3185, %v3185
      %v3234 = vpack.c.b16 %v3186, %v3186
      %v3235 = vpack.c.b16 %v3187, %v3187
      %v3236 = vpack.c.b16 %v3188, %v3188
      %v3237 = vpack.c.b16 %v3189, %v3189
      %v3238 = vpack.c.b16 %v3190, %v3190
      %v3239 = vpack.c.b16 %v3191, %v3191
      %v3240 = vpack.c.b16 %v3192, %v3192
      %v3241 = vpack.c.b16 %v3193, %v3193
      %v3242 = vpack.c.b16 %v3194, %v3194
      %v3243 = vpack.c.b16 %v3195, %v3195
      %v3244 = vpack.c.b16 %v3196, %v3196
      %v3245 = vpack.c.b16 %v3197, %v3197
      %v3246 = vpack.c.b16 %v3198, %v3198
      %v3247 = vpack.c.b16 %v3199, %v3199
      %v3248 = vpack.c.b16 %v3200, %v3200
      %v3249 = vpack.c.b16 %v3201, %v3201
      %v3250 = vpack.c.b16 %v3202, %v3202
      %v3251 = vpack.c.b16 %v3203, %v3203
      %v3252 = vpack.c.b16 %v3204, %v3204
      %v3253 = vpack.c.b16 %v3205, %v3205
      %v3254 = vpack.c.b16 %v3206, %v3206
      %v3255 = vpack.c.b16 %v3207, %v3207
      %v3256 = vpack.c.b16 %v3208, %v3208
      %v3257 = vpack.c.b16 %v3209, %v3209
      %v3258 = vpack.c.b16 %v3210, %v3210
      %v3259 = vpack.c.b16 %v3211, %v3211
      %v3260 = vpack.c.b16 %v3212, %v3212
      %v3261 = vpack.c.b16 %v3213, %v3213
      %v3262 = vpack.c.b16 %v3214, %v3214
      %v3263 = vpack.c.b16 %v3215, %v3215
      %v3265 = vshrl.u32 %v3216, 16
      %v3267 = vrot.slane %v3265, 7
      %v3268 = vshll.u32 %v3216, 16
      %v3270 = vor.u32 %v3267, %v3268
      %v3272 = vshrl.u32 %v3217, 16
      %v3274 = vrot.slane %v3272, 7
      %v3275 = vshll.u32 %v3217, 16
      %v3277 = vor.u32 %v3274, %v3275
      %v3279 = vshrl.u32 %v3218, 16
      %v3281 = vrot.slane %v3279, 7
      %v3282 = vshll.u32 %v3218, 16
      %v3284 = vor.u32 %v3281, %v3282
      %v3286 = vshrl.u32 %v3219, 16
      %v3288 = vrot.slane %v3286, 7
      %v3289 = vshll.u32 %v3219, 16
      %v3291 = vor.u32 %v3288, %v3289
      %v3293 = vshrl.u32 %v3220, 16
      %v3295 = vrot.slane %v3293, 7
      %v3296 = vshll.u32 %v3220, 16
      %v3298 = vor.u32 %v3295, %v3296
      %v3300 = vshrl.u32 %v3221, 16
      %v3302 = vrot.slane %v3300, 7
      %v3303 = vshll.u32 %v3221, 16
      %v3305 = vor.u32 %v3302, %v3303
      %v3307 = vshrl.u32 %v3222, 16
      %v3309 = vrot.slane %v3307, 7
      %v3310 = vshll.u32 %v3222, 16
      %v3312 = vor.u32 %v3309, %v3310
      %v3314 = vshrl.u32 %v3223, 16
      %v3316 = vrot.slane %v3314, 7
      %v3317 = vshll.u32 %v3223, 16
      %v3319 = vor.u32 %v3316, %v3317
      %v3321 = vshrl.u32 %v3224, 16
      %v3323 = vrot.slane %v3321, 7
      %v3324 = vshll.u32 %v3224, 16
      %v3326 = vor.u32 %v3323, %v3324
      %v3328 = vshrl.u32 %v3225, 16
      %v3330 = vrot.slane %v3328, 7
      %v3331 = vshll.u32 %v3225, 16
      %v3333 = vor.u32 %v3330, %v3331
      %v3335 = vshrl.u32 %v3226, 16
      %v3337 = vrot.slane %v3335, 7
      %v3338 = vshll.u32 %v3226, 16
      %v3340 = vor.u32 %v3337, %v3338
      %v3342 = vshrl.u32 %v3227, 16
      %v3344 = vrot.slane %v3342, 7
      %v3345 = vshll.u32 %v3227, 16
      %v3347 = vor.u32 %v3344, %v3345
      %v3349 = vshrl.u32 %v3228, 16
      %v3351 = vrot.slane %v3349, 7
      %v3352 = vshll.u32 %v3228, 16
      %v3354 = vor.u32 %v3351, %v3352
      %v3356 = vshrl.u32 %v3229, 16
      %v3358 = vrot.slane %v3356, 7
      %v3359 = vshll.u32 %v3229, 16
      %v3361 = vor.u32 %v3358, %v3359
      %v3363 = vshrl.u32 %v3230, 16
      %v3365 = vrot.slane %v3363, 7
      %v3366 = vshll.u32 %v3230, 16
      %v3368 = vor.u32 %v3365, %v3366
      %v3370 = vshrl.u32 %v3231, 16
      %v3372 = vrot.slane %v3370, 7
      %v3373 = vshll.u32 %v3231, 16
      %v3375 = vor.u32 %v3372, %v3373
      %v3377 = vshrl.u32 %v3232, 16
      %v3379 = vrot.slane %v3377, 7
      %v3380 = vshll.u32 %v3232, 16
      %v3382 = vor.u32 %v3379, %v3380
      %v3384 = vshrl.u32 %v3233, 16
      %v3386 = vrot.slane %v3384, 7
      %v3387 = vshll.u32 %v3233, 16
      %v3389 = vor.u32 %v3386, %v3387
      %v3391 = vshrl.u32 %v3234, 16
      %v3393 = vrot.slane %v3391, 7
      %v3394 = vshll.u32 %v3234, 16
      %v3396 = vor.u32 %v3393, %v3394
      %v3398 = vshrl.u32 %v3235, 16
      %v3400 = vrot.slane %v3398, 7
      %v3401 = vshll.u32 %v3235, 16
      %v3403 = vor.u32 %v3400, %v3401
      %v3405 = vshrl.u32 %v3236, 16
      %v3407 = vrot.slane %v3405, 7
      %v3408 = vshll.u32 %v3236, 16
      %v3410 = vor.u32 %v3407, %v3408
      %v3412 = vshrl.u32 %v3237, 16
      %v3414 = vrot.slane %v3412, 7
      %v3415 = vshll.u32 %v3237, 16
      %v3417 = vor.u32 %v3414, %v3415
      %v3419 = vshrl.u32 %v3238, 16
      %v3421 = vrot.slane %v3419, 7
      %v3422 = vshll.u32 %v3238, 16
      %v3424 = vor.u32 %v3421, %v3422
      %v3426 = vshrl.u32 %v3239, 16
      %v3428 = vrot.slane %v3426, 7
      %v3429 = vshll.u32 %v3239, 16
      %v3431 = vor.u32 %v3428, %v3429
      %v3433 = vshrl.u32 %v3240, 16
      %v3435 = vrot.slane %v3433, 7
      %v3436 = vshll.u32 %v3240, 16
      %v3438 = vor.u32 %v3435, %v3436
      %v3440 = vshrl.u32 %v3241, 16
      %v3442 = vrot.slane %v3440, 7
      %v3443 = vshll.u32 %v3241, 16
      %v3445 = vor.u32 %v3442, %v3443
      %v3447 = vshrl.u32 %v3242, 16
      %v3449 = vrot.slane %v3447, 7
      %v3450 = vshll.u32 %v3242, 16
      %v3452 = vor.u32 %v3449, %v3450
      %v3454 = vshrl.u32 %v3243, 16
      %v3456 = vrot.slane %v3454, 7
      %v3457 = vshll.u32 %v3243, 16
      %v3459 = vor.u32 %v3456, %v3457
      %v3461 = vshrl.u32 %v3244, 16
      %v3463 = vrot.slane %v3461, 7
      %v3464 = vshll.u32 %v3244, 16
      %v3466 = vor.u32 %v3463, %v3464
      %v3468 = vshrl.u32 %v3245, 16
      %v3470 = vrot.slane %v3468, 7
      %v3471 = vshll.u32 %v3245, 16
      %v3473 = vor.u32 %v3470, %v3471
      %v3475 = vshrl.u32 %v3246, 16
      %v3477 = vrot.slane %v3475, 7
      %v3478 = vshll.u32 %v3246, 16
      %v3480 = vor.u32 %v3477, %v3478
      %v3482 = vshrl.u32 %v3247, 16
      %v3484 = vrot.slane %v3482, 7
      %v3485 = vshll.u32 %v3247, 16
      %v3487 = vor.u32 %v3484, %v3485
      %v3489 = vshrl.u32 %v3248, 16
      %v3491 = vrot.slane %v3489, 7
      %v3492 = vshll.u32 %v3248, 16
      %v3494 = vor.u32 %v3491, %v3492
      %v3496 = vshrl.u32 %v3249, 16
      %v3498 = vrot.slane %v3496, 7
      %v3499 = vshll.u32 %v3249, 16
      %v3501 = vor.u32 %v3498, %v3499
      %v3503 = vshrl.u32 %v3250, 16
      %v3505 = vrot.slane %v3503, 7
      %v3506 = vshll.u32 %v3250, 16
      %v3508 = vor.u32 %v3505, %v3506
      %v3510 = vshrl.u32 %v3251, 16
      %v3512 = vrot.slane %v3510, 7
      %v3513 = vshll.u32 %v3251, 16
      %v3515 = vor.u32 %v3512, %v3513
      %v3517 = vshrl.u32 %v3252, 16
      %v3519 = vrot.slane %v3517, 7
      %v3520 = vshll.u32 %v3252, 16
      %v3522 = vor.u32 %v3519, %v3520
      %v3524 = vshrl.u32 %v3253, 16
      %v3526 = vrot.slane %v3524, 7
      %v3527 = vshll.u32 %v3253, 16
      %v3529 = vor.u32 %v3526, %v3527
      %v3531 = vshrl.u32 %v3254, 16
      %v3533 = vrot.slane %v3531, 7
      %v3534 = vshll.u32 %v3254, 16
      %v3536 = vor.u32 %v3533, %v3534
      %v3538 = vshrl.u32 %v3255, 16
      %v3540 = vrot.slane %v3538, 7
      %v3541 = vshll.u32 %v3255, 16
      %v3543 = vor.u32 %v3540, %v3541
      %v3545 = vshrl.u32 %v3256, 16
      %v3547 = vrot.slane %v3545, 7
      %v3548 = vshll.u32 %v3256, 16
      %v3550 = vor.u32 %v3547, %v3548
      %v3552 = vshrl.u32 %v3257, 16
      %v3554 = vrot.slane %v3552, 7
      %v3555 = vshll.u32 %v3257, 16
      %v3557 = vor.u32 %v3554, %v3555
      %v3559 = vshrl.u32 %v3258, 16
      %v3561 = vrot.slane %v3559, 7
      %v3562 = vshll.u32 %v3258, 16
      %v3564 = vor.u32 %v3561, %v3562
      %v3566 = vshrl.u32 %v3259, 16
      %v3568 = vrot.slane %v3566, 7
      %v3569 = vshll.u32 %v3259, 16
      %v3571 = vor.u32 %v3568, %v3569
      %v3573 = vshrl.u32 %v3260, 16
      %v3575 = vrot.slane %v3573, 7
      %v3576 = vshll.u32 %v3260, 16
      %v3578 = vor.u32 %v3575, %v3576
      %v3580 = vshrl.u32 %v3261, 16
      %v3582 = vrot.slane %v3580, 7
      %v3583 = vshll.u32 %v3261, 16
      %v3585 = vor.u32 %v3582, %v3583
      %v3587 = vshrl.u32 %v3262, 16
      %v3589 = vrot.slane %v3587, 7
      %v3590 = vshll.u32 %v3262, 16
      %v3592 = vor.u32 %v3589, %v3590
      %v3594 = vshrl.u32 %v3263, 16
      %v3596 = vrot.slane %v3594, 7
      %v3597 = vshll.u32 %v3263, 16
      %v3599 = vor.u32 %v3596, %v3597
      %v3648 = vsel %vm2500, 0, %v3270
      %v3649 = vsel %vm2500, 0, %v3277
      %v3650 = vsel %vm2500, 0, %v3284
      %v3651 = vsel %vm2500, 0, %v3291
      %v3652 = vsel %vm2500, 0, %v3298
      %v3653 = vsel %vm2500, 0, %v3305
      %v3654 = vsel %vm2500, 0, %v3312
      %v3655 = vsel %vm2500, 0, %v3319
      %v3656 = vsel %vm2500, 0, %v3326
      %v3657 = vsel %vm2500, 0, %v3333
      %v3658 = vsel %vm2500, 0, %v3340
      %v3659 = vsel %vm2500, 0, %v3347
      %v3660 = vsel %vm2500, 0, %v3354
      %v3661 = vsel %vm2500, 0, %v3361
      %v3662 = vsel %vm2500, 0, %v3368
      %v3663 = vsel %vm2500, 0, %v3375
      %v3664 = vsel %vm2500, 0, %v3382
      %v3665 = vsel %vm2500, 0, %v3389
      %v3666 = vsel %vm2500, 0, %v3396
      %v3667 = vsel %vm2500, 0, %v3403
      %v3668 = vsel %vm2500, 0, %v3410
      %v3669 = vsel %vm2500, 0, %v3417
      %v3670 = vsel %vm2500, 0, %v3424
      %v3671 = vsel %vm2500, 0, %v3431
      %v3672 = vsel %vm2500, 0, %v3438
      %v3673 = vsel %vm2500, 0, %v3445
      %v3674 = vsel %vm2500, 0, %v3452
      %v3675 = vsel %vm2500, 0, %v3459
      %v3676 = vsel %vm2500, 0, %v3466
      %v3677 = vsel %vm2500, 0, %v3473
      %v3678 = vsel %vm2500, 0, %v3480
      %v3679 = vsel %vm2500, 0, %v3487
      %v3680 = vsel %vm2500, 0, %v3494
      %v3681 = vsel %vm2500, 0, %v3501
      %v3682 = vsel %vm2500, 0, %v3508
      %v3683 = vsel %vm2500, 0, %v3515
      %v3684 = vsel %vm2500, 0, %v3522
      %v3685 = vsel %vm2500, 0, %v3529
      %v3686 = vsel %vm2500, 0, %v3536
      %v3687 = vsel %vm2500, 0, %v3543
      %v3688 = vsel %vm2500, 0, %v3550
      %v3689 = vsel %vm2500, 0, %v3557
      %v3690 = vsel %vm2500, 0, %v3564
      %v3691 = vsel %vm2500, 0, %v3571
      %v3692 = vsel %vm2500, 0, %v3578
      %v3693 = vsel %vm2500, 0, %v3585
      %v3694 = vsel %vm2500, 0, %v3592
      %v3695 = vsel %vm2500, 0, %v3599
      %3739 = vrot.lane.b32.xlu0 0, 16
      %v3740 = vpop.permute.xlu0 %3739
      %3741 = vrot.lane.b32.xlu0 %v2058, 16
      %v3742 = vpop.permute.xlu0 %3741
      %3743 = vrot.lane.b32.xlu0 %v2059, 16
      %v3744 = vpop.permute.xlu0 %3743
      %3745 = vrot.lane.b32.xlu0 %v2060, 16
      %v3746 = vpop.permute.xlu0 %3745
      %3747 = vrot.lane.b32.xlu0 %v2061, 16
      %v3748 = vpop.permute.xlu0 %3747
      %3749 = vrot.lane.b32.xlu0 %v2062, 16
      %v3750 = vpop.permute.xlu0 %3749
      %3751 = vrot.lane.b32.xlu0 %v2063, 16
      %v3752 = vpop.permute.xlu0 %3751
      %3753 = vrot.lane.b32.xlu0 %v2064, 16
      %v3754 = vpop.permute.xlu0 %3753
      %3755 = vrot.lane.b32.xlu0 %v2066, 16
      %v3756 = vpop.permute.xlu0 %3755
      %3757 = vrot.lane.b32.xlu0 %v2067, 16
      %v3758 = vpop.permute.xlu0 %3757
      %3759 = vrot.lane.b32.xlu0 %v2068, 16
      %v3760 = vpop.permute.xlu0 %3759
      %3761 = vrot.lane.b32.xlu0 %v2069, 16
      %v3762 = vpop.permute.xlu0 %3761
      %3763 = vrot.lane.b32.xlu0 %v2070, 16
      %v3764 = vpop.permute.xlu0 %3763
      %3765 = vrot.lane.b32.xlu0 %v2071, 16
      %v3766 = vpop.permute.xlu0 %3765
      %3767 = vrot.lane.b32.xlu0 %v2072, 16
      %v3768 = vpop.permute.xlu0 %3767
      %3769 = vrot.lane.b32.xlu0 %v2074, 16
      %v3770 = vpop.permute.xlu0 %3769
      %3771 = vrot.lane.b32.xlu0 %v2075, 16
      %v3772 = vpop.permute.xlu0 %3771
      %3773 = vrot.lane.b32.xlu0 %v2076, 16
      %v3774 = vpop.permute.xlu0 %3773
      %3775 = vrot.lane.b32.xlu0 %v2077, 16
      %v3776 = vpop.permute.xlu0 %3775
      %3777 = vrot.lane.b32.xlu0 %v2078, 16
      %v3778 = vpop.permute.xlu0 %3777
      %3779 = vrot.lane.b32.xlu0 %v2079, 16
      %v3780 = vpop.permute.xlu0 %3779
      %3781 = vrot.lane.b32.xlu0 %v2080, 16
      %v3782 = vpop.permute.xlu0 %3781
      %3783 = vrot.lane.b32.xlu0 %v2082, 16
      %v3784 = vpop.permute.xlu0 %3783
      %3785 = vrot.lane.b32.xlu0 %v2083, 16
      %v3786 = vpop.permute.xlu0 %3785
      %3787 = vrot.lane.b32.xlu0 %v2084, 16
      %v3788 = vpop.permute.xlu0 %3787
      %3789 = vrot.lane.b32.xlu0 %v2085, 16
      %v3790 = vpop.permute.xlu0 %3789
      %3791 = vrot.lane.b32.xlu0 %v2086, 16
      %v3792 = vpop.permute.xlu0 %3791
      %3793 = vrot.lane.b32.xlu0 %v2087, 16
      %v3794 = vpop.permute.xlu0 %3793
      %3795 = vrot.lane.b32.xlu0 %v2088, 16
      %v3796 = vpop.permute.xlu0 %3795
      %3797 = vrot.lane.b32.xlu0 %v2090, 16
      %v3798 = vpop.permute.xlu0 %3797
      %3799 = vrot.lane.b32.xlu0 %v2091, 16
      %v3800 = vpop.permute.xlu0 %3799
      %3801 = vrot.lane.b32.xlu0 %v2092, 16
      %v3802 = vpop.permute.xlu0 %3801
      %3803 = vrot.lane.b32.xlu0 %v2093, 16
      %v3804 = vpop.permute.xlu0 %3803
      %3805 = vrot.lane.b32.xlu0 %v2094, 16
      %v3806 = vpop.permute.xlu0 %3805
      %3807 = vrot.lane.b32.xlu0 %v2095, 16
      %v3808 = vpop.permute.xlu0 %3807
      %3809 = vrot.lane.b32.xlu0 %v2096, 16
      %v3810 = vpop.permute.xlu0 %3809
      %3811 = vrot.lane.b32.xlu0 %v2098, 16
      %v3812 = vpop.permute.xlu0 %3811
      %3813 = vrot.lane.b32.xlu0 %v2099, 16
      %v3814 = vpop.permute.xlu0 %3813
      %3815 = vrot.lane.b32.xlu0 %v2100, 16
      %v3816 = vpop.permute.xlu0 %3815
      %3817 = vrot.lane.b32.xlu0 %v2101, 16
      %v3818 = vpop.permute.xlu0 %3817
      %3819 = vrot.lane.b32.xlu0 %v2102, 16
      %v3820 = vpop.permute.xlu0 %3819
      %3821 = vrot.lane.b32.xlu0 %v2103, 16
      %v3822 = vpop.permute.xlu0 %3821
      %3823 = vrot.lane.b32.xlu0 %v2104, 16
      %v3824 = vpop.permute.xlu0 %3823
      %3825 = vrot.lane.b32.xlu0 0, 32
      %v3826 = vpop.permute.xlu0 %3825
      %3827 = vrot.lane.b32.xlu0 %v2106, 32
      %v3828 = vpop.permute.xlu0 %3827
      %3829 = vrot.lane.b32.xlu0 %v2107, 32
      %v3830 = vpop.permute.xlu0 %3829
      %3831 = vrot.lane.b32.xlu0 %v2108, 32
      %v3832 = vpop.permute.xlu0 %3831
      %3833 = vrot.lane.b32.xlu0 %v2109, 32
      %v3834 = vpop.permute.xlu0 %3833
      %3835 = vrot.lane.b32.xlu0 %v2110, 32
      %v3836 = vpop.permute.xlu0 %3835
      %3837 = vrot.lane.b32.xlu0 %v2111, 32
      %v3838 = vpop.permute.xlu0 %3837
      %3839 = vrot.lane.b32.xlu0 %v2112, 32
      %v3840 = vpop.permute.xlu0 %3839
      %3841 = vrot.lane.b32.xlu0 %v2114, 32
      %v3842 = vpop.permute.xlu0 %3841
      %3843 = vrot.lane.b32.xlu0 %v2115, 32
      %v3844 = vpop.permute.xlu0 %3843
      %3845 = vrot.lane.b32.xlu0 %v2116, 32
      %v3846 = vpop.permute.xlu0 %3845
      %3847 = vrot.lane.b32.xlu0 %v2117, 32
      %v3848 = vpop.permute.xlu0 %3847
      %3849 = vrot.lane.b32.xlu0 %v2118, 32
      %v3850 = vpop.permute.xlu0 %3849
      %3851 = vrot.lane.b32.xlu0 %v2119, 32
      %v3852 = vpop.permute.xlu0 %3851
      %3853 = vrot.lane.b32.xlu0 %v2120, 32
      %v3854 = vpop.permute.xlu0 %3853
      %3855 = vrot.lane.b32.xlu0 %v2122, 32
      %v3856 = vpop.permute.xlu0 %3855
      %3857 = vrot.lane.b32.xlu0 %v2123, 32
      %v3858 = vpop.permute.xlu0 %3857
      %3859 = vrot.lane.b32.xlu0 %v2124, 32
      %v3860 = vpop.permute.xlu0 %3859
      %3861 = vrot.lane.b32.xlu0 %v2125, 32
      %v3862 = vpop.permute.xlu0 %3861
      %3863 = vrot.lane.b32.xlu0 %v2126, 32
      %v3864 = vpop.permute.xlu0 %3863
      %3865 = vrot.lane.b32.xlu0 %v2127, 32
      %v3866 = vpop.permute.xlu0 %3865
      %3867 = vrot.lane.b32.xlu0 %v2128, 32
      %v3868 = vpop.permute.xlu0 %3867
      %3869 = vrot.lane.b32.xlu0 %v2130, 32
      %v3870 = vpop.permute.xlu0 %3869
      %3871 = vrot.lane.b32.xlu0 %v2131, 32
      %v3872 = vpop.permute.xlu0 %3871
      %3873 = vrot.lane.b32.xlu0 %v2132, 32
      %v3874 = vpop.permute.xlu0 %3873
      %3875 = vrot.lane.b32.xlu0 %v2133, 32
      %v3876 = vpop.permute.xlu0 %3875
      %3877 = vrot.lane.b32.xlu0 %v2134, 32
      %v3878 = vpop.permute.xlu0 %3877
      %3879 = vrot.lane.b32.xlu0 %v2135, 32
      %v3880 = vpop.permute.xlu0 %3879
      %3881 = vrot.lane.b32.xlu0 %v2136, 32
      %v3882 = vpop.permute.xlu0 %3881
      %3883 = vrot.lane.b32.xlu0 %v2138, 32
      %v3884 = vpop.permute.xlu0 %3883
      %3885 = vrot.lane.b32.xlu0 %v2139, 32
      %v3886 = vpop.permute.xlu0 %3885
      %3887 = vrot.lane.b32.xlu0 %v2140, 32
      %v3888 = vpop.permute.xlu0 %3887
      %3889 = vrot.lane.b32.xlu0 %v2141, 32
      %v3890 = vpop.permute.xlu0 %3889
      %3891 = vrot.lane.b32.xlu0 %v2142, 32
      %v3892 = vpop.permute.xlu0 %3891
      %3893 = vrot.lane.b32.xlu0 %v2143, 32
      %v3894 = vpop.permute.xlu0 %3893
      %3895 = vrot.lane.b32.xlu0 %v2144, 32
      %v3896 = vpop.permute.xlu0 %3895
      %3897 = vrot.lane.b32.xlu0 %v2146, 32
      %v3898 = vpop.permute.xlu0 %3897
      %3899 = vrot.lane.b32.xlu0 %v2147, 32
      %v3900 = vpop.permute.xlu0 %3899
      %3901 = vrot.lane.b32.xlu0 %v2148, 32
      %v3902 = vpop.permute.xlu0 %3901
      %3903 = vrot.lane.b32.xlu0 %v2149, 32
      %v3904 = vpop.permute.xlu0 %3903
      %3905 = vrot.lane.b32.xlu0 %v2150, 32
      %v3906 = vpop.permute.xlu0 %3905
      %3907 = vrot.lane.b32.xlu0 %v2151, 32
      %v3908 = vpop.permute.xlu0 %3907
      %3909 = vrot.lane.b32.xlu0 %v2152, 32
      %v3910 = vpop.permute.xlu0 %3909
      %3959 = vrot.lane.b32.xlu0 %v3072, 48
      %v3960 = vpop.permute.xlu0 %3959
      %3961 = vrot.lane.b32.xlu0 %v3073, 48
      %v3962 = vpop.permute.xlu0 %3961
      %3963 = vrot.lane.b32.xlu0 %v3074, 48
      %v3964 = vpop.permute.xlu0 %3963
      %3965 = vrot.lane.b32.xlu0 %v3075, 48
      %v3966 = vpop.permute.xlu0 %3965
      %3967 = vrot.lane.b32.xlu0 %v3076, 48
      %v3968 = vpop.permute.xlu0 %3967
      %3969 = vrot.lane.b32.xlu0 %v3077, 48
      %v3970 = vpop.permute.xlu0 %3969
      %3971 = vrot.lane.b32.xlu0 %v3078, 48
      %v3972 = vpop.permute.xlu0 %3971
      %3973 = vrot.lane.b32.xlu0 %v3079, 48
      %v3974 = vpop.permute.xlu0 %3973
      %3975 = vrot.lane.b32.xlu0 %v3080, 48
      %v3976 = vpop.permute.xlu0 %3975
      %3977 = vrot.lane.b32.xlu0 %v3081, 48
      %v3978 = vpop.permute.xlu0 %3977
      %3979 = vrot.lane.b32.xlu0 %v3082, 48
      %v3980 = vpop.permute.xlu0 %3979
      %3981 = vrot.lane.b32.xlu0 %v3083, 48
      %v3982 = vpop.permute.xlu0 %3981
      %3983 = vrot.lane.b32.xlu0 %v3084, 48
      %v3984 = vpop.permute.xlu0 %3983
      %3985 = vrot.lane.b32.xlu0 %v3085, 48
      %v3986 = vpop.permute.xlu0 %3985
      %3987 = vrot.lane.b32.xlu0 %v3086, 48
      %v3988 = vpop.permute.xlu0 %3987
      %3989 = vrot.lane.b32.xlu0 %v3087, 48
      %v3990 = vpop.permute.xlu0 %3989
      %3991 = vrot.lane.b32.xlu0 %v3088, 48
      %v3992 = vpop.permute.xlu0 %3991
      %3993 = vrot.lane.b32.xlu0 %v3089, 48
      %v3994 = vpop.permute.xlu0 %3993
      %3995 = vrot.lane.b32.xlu0 %v3090, 48
      %v3996 = vpop.permute.xlu0 %3995
      %3997 = vrot.lane.b32.xlu0 %v3091, 48
      %v3998 = vpop.permute.xlu0 %3997
      %3999 = vrot.lane.b32.xlu0 %v3092, 48
      %v4000 = vpop.permute.xlu0 %3999
      %4001 = vrot.lane.b32.xlu0 %v3093, 48
      %v4002 = vpop.permute.xlu0 %4001
      %4003 = vrot.lane.b32.xlu0 %v3094, 48
      %v4004 = vpop.permute.xlu0 %4003
      %4005 = vrot.lane.b32.xlu0 %v3095, 48
      %v4006 = vpop.permute.xlu0 %4005
      %4007 = vrot.lane.b32.xlu0 %v3096, 48
      %v4008 = vpop.permute.xlu0 %4007
      %4009 = vrot.lane.b32.xlu0 %v3097, 48
      %v4010 = vpop.permute.xlu0 %4009
      %4011 = vrot.lane.b32.xlu0 %v3098, 48
      %v4012 = vpop.permute.xlu0 %4011
      %4013 = vrot.lane.b32.xlu0 %v3099, 48
      %v4014 = vpop.permute.xlu0 %4013
      %4015 = vrot.lane.b32.xlu0 %v3100, 48
      %v4016 = vpop.permute.xlu0 %4015
      %4017 = vrot.lane.b32.xlu0 %v3101, 48
      %v4018 = vpop.permute.xlu0 %4017
      %4019 = vrot.lane.b32.xlu0 %v3102, 48
      %v4020 = vpop.permute.xlu0 %4019
      %4021 = vrot.lane.b32.xlu0 %v3103, 48
      %v4022 = vpop.permute.xlu0 %4021
      %4023 = vrot.lane.b32.xlu0 %v3104, 48
      %v4024 = vpop.permute.xlu0 %4023
      %4025 = vrot.lane.b32.xlu0 %v3105, 48
      %v4026 = vpop.permute.xlu0 %4025
      %4027 = vrot.lane.b32.xlu0 %v3106, 48
      %v4028 = vpop.permute.xlu0 %4027
      %4029 = vrot.lane.b32.xlu0 %v3107, 48
      %v4030 = vpop.permute.xlu0 %4029
      %4031 = vrot.lane.b32.xlu0 %v3108, 48
      %v4032 = vpop.permute.xlu0 %4031
      %4033 = vrot.lane.b32.xlu0 %v3109, 48
      %v4034 = vpop.permute.xlu0 %4033
      %4035 = vrot.lane.b32.xlu0 %v3110, 48
      %v4036 = vpop.permute.xlu0 %4035
      %4037 = vrot.lane.b32.xlu0 %v3111, 48
      %v4038 = vpop.permute.xlu0 %4037
      %4039 = vrot.lane.b32.xlu0 %v3112, 48
      %v4040 = vpop.permute.xlu0 %4039
      %4041 = vrot.lane.b32.xlu0 %v3113, 48
      %v4042 = vpop.permute.xlu0 %4041
      %4043 = vrot.lane.b32.xlu0 %v3114, 48
      %v4044 = vpop.permute.xlu0 %4043
      %4045 = vrot.lane.b32.xlu0 %v3115, 48
      %v4046 = vpop.permute.xlu0 %4045
      %4047 = vrot.lane.b32.xlu0 %v3116, 48
      %v4048 = vpop.permute.xlu0 %4047
      %4049 = vrot.lane.b32.xlu0 %v3117, 48
      %v4050 = vpop.permute.xlu0 %4049
      %4051 = vrot.lane.b32.xlu0 %v3118, 48
      %v4052 = vpop.permute.xlu0 %4051
      %4053 = vrot.lane.b32.xlu0 %v3119, 48
      %v4054 = vpop.permute.xlu0 %4053
      %v4103 = vunpack.c.l.b16 %v1962
      %v4104 = vunpack.c.l.b16 %v1963
      %v4105 = vunpack.c.l.b16 %v1964
      %v4106 = vunpack.c.l.b16 %v1965
      %v4107 = vunpack.c.l.b16 %v1966
      %v4108 = vunpack.c.l.b16 %v1967
      %v4109 = vunpack.c.l.b16 %v1968
      %v4110 = vunpack.c.l.b16 %v1969
      %v4111 = vunpack.c.l.b16 %v1970
      %v4112 = vunpack.c.l.b16 %v1971
      %v4113 = vunpack.c.l.b16 %v1972
      %v4114 = vunpack.c.l.b16 %v1973
      %v4115 = vunpack.c.l.b16 %v1974
      %v4116 = vunpack.c.l.b16 %v1975
      %v4117 = vunpack.c.l.b16 %v1976
      %v4118 = vunpack.c.l.b16 %v1977
      %v4119 = vunpack.c.l.b16 %v1978
      %v4120 = vunpack.c.l.b16 %v1979
      %v4121 = vunpack.c.l.b16 %v1980
      %v4122 = vunpack.c.l.b16 %v1981
      %v4123 = vunpack.c.l.b16 %v1982
      %v4124 = vunpack.c.l.b16 %v1983
      %v4125 = vunpack.c.l.b16 %v1984
      %v4126 = vunpack.c.l.b16 %v1985
      %v4127 = vunpack.c.l.b16 %v1986
      %v4128 = vunpack.c.l.b16 %v1987
      %v4129 = vunpack.c.l.b16 %v1988
      %v4130 = vunpack.c.l.b16 %v1989
      %v4131 = vunpack.c.l.b16 %v1990
      %v4132 = vunpack.c.l.b16 %v1991
      %v4133 = vunpack.c.l.b16 %v1992
      %v4134 = vunpack.c.l.b16 %v1993
      %v4135 = vunpack.c.l.b16 %v1994
      %v4136 = vunpack.c.l.b16 %v1995
      %v4137 = vunpack.c.l.b16 %v1996
      %v4138 = vunpack.c.l.b16 %v1997
      %v4139 = vunpack.c.l.b16 %v1998
      %v4140 = vunpack.c.l.b16 %v1999
      %v4141 = vunpack.c.l.b16 %v2000
      %v4142 = vunpack.c.l.b16 %v2001
      %v4143 = vunpack.c.l.b16 %v2002
      %v4144 = vunpack.c.l.b16 %v2003
      %v4145 = vunpack.c.l.b16 %v2004
      %v4146 = vunpack.c.l.b16 %v2005
      %v4147 = vunpack.c.l.b16 %v2006
      %v4148 = vunpack.c.l.b16 %v2007
      %v4149 = vunpack.c.l.b16 %v2008
      %v4150 = vunpack.c.l.b16 %v2009
      %v4151 = vpack.c.b16 %v4103, %v4103
      %v4152 = vpack.c.b16 %v4104, %v4104
      %v4153 = vpack.c.b16 %v4105, %v4105
      %v4154 = vpack.c.b16 %v4106, %v4106
      %v4155 = vpack.c.b16 %v4107, %v4107
      %v4156 = vpack.c.b16 %v4108, %v4108
      %v4157 = vpack.c.b16 %v4109, %v4109
      %v4158 = vpack.c.b16 %v4110, %v4110
      %v4159 = vpack.c.b16 %v4111, %v4111
      %v4160 = vpack.c.b16 %v4112, %v4112
      %v4161 = vpack.c.b16 %v4113, %v4113
      %v4162 = vpack.c.b16 %v4114, %v4114
      %v4163 = vpack.c.b16 %v4115, %v4115
      %v4164 = vpack.c.b16 %v4116, %v4116
      %v4165 = vpack.c.b16 %v4117, %v4117
      %v4166 = vpack.c.b16 %v4118, %v4118
      %v4167 = vpack.c.b16 %v4119, %v4119
      %v4168 = vpack.c.b16 %v4120, %v4120
      %v4169 = vpack.c.b16 %v4121, %v4121
      %v4170 = vpack.c.b16 %v4122, %v4122
      %v4171 = vpack.c.b16 %v4123, %v4123
      %v4172 = vpack.c.b16 %v4124, %v4124
      %v4173 = vpack.c.b16 %v4125, %v4125
      %v4174 = vpack.c.b16 %v4126, %v4126
      %v4175 = vpack.c.b16 %v4127, %v4127
      %v4176 = vpack.c.b16 %v4128, %v4128
      %v4177 = vpack.c.b16 %v4129, %v4129
      %v4178 = vpack.c.b16 %v4130, %v4130
      %v4179 = vpack.c.b16 %v4131, %v4131
      %v4180 = vpack.c.b16 %v4132, %v4132
      %v4181 = vpack.c.b16 %v4133, %v4133
      %v4182 = vpack.c.b16 %v4134, %v4134
      %v4183 = vpack.c.b16 %v4135, %v4135
      %v4184 = vpack.c.b16 %v4136, %v4136
      %v4185 = vpack.c.b16 %v4137, %v4137
      %v4186 = vpack.c.b16 %v4138, %v4138
      %v4187 = vpack.c.b16 %v4139, %v4139
      %v4188 = vpack.c.b16 %v4140, %v4140
      %v4189 = vpack.c.b16 %v4141, %v4141
      %v4190 = vpack.c.b16 %v4142, %v4142
      %v4191 = vpack.c.b16 %v4143, %v4143
      %v4192 = vpack.c.b16 %v4144, %v4144
      %v4193 = vpack.c.b16 %v4145, %v4145
      %v4194 = vpack.c.b16 %v4146, %v4146
      %v4195 = vpack.c.b16 %v4147, %v4147
      %v4196 = vpack.c.b16 %v4148, %v4148
      %v4197 = vpack.c.b16 %v4149, %v4149
      %v4198 = vpack.c.b16 %v4150, %v4150
      %4199 = vrot.lane.b32.xlu0 %v4151, 64
      %v4200 = vpop.permute.xlu0 %4199
      %4201 = vrot.lane.b32.xlu0 %v4152, 64
      %v4202 = vpop.permute.xlu0 %4201
      %4203 = vrot.lane.b32.xlu0 %v4153, 64
      %v4204 = vpop.permute.xlu0 %4203
      %4205 = vrot.lane.b32.xlu0 %v4154, 64
      %v4206 = vpop.permute.xlu0 %4205
      %4207 = vrot.lane.b32.xlu0 %v4155, 64
      %v4208 = vpop.permute.xlu0 %4207
      %4209 = vrot.lane.b32.xlu0 %v4156, 64
      %v4210 = vpop.permute.xlu0 %4209
      %4211 = vrot.lane.b32.xlu0 %v4157, 64
      %v4212 = vpop.permute.xlu0 %4211
      %4213 = vrot.lane.b32.xlu0 %v4158, 64
      %v4214 = vpop.permute.xlu0 %4213
      %4215 = vrot.lane.b32.xlu0 %v4159, 64
      %v4216 = vpop.permute.xlu0 %4215
      %4217 = vrot.lane.b32.xlu0 %v4160, 64
      %v4218 = vpop.permute.xlu0 %4217
      %4219 = vrot.lane.b32.xlu0 %v4161, 64
      %v4220 = vpop.permute.xlu0 %4219
      %4221 = vrot.lane.b32.xlu0 %v4162, 64
      %v4222 = vpop.permute.xlu0 %4221
      %4223 = vrot.lane.b32.xlu0 %v4163, 64
      %v4224 = vpop.permute.xlu0 %4223
      %4225 = vrot.lane.b32.xlu0 %v4164, 64
      %v4226 = vpop.permute.xlu0 %4225
      %4227 = vrot.lane.b32.xlu0 %v4165, 64
      %v4228 = vpop.permute.xlu0 %4227
      %4229 = vrot.lane.b32.xlu0 %v4166, 64
      %v4230 = vpop.permute.xlu0 %4229
      %4231 = vrot.lane.b32.xlu0 %v4167, 64
      %v4232 = vpop.permute.xlu0 %4231
      %4233 = vrot.lane.b32.xlu0 %v4168, 64
      %v4234 = vpop.permute.xlu0 %4233
      %4235 = vrot.lane.b32.xlu0 %v4169, 64
      %v4236 = vpop.permute.xlu0 %4235
      %4237 = vrot.lane.b32.xlu0 %v4170, 64
      %v4238 = vpop.permute.xlu0 %4237
      %4239 = vrot.lane.b32.xlu0 %v4171, 64
      %v4240 = vpop.permute.xlu0 %4239
      %4241 = vrot.lane.b32.xlu0 %v4172, 64
      %v4242 = vpop.permute.xlu0 %4241
      %4243 = vrot.lane.b32.xlu0 %v4173, 64
      %v4244 = vpop.permute.xlu0 %4243
      %4245 = vrot.lane.b32.xlu0 %v4174, 64
      %v4246 = vpop.permute.xlu0 %4245
      %4247 = vrot.lane.b32.xlu0 %v4175, 64
      %v4248 = vpop.permute.xlu0 %4247
      %4249 = vrot.lane.b32.xlu0 %v4176, 64
      %v4250 = vpop.permute.xlu0 %4249
      %4251 = vrot.lane.b32.xlu0 %v4177, 64
      %v4252 = vpop.permute.xlu0 %4251
      %4253 = vrot.lane.b32.xlu0 %v4178, 64
      %v4254 = vpop.permute.xlu0 %4253
      %4255 = vrot.lane.b32.xlu0 %v4179, 64
      %v4256 = vpop.permute.xlu0 %4255
      %4257 = vrot.lane.b32.xlu0 %v4180, 64
      %v4258 = vpop.permute.xlu0 %4257
      %4259 = vrot.lane.b32.xlu0 %v4181, 64
      %v4260 = vpop.permute.xlu0 %4259
      %4261 = vrot.lane.b32.xlu0 %v4182, 64
      %v4262 = vpop.permute.xlu0 %4261
      %4263 = vrot.lane.b32.xlu0 %v4183, 64
      %v4264 = vpop.permute.xlu0 %4263
      %4265 = vrot.lane.b32.xlu0 %v4184, 64
      %v4266 = vpop.permute.xlu0 %4265
      %4267 = vrot.lane.b32.xlu0 %v4185, 64
      %v4268 = vpop.permute.xlu0 %4267
      %4269 = vrot.lane.b32.xlu0 %v4186, 64
      %v4270 = vpop.permute.xlu0 %4269
      %4271 = vrot.lane.b32.xlu0 %v4187, 64
      %v4272 = vpop.permute.xlu0 %4271
      %4273 = vrot.lane.b32.xlu0 %v4188, 64
      %v4274 = vpop.permute.xlu0 %4273
      %4275 = vrot.lane.b32.xlu0 %v4189, 64
      %v4276 = vpop.permute.xlu0 %4275
      %4277 = vrot.lane.b32.xlu0 %v4190, 64
      %v4278 = vpop.permute.xlu0 %4277
      %4279 = vrot.lane.b32.xlu0 %v4191, 64
      %v4280 = vpop.permute.xlu0 %4279
      %4281 = vrot.lane.b32.xlu0 %v4192, 64
      %v4282 = vpop.permute.xlu0 %4281
      %4283 = vrot.lane.b32.xlu0 %v4193, 64
      %v4284 = vpop.permute.xlu0 %4283
      %4285 = vrot.lane.b32.xlu0 %v4194, 64
      %v4286 = vpop.permute.xlu0 %4285
      %4287 = vrot.lane.b32.xlu0 %v4195, 64
      %v4288 = vpop.permute.xlu0 %4287
      %4289 = vrot.lane.b32.xlu0 %v4196, 64
      %v4290 = vpop.permute.xlu0 %4289
      %4291 = vrot.lane.b32.xlu0 %v4197, 64
      %v4292 = vpop.permute.xlu0 %4291
      %4293 = vrot.lane.b32.xlu0 %v4198, 64
      %v4294 = vpop.permute.xlu0 %4293
      %4295 = vrot.lane.b32.xlu0 %v2640, 80
      %v4296 = vpop.permute.xlu0 %4295
      %4297 = vrot.lane.b32.xlu0 %v2641, 80
      %v4298 = vpop.permute.xlu0 %4297
      %4299 = vrot.lane.b32.xlu0 %v2642, 80
      %v4300 = vpop.permute.xlu0 %4299
      %4301 = vrot.lane.b32.xlu0 %v2643, 80
      %v4302 = vpop.permute.xlu0 %4301
      %4303 = vrot.lane.b32.xlu0 %v2644, 80
      %v4304 = vpop.permute.xlu0 %4303
      %4305 = vrot.lane.b32.xlu0 %v2645, 80
      %v4306 = vpop.permute.xlu0 %4305
      %4307 = vrot.lane.b32.xlu0 %v2646, 80
      %v4308 = vpop.permute.xlu0 %4307
      %4309 = vrot.lane.b32.xlu0 %v2647, 80
      %v4310 = vpop.permute.xlu0 %4309
      %4311 = vrot.lane.b32.xlu0 %v2648, 80
      %v4312 = vpop.permute.xlu0 %4311
      %4313 = vrot.lane.b32.xlu0 %v2649, 80
      %v4314 = vpop.permute.xlu0 %4313
      %4315 = vrot.lane.b32.xlu0 %v2650, 80
      %v4316 = vpop.permute.xlu0 %4315
      %4317 = vrot.lane.b32.xlu0 %v2651, 80
      %v4318 = vpop.permute.xlu0 %4317
      %4319 = vrot.lane.b32.xlu0 %v2652, 80
      %v4320 = vpop.permute.xlu0 %4319
      %4321 = vrot.lane.b32.xlu0 %v2653, 80
      %v4322 = vpop.permute.xlu0 %4321
      %4323 = vrot.lane.b32.xlu0 %v2654, 80
      %v4324 = vpop.permute.xlu0 %4323
      %4325 = vrot.lane.b32.xlu0 %v2655, 80
      %v4326 = vpop.permute.xlu0 %4325
      %4327 = vrot.lane.b32.xlu0 %v2656, 80
      %v4328 = vpop.permute.xlu0 %4327
      %4329 = vrot.lane.b32.xlu0 %v2657, 80
      %v4330 = vpop.permute.xlu0 %4329
      %4331 = vrot.lane.b32.xlu0 %v2658, 80
      %v4332 = vpop.permute.xlu0 %4331
      %4333 = vrot.lane.b32.xlu0 %v2659, 80
      %v4334 = vpop.permute.xlu0 %4333
      %4335 = vrot.lane.b32.xlu0 %v2660, 80
      %v4336 = vpop.permute.xlu0 %4335
      %4337 = vrot.lane.b32.xlu0 %v2661, 80
      %v4338 = vpop.permute.xlu0 %4337
      %4339 = vrot.lane.b32.xlu0 %v2662, 80
      %v4340 = vpop.permute.xlu0 %4339
      %4341 = vrot.lane.b32.xlu0 %v2663, 80
      %v4342 = vpop.permute.xlu0 %4341
      %4343 = vrot.lane.b32.xlu0 %v2664, 80
      %v4344 = vpop.permute.xlu0 %4343
      %4345 = vrot.lane.b32.xlu0 %v2665, 80
      %v4346 = vpop.permute.xlu0 %4345
      %4347 = vrot.lane.b32.xlu0 %v2666, 80
      %v4348 = vpop.permute.xlu0 %4347
      %4349 = vrot.lane.b32.xlu0 %v2667, 80
      %v4350 = vpop.permute.xlu0 %4349
      %4351 = vrot.lane.b32.xlu0 %v2668, 80
      %v4352 = vpop.permute.xlu0 %4351
      %4353 = vrot.lane.b32.xlu0 %v2669, 80
      %v4354 = vpop.permute.xlu0 %4353
      %4355 = vrot.lane.b32.xlu0 %v2670, 80
      %v4356 = vpop.permute.xlu0 %4355
      %4357 = vrot.lane.b32.xlu0 %v2671, 80
      %v4358 = vpop.permute.xlu0 %4357
      %4359 = vrot.lane.b32.xlu0 %v2672, 80
      %v4360 = vpop.permute.xlu0 %4359
      %4361 = vrot.lane.b32.xlu0 %v2673, 80
      %v4362 = vpop.permute.xlu0 %4361
      %4363 = vrot.lane.b32.xlu0 %v2674, 80
      %v4364 = vpop.permute.xlu0 %4363
      %4365 = vrot.lane.b32.xlu0 %v2675, 80
      %v4366 = vpop.permute.xlu0 %4365
      %4367 = vrot.lane.b32.xlu0 %v2676, 80
      %v4368 = vpop.permute.xlu0 %4367
      %4369 = vrot.lane.b32.xlu0 %v2677, 80
      %v4370 = vpop.permute.xlu0 %4369
      %4371 = vrot.lane.b32.xlu0 %v2678, 80
      %v4372 = vpop.permute.xlu0 %4371
      %4373 = vrot.lane.b32.xlu0 %v2679, 80
      %v4374 = vpop.permute.xlu0 %4373
      %4375 = vrot.lane.b32.xlu0 %v2680, 80
      %v4376 = vpop.permute.xlu0 %4375
      %4377 = vrot.lane.b32.xlu0 %v2681, 80
      %v4378 = vpop.permute.xlu0 %4377
      %4379 = vrot.lane.b32.xlu0 %v2682, 80
      %v4380 = vpop.permute.xlu0 %4379
      %4381 = vrot.lane.b32.xlu0 %v2683, 80
      %v4382 = vpop.permute.xlu0 %4381
      %4383 = vrot.lane.b32.xlu0 %v2684, 80
      %v4384 = vpop.permute.xlu0 %4383
      %4385 = vrot.lane.b32.xlu0 %v2685, 80
      %v4386 = vpop.permute.xlu0 %4385
      %4387 = vrot.lane.b32.xlu0 %v2686, 80
      %v4388 = vpop.permute.xlu0 %4387
      %4389 = vrot.lane.b32.xlu0 %v2687, 80
      %v4390 = vpop.permute.xlu0 %4389
      %4439 = vrot.lane.b32.xlu0 %v3648, 96
      %v4440 = vpop.permute.xlu0 %4439
      %4441 = vrot.lane.b32.xlu0 %v3649, 96
      %v4442 = vpop.permute.xlu0 %4441
      %4443 = vrot.lane.b32.xlu0 %v3650, 96
      %v4444 = vpop.permute.xlu0 %4443
      %4445 = vrot.lane.b32.xlu0 %v3651, 96
      %v4446 = vpop.permute.xlu0 %4445
      %4447 = vrot.lane.b32.xlu0 %v3652, 96
      %v4448 = vpop.permute.xlu0 %4447
      %4449 = vrot.lane.b32.xlu0 %v3653, 96
      %v4450 = vpop.permute.xlu0 %4449
      %4451 = vrot.lane.b32.xlu0 %v3654, 96
      %v4452 = vpop.permute.xlu0 %4451
      %4453 = vrot.lane.b32.xlu0 %v3655, 96
      %v4454 = vpop.permute.xlu0 %4453
      %4455 = vrot.lane.b32.xlu0 %v3656, 96
      %v4456 = vpop.permute.xlu0 %4455
      %4457 = vrot.lane.b32.xlu0 %v3657, 96
      %v4458 = vpop.permute.xlu0 %4457
      %4459 = vrot.lane.b32.xlu0 %v3658, 96
      %v4460 = vpop.permute.xlu0 %4459
      %4461 = vrot.lane.b32.xlu0 %v3659, 96
      %v4462 = vpop.permute.xlu0 %4461
      %4463 = vrot.lane.b32.xlu0 %v3660, 96
      %v4464 = vpop.permute.xlu0 %4463
      %4465 = vrot.lane.b32.xlu0 %v3661, 96
      %v4466 = vpop.permute.xlu0 %4465
      %4467 = vrot.lane.b32.xlu0 %v3662, 96
      %v4468 = vpop.permute.xlu0 %4467
      %4469 = vrot.lane.b32.xlu0 %v3663, 96
      %v4470 = vpop.permute.xlu0 %4469
      %4471 = vrot.lane.b32.xlu0 %v3664, 96
      %v4472 = vpop.permute.xlu0 %4471
      %4473 = vrot.lane.b32.xlu0 %v3665, 96
      %v4474 = vpop.permute.xlu0 %4473
      %4475 = vrot.lane.b32.xlu0 %v3666, 96
      %v4476 = vpop.permute.xlu0 %4475
      %4477 = vrot.lane.b32.xlu0 %v3667, 96
      %v4478 = vpop.permute.xlu0 %4477
      %4479 = vrot.lane.b32.xlu0 %v3668, 96
      %v4480 = vpop.permute.xlu0 %4479
      %4481 = vrot.lane.b32.xlu0 %v3669, 96
      %v4482 = vpop.permute.xlu0 %4481
      %4483 = vrot.lane.b32.xlu0 %v3670, 96
      %v4484 = vpop.permute.xlu0 %4483
      %4485 = vrot.lane.b32.xlu0 %v3671, 96
      %v4486 = vpop.permute.xlu0 %4485
      %4487 = vrot.lane.b32.xlu0 %v3672, 96
      %v4488 = vpop.permute.xlu0 %4487
      %4489 = vrot.lane.b32.xlu0 %v3673, 96
      %v4490 = vpop.permute.xlu0 %4489
      %4491 = vrot.lane.b32.xlu0 %v3674, 96
      %v4492 = vpop.permute.xlu0 %4491
      %4493 = vrot.lane.b32.xlu0 %v3675, 96
      %v4494 = vpop.permute.xlu0 %4493
      %4495 = vrot.lane.b32.xlu0 %v3676, 96
      %v4496 = vpop.permute.xlu0 %4495
      %4497 = vrot.lane.b32.xlu0 %v3677, 96
      %v4498 = vpop.permute.xlu0 %4497
      %4499 = vrot.lane.b32.xlu0 %v3678, 96
      %v4500 = vpop.permute.xlu0 %4499
      %4501 = vrot.lane.b32.xlu0 %v3679, 96
      %v4502 = vpop.permute.xlu0 %4501
      %4503 = vrot.lane.b32.xlu0 %v3680, 96
      %v4504 = vpop.permute.xlu0 %4503
      %4505 = vrot.lane.b32.xlu0 %v3681, 96
      %v4506 = vpop.permute.xlu0 %4505
      %4507 = vrot.lane.b32.xlu0 %v3682, 96
      %v4508 = vpop.permute.xlu0 %4507
      %4509 = vrot.lane.b32.xlu0 %v3683, 96
      %v4510 = vpop.permute.xlu0 %4509
      %4511 = vrot.lane.b32.xlu0 %v3684, 96
      %v4512 = vpop.permute.xlu0 %4511
      %4513 = vrot.lane.b32.xlu0 %v3685, 96
      %v4514 = vpop.permute.xlu0 %4513
      %4515 = vrot.lane.b32.xlu0 %v3686, 96
      %v4516 = vpop.permute.xlu0 %4515
      %4517 = vrot.lane.b32.xlu0 %v3687, 96
      %v4518 = vpop.permute.xlu0 %4517
      %4519 = vrot.lane.b32.xlu0 %v3688, 96
      %v4520 = vpop.permute.xlu0 %4519
      %4521 = vrot.lane.b32.xlu0 %v3689, 96
      %v4522 = vpop.permute.xlu0 %4521
      %4523 = vrot.lane.b32.xlu0 %v3690, 96
      %v4524 = vpop.permute.xlu0 %4523
      %4525 = vrot.lane.b32.xlu0 %v3691, 96
      %v4526 = vpop.permute.xlu0 %4525
      %4527 = vrot.lane.b32.xlu0 %v3692, 96
      %v4528 = vpop.permute.xlu0 %4527
      %4529 = vrot.lane.b32.xlu0 %v3693, 96
      %v4530 = vpop.permute.xlu0 %4529
      %4531 = vrot.lane.b32.xlu0 %v3694, 96
      %v4532 = vpop.permute.xlu0 %4531
      %4533 = vrot.lane.b32.xlu0 %v3695, 96
      %v4534 = vpop.permute.xlu0 %4533
      %v4541 = vunpack.c.l.b16 %v2058
      %v4542 = vunpack.c.l.b16 %v2059
      %v4543 = vunpack.c.l.b16 %v2060
      %v4544 = vunpack.c.l.b16 %v2061
      %v4545 = vunpack.c.l.b16 %v2062
      %v4546 = vunpack.c.l.b16 %v2063
      %v4547 = vunpack.c.l.b16 %v2064
      %v4548 = vunpack.c.l.b16 %v2065
      %v4549 = vunpack.c.l.b16 %v2066
      %v4550 = vunpack.c.l.b16 %v2067
      %v4551 = vunpack.c.l.b16 %v2068
      %v4552 = vunpack.c.l.b16 %v2069
      %v4553 = vunpack.c.l.b16 %v2070
      %v4554 = vunpack.c.l.b16 %v2071
      %v4555 = vunpack.c.l.b16 %v2072
      %v4556 = vunpack.c.l.b16 %v2073
      %v4557 = vunpack.c.l.b16 %v2074
      %v4558 = vunpack.c.l.b16 %v2075
      %v4559 = vunpack.c.l.b16 %v2076
      %v4560 = vunpack.c.l.b16 %v2077
      %v4561 = vunpack.c.l.b16 %v2078
      %v4562 = vunpack.c.l.b16 %v2079
      %v4563 = vunpack.c.l.b16 %v2080
      %v4564 = vunpack.c.l.b16 %v2081
      %v4565 = vunpack.c.l.b16 %v2082
      %v4566 = vunpack.c.l.b16 %v2083
      %v4567 = vunpack.c.l.b16 %v2084
      %v4568 = vunpack.c.l.b16 %v2085
      %v4569 = vunpack.c.l.b16 %v2086
      %v4570 = vunpack.c.l.b16 %v2087
      %v4571 = vunpack.c.l.b16 %v2088
      %v4572 = vunpack.c.l.b16 %v2089
      %v4573 = vunpack.c.l.b16 %v2090
      %v4574 = vunpack.c.l.b16 %v2091
      %v4575 = vunpack.c.l.b16 %v2092
      %v4576 = vunpack.c.l.b16 %v2093
      %v4577 = vunpack.c.l.b16 %v2094
      %v4578 = vunpack.c.l.b16 %v2095
      %v4579 = vunpack.c.l.b16 %v2096
      %v4580 = vunpack.c.l.b16 %v2097
      %v4581 = vunpack.c.l.b16 %v2098
      %v4582 = vunpack.c.l.b16 %v2099
      %v4583 = vunpack.c.l.b16 %v2100
      %v4584 = vunpack.c.l.b16 %v2101
      %v4585 = vunpack.c.l.b16 %v2102
      %v4586 = vunpack.c.l.b16 %v2103
      %v4587 = vunpack.c.l.b16 %v2104
      %v4588 = vunpack.c.l.b16 %v2105
      %v4589 = vpack.c.b16 %v4541, %v4541
      %v4590 = vpack.c.b16 %v4542, %v4542
      %v4591 = vpack.c.b16 %v4543, %v4543
      %v4592 = vpack.c.b16 %v4544, %v4544
      %v4593 = vpack.c.b16 %v4545, %v4545
      %v4594 = vpack.c.b16 %v4546, %v4546
      %v4595 = vpack.c.b16 %v4547, %v4547
      %v4596 = vpack.c.b16 %v4548, %v4548
      %v4597 = vpack.c.b16 %v4549, %v4549
      %v4598 = vpack.c.b16 %v4550, %v4550
      %v4599 = vpack.c.b16 %v4551, %v4551
      %v4600 = vpack.c.b16 %v4552, %v4552
      %v4601 = vpack.c.b16 %v4553, %v4553
      %v4602 = vpack.c.b16 %v4554, %v4554
      %v4603 = vpack.c.b16 %v4555, %v4555
      %v4604 = vpack.c.b16 %v4556, %v4556
      %v4605 = vpack.c.b16 %v4557, %v4557
      %v4606 = vpack.c.b16 %v4558, %v4558
      %v4607 = vpack.c.b16 %v4559, %v4559
      %v4608 = vpack.c.b16 %v4560, %v4560
      %v4609 = vpack.c.b16 %v4561, %v4561
      %v4610 = vpack.c.b16 %v4562, %v4562
      %v4611 = vpack.c.b16 %v4563, %v4563
      %v4612 = vpack.c.b16 %v4564, %v4564
      %v4613 = vpack.c.b16 %v4565, %v4565
      %v4614 = vpack.c.b16 %v4566, %v4566
      %v4615 = vpack.c.b16 %v4567, %v4567
      %v4616 = vpack.c.b16 %v4568, %v4568
      %v4617 = vpack.c.b16 %v4569, %v4569
      %v4618 = vpack.c.b16 %v4570, %v4570
      %v4619 = vpack.c.b16 %v4571, %v4571
      %v4620 = vpack.c.b16 %v4572, %v4572
      %v4621 = vpack.c.b16 %v4573, %v4573
      %v4622 = vpack.c.b16 %v4574, %v4574
      %v4623 = vpack.c.b16 %v4575, %v4575
      %v4624 = vpack.c.b16 %v4576, %v4576
      %v4625 = vpack.c.b16 %v4577, %v4577
      %v4626 = vpack.c.b16 %v4578, %v4578
      %v4627 = vpack.c.b16 %v4579, %v4579
      %v4628 = vpack.c.b16 %v4580, %v4580
      %v4629 = vpack.c.b16 %v4581, %v4581
      %v4630 = vpack.c.b16 %v4582, %v4582
      %v4631 = vpack.c.b16 %v4583, %v4583
      %v4632 = vpack.c.b16 %v4584, %v4584
      %v4633 = vpack.c.b16 %v4585, %v4585
      %v4634 = vpack.c.b16 %v4586, %v4586
      %v4635 = vpack.c.b16 %v4587, %v4587
      %v4636 = vpack.c.b16 %v4588, %v4588
      %4637 = vrot.lane.b32.xlu0 %v4589, 112
      %v4638 = vpop.permute.xlu0 %4637
      %4639 = vrot.lane.b32.xlu0 %v4590, 112
      %v4640 = vpop.permute.xlu0 %4639
      %4641 = vrot.lane.b32.xlu0 %v4591, 112
      %v4642 = vpop.permute.xlu0 %4641
      %4643 = vrot.lane.b32.xlu0 %v4592, 112
      %v4644 = vpop.permute.xlu0 %4643
      %4645 = vrot.lane.b32.xlu0 %v4593, 112
      %v4646 = vpop.permute.xlu0 %4645
      %4647 = vrot.lane.b32.xlu0 %v4594, 112
      %v4648 = vpop.permute.xlu0 %4647
      %4649 = vrot.lane.b32.xlu0 %v4595, 112
      %v4650 = vpop.permute.xlu0 %4649
      %4651 = vrot.lane.b32.xlu0 %v4596, 112
      %v4652 = vpop.permute.xlu0 %4651
      %4653 = vrot.lane.b32.xlu0 %v4597, 112
      %v4654 = vpop.permute.xlu0 %4653
      %4655 = vrot.lane.b32.xlu0 %v4598, 112
      %v4656 = vpop.permute.xlu0 %4655
      %4657 = vrot.lane.b32.xlu0 %v4599, 112
      %v4658 = vpop.permute.xlu0 %4657
      %4659 = vrot.lane.b32.xlu0 %v4600, 112
      %v4660 = vpop.permute.xlu0 %4659
      %4661 = vrot.lane.b32.xlu0 %v4601, 112
      %v4662 = vpop.permute.xlu0 %4661
      %4663 = vrot.lane.b32.xlu0 %v4602, 112
      %v4664 = vpop.permute.xlu0 %4663
      %4665 = vrot.lane.b32.xlu0 %v4603, 112
      %v4666 = vpop.permute.xlu0 %4665
      %4667 = vrot.lane.b32.xlu0 %v4604, 112
      %v4668 = vpop.permute.xlu0 %4667
      %4669 = vrot.lane.b32.xlu0 %v4605, 112
      %v4670 = vpop.permute.xlu0 %4669
      %4671 = vrot.lane.b32.xlu0 %v4606, 112
      %v4672 = vpop.permute.xlu0 %4671
      %4673 = vrot.lane.b32.xlu0 %v4607, 112
      %v4674 = vpop.permute.xlu0 %4673
      %4675 = vrot.lane.b32.xlu0 %v4608, 112
      %v4676 = vpop.permute.xlu0 %4675
      %4677 = vrot.lane.b32.xlu0 %v4609, 112
      %v4678 = vpop.permute.xlu0 %4677
      %4679 = vrot.lane.b32.xlu0 %v4610, 112
      %v4680 = vpop.permute.xlu0 %4679
      %4681 = vrot.lane.b32.xlu0 %v4611, 112
      %v4682 = vpop.permute.xlu0 %4681
      %4683 = vrot.lane.b32.xlu0 %v4612, 112
      %v4684 = vpop.permute.xlu0 %4683
      %4685 = vrot.lane.b32.xlu0 %v4613, 112
      %v4686 = vpop.permute.xlu0 %4685
      %4687 = vrot.lane.b32.xlu0 %v4614, 112
      %v4688 = vpop.permute.xlu0 %4687
      %4689 = vrot.lane.b32.xlu0 %v4615, 112
      %v4690 = vpop.permute.xlu0 %4689
      %4691 = vrot.lane.b32.xlu0 %v4616, 112
      %v4692 = vpop.permute.xlu0 %4691
      %4693 = vrot.lane.b32.xlu0 %v4617, 112
      %v4694 = vpop.permute.xlu0 %4693
      %4695 = vrot.lane.b32.xlu0 %v4618, 112
      %v4696 = vpop.permute.xlu0 %4695
      %4697 = vrot.lane.b32.xlu0 %v4619, 112
      %v4698 = vpop.permute.xlu0 %4697
      %4699 = vrot.lane.b32.xlu0 %v4620, 112
      %v4700 = vpop.permute.xlu0 %4699
      %4701 = vrot.lane.b32.xlu0 %v4621, 112
      %v4702 = vpop.permute.xlu0 %4701
      %4703 = vrot.lane.b32.xlu0 %v4622, 112
      %v4704 = vpop.permute.xlu0 %4703
      %4705 = vrot.lane.b32.xlu0 %v4623, 112
      %v4706 = vpop.permute.xlu0 %4705
      %4707 = vrot.lane.b32.xlu0 %v4624, 112
      %v4708 = vpop.permute.xlu0 %4707
      %4709 = vrot.lane.b32.xlu0 %v4625, 112
      %v4710 = vpop.permute.xlu0 %4709
      %4711 = vrot.lane.b32.xlu0 %v4626, 112
      %v4712 = vpop.permute.xlu0 %4711
      %4713 = vrot.lane.b32.xlu0 %v4627, 112
      %v4714 = vpop.permute.xlu0 %4713
      %4715 = vrot.lane.b32.xlu0 %v4628, 112
      %v4716 = vpop.permute.xlu0 %4715
      %4717 = vrot.lane.b32.xlu0 %v4629, 112
      %v4718 = vpop.permute.xlu0 %4717
      %4719 = vrot.lane.b32.xlu0 %v4630, 112
      %v4720 = vpop.permute.xlu0 %4719
      %4721 = vrot.lane.b32.xlu0 %v4631, 112
      %v4722 = vpop.permute.xlu0 %4721
      %4723 = vrot.lane.b32.xlu0 %v4632, 112
      %v4724 = vpop.permute.xlu0 %4723
      %4725 = vrot.lane.b32.xlu0 %v4633, 112
      %v4726 = vpop.permute.xlu0 %4725
      %4727 = vrot.lane.b32.xlu0 %v4634, 112
      %v4728 = vpop.permute.xlu0 %4727
      %4729 = vrot.lane.b32.xlu0 %v4635, 112
      %v4730 = vpop.permute.xlu0 %4729
      %4731 = vrot.lane.b32.xlu0 %v4636, 112
      %v4732 = vpop.permute.xlu0 %4731
      %vm4733 = vcmask 130048
      %v4736 = vsel %vm4733, %v2501, %v3740
      %v4739 = vsel %vm4733, %v2502, %v3742
      %v4742 = vsel %vm4733, %v2503, %v3744
      %v4745 = vsel %vm4733, %v2504, %v3746
      %v4748 = vsel %vm4733, %v2505, %v3748
      %v4751 = vsel %vm4733, %v2506, %v3750
      %v4754 = vsel %vm4733, %v2507, %v3752
      %v4757 = vsel %vm4733, %v2508, %v3754
      %v4760 = vsel %vm4733, %v2509, %v3756
      %v4763 = vsel %vm4733, %v2510, %v3758
      %v4766 = vsel %vm4733, %v2511, %v3760
      %v4769 = vsel %vm4733, %v2512, %v3762
      %v4772 = vsel %vm4733, %v2513, %v3764
      %v4775 = vsel %vm4733, %v2514, %v3766
      %v4778 = vsel %vm4733, %v2515, %v3768
      %v4781 = vsel %vm4733, %v2516, %v3770
      %v4784 = vsel %vm4733, %v2517, %v3772
      %v4787 = vsel %vm4733, %v2518, %v3774
      %v4790 = vsel %vm4733, %v2519, %v3776
      %v4793 = vsel %vm4733, %v2520, %v3778
      %v4796 = vsel %vm4733, %v2521, %v3780
      %v4799 = vsel %vm4733, %v2522, %v3782
      %v4802 = vsel %vm4733, %v2523, %v3784
      %v4805 = vsel %vm4733, %v2524, %v3786
      %v4808 = vsel %vm4733, %v2525, %v3788
      %v4811 = vsel %vm4733, %v2526, %v3790
      %v4814 = vsel %vm4733, %v2527, %v3792
      %v4817 = vsel %vm4733, %v2528, %v3794
      %v4820 = vsel %vm4733, %v2529, %v3796
      %v4823 = vsel %vm4733, %v2530, %v3798
      %v4826 = vsel %vm4733, %v2531, %v3800
      %v4829 = vsel %vm4733, %v2532, %v3802
      %v4832 = vsel %vm4733, %v2533, %v3804
      %v4835 = vsel %vm4733, %v2534, %v3806
      %v4838 = vsel %vm4733, %v2535, %v3808
      %v4841 = vsel %vm4733, %v2536, %v3810
      %v4844 = vsel %vm4733, %v2537, %v3812
      %v4847 = vsel %vm4733, %v2538, %v3814
      %v4850 = vsel %vm4733, %v2539, %v3816
      %v4853 = vsel %vm4733, %v2540, %v3818
      %v4856 = vsel %vm4733, %v2541, %v3820
      %v4859 = vsel %vm4733, %v2542, %v3822
      %v4862 = vsel %vm4733, %v2543, %v3824
      %vm4863 = vcmask 261120
      %v4865 = vsel %vm4863, %v4736, %v3826
      %v4867 = vsel %vm4863, %v4739, %v3828
      %v4869 = vsel %vm4863, %v4742, %v3830
      %v4871 = vsel %vm4863, %v4745, %v3832
      %v4873 = vsel %vm4863, %v4748, %v3834
      %v4875 = vsel %vm4863, %v4751, %v3836
      %v4877 = vsel %vm4863, %v4754, %v3838
      %v4879 = vsel %vm4863, %v4757, %v3840
      %v4881 = vsel %vm4863, %v4760, %v3842
      %v4883 = vsel %vm4863, %v4763, %v3844
      %v4885 = vsel %vm4863, %v4766, %v3846
      %v4887 = vsel %vm4863, %v4769, %v3848
      %v4889 = vsel %vm4863, %v4772, %v3850
      %v4891 = vsel %vm4863, %v4775, %v3852
      %v4893 = vsel %vm4863, %v4778, %v3854
      %v4895 = vsel %vm4863, %v4781, %v3856
      %v4897 = vsel %vm4863, %v4784, %v3858
      %v4899 = vsel %vm4863, %v4787, %v3860
      %v4901 = vsel %vm4863, %v4790, %v3862
      %v4903 = vsel %vm4863, %v4793, %v3864
      %v4905 = vsel %vm4863, %v4796, %v3866
      %v4907 = vsel %vm4863, %v4799, %v3868
      %v4909 = vsel %vm4863, %v4802, %v3870
      %v4911 = vsel %vm4863, %v4805, %v3872
      %v4913 = vsel %vm4863, %v4808, %v3874
      %v4915 = vsel %vm4863, %v4811, %v3876
      %v4917 = vsel %vm4863, %v4814, %v3878
      %v4919 = vsel %vm4863, %v4817, %v3880
      %v4921 = vsel %vm4863, %v4820, %v3882
      %v4923 = vsel %vm4863, %v4823, %v3884
      %v4925 = vsel %vm4863, %v4826, %v3886
      %v4927 = vsel %vm4863, %v4829, %v3888
      %v4929 = vsel %vm4863, %v4832, %v3890
      %v4931 = vsel %vm4863, %v4835, %v3892
      %v4933 = vsel %vm4863, %v4838, %v3894
      %v4935 = vsel %vm4863, %v4841, %v3896
      %v4937 = vsel %vm4863, %v4844, %v3898
      %v4939 = vsel %vm4863, %v4847, %v3900
      %v4941 = vsel %vm4863, %v4850, %v3902
      %v4943 = vsel %vm4863, %v4853, %v3904
      %v4945 = vsel %vm4863, %v4856, %v3906
      %v4947 = vsel %vm4863, %v4859, %v3908
      %v4949 = vsel %vm4863, %v4862, %v3910
      %vm4950 = vcmask 392192
      %v4952 = vsel %vm4950, %v4865, %v3960
      %v4954 = vsel %vm4950, %v4867, %v3962
      %v4956 = vsel %vm4950, %v4869, %v3964
      %v4958 = vsel %vm4950, %v4871, %v3966
      %v4960 = vsel %vm4950, %v4873, %v3968
      %v4962 = vsel %vm4950, %v4875, %v3970
      %v4964 = vsel %vm4950, %v4877, %v3972
      %v4966 = vsel %vm4950, %v4879, %v3974
      %v4968 = vsel %vm4950, %v4865, %v3976
      %v4970 = vsel %vm4950, %v4881, %v3978
      %v4972 = vsel %vm4950, %v4883, %v3980
      %v4974 = vsel %vm4950, %v4885, %v3982
      %v4976 = vsel %vm4950, %v4887, %v3984
      %v4978 = vsel %vm4950, %v4889, %v3986
      %v4980 = vsel %vm4950, %v4891, %v3988
      %v4982 = vsel %vm4950, %v4893, %v3990
      %v4984 = vsel %vm4950, %v4865, %v3992
      %v4986 = vsel %vm4950, %v4895, %v3994
      %v4988 = vsel %vm4950, %v4897, %v3996
      %v4990 = vsel %vm4950, %v4899, %v3998
      %v4992 = vsel %vm4950, %v4901, %v4000
      %v4994 = vsel %vm4950, %v4903, %v4002
      %v4996 = vsel %vm4950, %v4905, %v4004
      %v4998 = vsel %vm4950, %v4907, %v4006
      %v5000 = vsel %vm4950, %v4865, %v4008
      %v5002 = vsel %vm4950, %v4909, %v4010
      %v5004 = vsel %vm4950, %v4911, %v4012
      %v5006 = vsel %vm4950, %v4913, %v4014
      %v5008 = vsel %vm4950, %v4915, %v4016
      %v5010 = vsel %vm4950, %v4917, %v4018
      %v5012 = vsel %vm4950, %v4919, %v4020
      %v5014 = vsel %vm4950, %v4921, %v4022
      %v5016 = vsel %vm4950, %v4865, %v4024
      %v5018 = vsel %vm4950, %v4923, %v4026
      %v5020 = vsel %vm4950, %v4925, %v4028
      %v5022 = vsel %vm4950, %v4927, %v4030
      %v5024 = vsel %vm4950, %v4929, %v4032
      %v5026 = vsel %vm4950, %v4931, %v4034
      %v5028 = vsel %vm4950, %v4933, %v4036
      %v5030 = vsel %vm4950, %v4935, %v4038
      %v5032 = vsel %vm4950, %v4865, %v4040
      %v5034 = vsel %vm4950, %v4937, %v4042
      %v5036 = vsel %vm4950, %v4939, %v4044
      %v5038 = vsel %vm4950, %v4941, %v4046
      %v5040 = vsel %vm4950, %v4943, %v4048
      %v5042 = vsel %vm4950, %v4945, %v4050
      %v5044 = vsel %vm4950, %v4947, %v4052
      %v5046 = vsel %vm4950, %v4949, %v4054
      %vm5047 = vcmask 523264
      %v5049 = vsel %vm5047, %v4952, %v4200
      %v5051 = vsel %vm5047, %v4954, %v4202
      %v5053 = vsel %vm5047, %v4956, %v4204
      %v5055 = vsel %vm5047, %v4958, %v4206
      %v5057 = vsel %vm5047, %v4960, %v4208
      %v5059 = vsel %vm5047, %v4962, %v4210
      %v5061 = vsel %vm5047, %v4964, %v4212
      %v5063 = vsel %vm5047, %v4966, %v4214
      %v5065 = vsel %vm5047, %v4968, %v4216
      %v5067 = vsel %vm5047, %v4970, %v4218
      %v5069 = vsel %vm5047, %v4972, %v4220
      %v5071 = vsel %vm5047, %v4974, %v4222
      %v5073 = vsel %vm5047, %v4976, %v4224
      %v5075 = vsel %vm5047, %v4978, %v4226
      %v5077 = vsel %vm5047, %v4980, %v4228
      %v5079 = vsel %vm5047, %v4982, %v4230
      %v5081 = vsel %vm5047, %v4984, %v4232
      %v5083 = vsel %vm5047, %v4986, %v4234
      %v5085 = vsel %vm5047, %v4988, %v4236
      %v5087 = vsel %vm5047, %v4990, %v4238
      %v5089 = vsel %vm5047, %v4992, %v4240
      %v5091 = vsel %vm5047, %v4994, %v4242
      %v5093 = vsel %vm5047, %v4996, %v4244
      %v5095 = vsel %vm5047, %v4998, %v4246
      %v5097 = vsel %vm5047, %v5000, %v4248
      %v5099 = vsel %vm5047, %v5002, %v4250
      %v5101 = vsel %vm5047, %v5004, %v4252
      %v5103 = vsel %vm5047, %v5006, %v4254
      %v5105 = vsel %vm5047, %v5008, %v4256
      %v5107 = vsel %vm5047, %v5010, %v4258
      %v5109 = vsel %vm5047, %v5012, %v4260
      %v5111 = vsel %vm5047, %v5014, %v4262
      %v5113 = vsel %vm5047, %v5016, %v4264
      %v5115 = vsel %vm5047, %v5018, %v4266
      %v5117 = vsel %vm5047, %v5020, %v4268
      %v5119 = vsel %vm5047, %v5022, %v4270
      %v5121 = vsel %vm5047, %v5024, %v4272
      %v5123 = vsel %vm5047, %v5026, %v4274
      %v5125 = vsel %vm5047, %v5028, %v4276
      %v5127 = vsel %vm5047, %v5030, %v4278
      %v5129 = vsel %vm5047, %v5032, %v4280
      %v5131 = vsel %vm5047, %v5034, %v4282
      %v5133 = vsel %vm5047, %v5036, %v4284
      %v5135 = vsel %vm5047, %v5038, %v4286
      %v5137 = vsel %vm5047, %v5040, %v4288
      %v5139 = vsel %vm5047, %v5042, %v4290
      %v5141 = vsel %vm5047, %v5044, %v4292
      %v5143 = vsel %vm5047, %v5046, %v4294
      %vm5144 = vcmask 654336
      %v5146 = vsel %vm5144, %v5049, %v4296
      %v5148 = vsel %vm5144, %v5051, %v4298
      %v5150 = vsel %vm5144, %v5053, %v4300
      %v5152 = vsel %vm5144, %v5055, %v4302
      %v5154 = vsel %vm5144, %v5057, %v4304
      %v5156 = vsel %vm5144, %v5059, %v4306
      %v5158 = vsel %vm5144, %v5061, %v4308
      %v5160 = vsel %vm5144, %v5063, %v4310
      %v5162 = vsel %vm5144, %v5065, %v4312
      %v5164 = vsel %vm5144, %v5067, %v4314
      %v5166 = vsel %vm5144, %v5069, %v4316
      %v5168 = vsel %vm5144, %v5071, %v4318
      %v5170 = vsel %vm5144, %v5073, %v4320
      %v5172 = vsel %vm5144, %v5075, %v4322
      %v5174 = vsel %vm5144, %v5077, %v4324
      %v5176 = vsel %vm5144, %v5079, %v4326
      %v5178 = vsel %vm5144, %v5081, %v4328
      %v5180 = vsel %vm5144, %v5083, %v4330
      %v5182 = vsel %vm5144, %v5085, %v4332
      %v5184 = vsel %vm5144, %v5087, %v4334
      %v5186 = vsel %vm5144, %v5089, %v4336
      %v5188 = vsel %vm5144, %v5091, %v4338
      %v5190 = vsel %vm5144, %v5093, %v4340
      %v5192 = vsel %vm5144, %v5095, %v4342
      %v5194 = vsel %vm5144, %v5097, %v4344
      %v5196 = vsel %vm5144, %v5099, %v4346
      %v5198 = vsel %vm5144, %v5101, %v4348
      %v5200 = vsel %vm5144, %v5103, %v4350
      %v5202 = vsel %vm5144, %v5105, %v4352
      %v5204 = vsel %vm5144, %v5107, %v4354
      %v5206 = vsel %vm5144, %v5109, %v4356
      %v5208 = vsel %vm5144, %v5111, %v4358
      %v5210 = vsel %vm5144, %v5113, %v4360
      %v5212 = vsel %vm5144, %v5115, %v4362
      %v5214 = vsel %vm5144, %v5117, %v4364
      %v5216 = vsel %vm5144, %v5119, %v4366
      %v5218 = vsel %vm5144, %v5121, %v4368
      %v5220 = vsel %vm5144, %v5123, %v4370
      %v5222 = vsel %vm5144, %v5125, %v4372
      %v5224 = vsel %vm5144, %v5127, %v4374
      %v5226 = vsel %vm5144, %v5129, %v4376
      %v5228 = vsel %vm5144, %v5131, %v4378
      %v5230 = vsel %vm5144, %v5133, %v4380
      %v5232 = vsel %vm5144, %v5135, %v4382
      %v5234 = vsel %vm5144, %v5137, %v4384
      %v5236 = vsel %vm5144, %v5139, %v4386
      %v5238 = vsel %vm5144, %v5141, %v4388
      %v5240 = vsel %vm5144, %v5143, %v4390
      %vm5241 = vcmask 785408
      %v5243 = vsel %vm5241, %v5146, %v4440
      %v5245 = vsel %vm5241, %v5148, %v4442
      %v5247 = vsel %vm5241, %v5150, %v4444
      %v5249 = vsel %vm5241, %v5152, %v4446
      %v5251 = vsel %vm5241, %v5154, %v4448
      %v5253 = vsel %vm5241, %v5156, %v4450
      %v5255 = vsel %vm5241, %v5158, %v4452
      %v5257 = vsel %vm5241, %v5160, %v4454
      %v5259 = vsel %vm5241, %v5162, %v4456
      %v5261 = vsel %vm5241, %v5164, %v4458
      %v5263 = vsel %vm5241, %v5166, %v4460
      %v5265 = vsel %vm5241, %v5168, %v4462
      %v5267 = vsel %vm5241, %v5170, %v4464
      %v5269 = vsel %vm5241, %v5172, %v4466
      %v5271 = vsel %vm5241, %v5174, %v4468
      %v5273 = vsel %vm5241, %v5176, %v4470
      %v5275 = vsel %vm5241, %v5178, %v4472
      %v5277 = vsel %vm5241, %v5180, %v4474
      %v5279 = vsel %vm5241, %v5182, %v4476
      %v5281 = vsel %vm5241, %v5184, %v4478
      %v5283 = vsel %vm5241, %v5186, %v4480
      %v5285 = vsel %vm5241, %v5188, %v4482
      %v5287 = vsel %vm5241, %v5190, %v4484
      %v5289 = vsel %vm5241, %v5192, %v4486
      %v5291 = vsel %vm5241, %v5194, %v4488
      %v5293 = vsel %vm5241, %v5196, %v4490
      %v5295 = vsel %vm5241, %v5198, %v4492
      %v5297 = vsel %vm5241, %v5200, %v4494
      %v5299 = vsel %vm5241, %v5202, %v4496
      %v5301 = vsel %vm5241, %v5204, %v4498
      %v5303 = vsel %vm5241, %v5206, %v4500
      %v5305 = vsel %vm5241, %v5208, %v4502
      %v5307 = vsel %vm5241, %v5210, %v4504
      %v5309 = vsel %vm5241, %v5212, %v4506
      %v5311 = vsel %vm5241, %v5214, %v4508
      %v5313 = vsel %vm5241, %v5216, %v4510
      %v5315 = vsel %vm5241, %v5218, %v4512
      %v5317 = vsel %vm5241, %v5220, %v4514
      %v5319 = vsel %vm5241, %v5222, %v4516
      %v5321 = vsel %vm5241, %v5224, %v4518
      %v5323 = vsel %vm5241, %v5226, %v4520
      %v5325 = vsel %vm5241, %v5228, %v4522
      %v5327 = vsel %vm5241, %v5230, %v4524
      %v5329 = vsel %vm5241, %v5232, %v4526
      %v5331 = vsel %vm5241, %v5234, %v4528
      %v5333 = vsel %vm5241, %v5236, %v4530
      %v5335 = vsel %vm5241, %v5238, %v4532
      %v5337 = vsel %vm5241, %v5240, %v4534
      %vm5338 = vcmask 916480
      %v5340 = vsel %vm5338, %v5243, %v4638
      %v5342 = vsel %vm5338, %v5245, %v4640
      %v5344 = vsel %vm5338, %v5247, %v4642
      %v5346 = vsel %vm5338, %v5249, %v4644
      %v5348 = vsel %vm5338, %v5251, %v4646
      %v5350 = vsel %vm5338, %v5253, %v4648
      %v5352 = vsel %vm5338, %v5255, %v4650
      %v5354 = vsel %vm5338, %v5257, %v4652
      %v5356 = vsel %vm5338, %v5259, %v4654
      %v5358 = vsel %vm5338, %v5261, %v4656
      %v5360 = vsel %vm5338, %v5263, %v4658
      %v5362 = vsel %vm5338, %v5265, %v4660
      %v5364 = vsel %vm5338, %v5267, %v4662
      %v5366 = vsel %vm5338, %v5269, %v4664
      %v5368 = vsel %vm5338, %v5271, %v4666
      %v5370 = vsel %vm5338, %v5273, %v4668
      %v5372 = vsel %vm5338, %v5275, %v4670
      %v5374 = vsel %vm5338, %v5277, %v4672
      %v5376 = vsel %vm5338, %v5279, %v4674
      %v5378 = vsel %vm5338, %v5281, %v4676
      %v5380 = vsel %vm5338, %v5283, %v4678
      %v5382 = vsel %vm5338, %v5285, %v4680
      %v5384 = vsel %vm5338, %v5287, %v4682
      %v5386 = vsel %vm5338, %v5289, %v4684
      %v5388 = vsel %vm5338, %v5291, %v4686
      %v5390 = vsel %vm5338, %v5293, %v4688
      %v5392 = vsel %vm5338, %v5295, %v4690
      %v5394 = vsel %vm5338, %v5297, %v4692
      %v5396 = vsel %vm5338, %v5299, %v4694
      %v5398 = vsel %vm5338, %v5301, %v4696
      %v5400 = vsel %vm5338, %v5303, %v4698
      %v5402 = vsel %vm5338, %v5305, %v4700
      %v5404 = vsel %vm5338, %v5307, %v4702
      %v5406 = vsel %vm5338, %v5309, %v4704
      %v5408 = vsel %vm5338, %v5311, %v4706
      %v5410 = vsel %vm5338, %v5313, %v4708
      %v5412 = vsel %vm5338, %v5315, %v4710
      %v5414 = vsel %vm5338, %v5317, %v4712
      %v5416 = vsel %vm5338, %v5319, %v4714
      %v5418 = vsel %vm5338, %v5321, %v4716
      %v5420 = vsel %vm5338, %v5323, %v4718
      %v5422 = vsel %vm5338, %v5325, %v4720
      %v5424 = vsel %vm5338, %v5327, %v4722
      %v5426 = vsel %vm5338, %v5329, %v4724
      %v5428 = vsel %vm5338, %v5331, %v4726
      %v5430 = vsel %vm5338, %v5333, %v4728
      %v5432 = vsel %vm5338, %v5335, %v4730
      %v5434 = vsel %vm5338, %v5337, %v4732
      %v5483 = vunpack.c.l.b16 %v5340
      %v5484 = vunpack.c.l.b16 %v5342
      %v5485 = vunpack.c.l.b16 %v5344
      %v5486 = vunpack.c.l.b16 %v5346
      %v5487 = vunpack.c.l.b16 %v5348
      %v5488 = vunpack.c.l.b16 %v5350
      %v5489 = vunpack.c.l.b16 %v5352
      %v5490 = vunpack.c.l.b16 %v5354
      %v5491 = vunpack.c.l.b16 %v5356
      %v5492 = vunpack.c.l.b16 %v5358
      %v5493 = vunpack.c.l.b16 %v5360
      %v5494 = vunpack.c.l.b16 %v5362
      %v5495 = vunpack.c.l.b16 %v5364
      %v5496 = vunpack.c.l.b16 %v5366
      %v5497 = vunpack.c.l.b16 %v5368
      %v5498 = vunpack.c.l.b16 %v5370
      %v5499 = vunpack.c.l.b16 %v5372
      %v5500 = vunpack.c.l.b16 %v5374
      %v5501 = vunpack.c.l.b16 %v5376
      %v5502 = vunpack.c.l.b16 %v5378
      %v5503 = vunpack.c.l.b16 %v5380
      %v5504 = vunpack.c.l.b16 %v5382
      %v5505 = vunpack.c.l.b16 %v5384
      %v5506 = vunpack.c.l.b16 %v5386
      %v5507 = vunpack.c.l.b16 %v5388
      %v5508 = vunpack.c.l.b16 %v5390
      %v5509 = vunpack.c.l.b16 %v5392
      %v5510 = vunpack.c.l.b16 %v5394
      %v5511 = vunpack.c.l.b16 %v5396
      %v5512 = vunpack.c.l.b16 %v5398
      %v5513 = vunpack.c.l.b16 %v5400
      %v5514 = vunpack.c.l.b16 %v5402
      %v5515 = vunpack.c.l.b16 %v5404
      %v5516 = vunpack.c.l.b16 %v5406
      %v5517 = vunpack.c.l.b16 %v5408
      %v5518 = vunpack.c.l.b16 %v5410
      %v5519 = vunpack.c.l.b16 %v5412
      %v5520 = vunpack.c.l.b16 %v5414
      %v5521 = vunpack.c.l.b16 %v5416
      %v5522 = vunpack.c.l.b16 %v5418
      %v5523 = vunpack.c.l.b16 %v5420
      %v5524 = vunpack.c.l.b16 %v5422
      %v5525 = vunpack.c.l.b16 %v5424
      %v5526 = vunpack.c.l.b16 %v5426
      %v5527 = vunpack.c.l.b16 %v5428
      %v5528 = vunpack.c.l.b16 %v5430
      %v5529 = vunpack.c.l.b16 %v5432
      %v5530 = vunpack.c.l.b16 %v5434
      %v5531 = vld [vmem:[%s283] sm:$0xf]
      %v5532 = vld [vmem:[%s283 + $0x4] sm:$0xf]
      %v5533 = vld [vmem:[%s283 + $0x8] sm:$0xf]
      %v5534 = vld [vmem:[%s283 + $0xc] sm:$0xf]
      %v5535 = vld [vmem:[%s283 + $0x10] sm:$0xf]
      %v5536 = vld [vmem:[%s283 + $0x14] sm:$0xf]
      %v5537 = vld [vmem:[%s283 + $0x18] sm:$0xf]
      %v5538 = vld [vmem:[%s283 + $0x1c] sm:$0xf]
      %v5539 = vld [vmem:[%s283 + $0x20] sm:$0xf]
      %v5540 = vld [vmem:[%s283 + $0x24] sm:$0xf]
      %v5541 = vld [vmem:[%s283 + $0x28] sm:$0xf]
      %v5542 = vld [vmem:[%s283 + $0x2c] sm:$0xf]
      %v5543 = vld [vmem:[%s283 + $0x30] sm:$0xf]
      %v5544 = vld [vmem:[%s283 + $0x34] sm:$0xf]
      %v5545 = vld [vmem:[%s283 + $0x38] sm:$0xf]
      %v5546 = vld [vmem:[%s283 + $0x3c] sm:$0xf]
      %v5547 = vld [vmem:[%s283 + $0x40] sm:$0xf]
      %v5548 = vld [vmem:[%s283 + $0x44] sm:$0xf]
      %v5549 = vld [vmem:[%s286] sm:$0x1]
      %v5551 = vperm.slane %v5549, 0
      %v5553 = vpack.c.b16 %v5484, %v5483
      %v5554 = vpack.c.b16 %v3169, %v3168
      %v5555 = vpack.c.b16 %v5486, %v5485
      %v5556 = vpack.c.b16 %v3171, %v3170
      %v5557 = vpack.c.b16 %v5488, %v5487
      %v5558 = vpack.c.b16 %v3173, %v3172
      %v5559 = vpack.c.b16 %v5490, %v5489
      %v5560 = vpack.c.b16 %v3175, %v3174
      %v5561 = vpack.c.b16 %v5492, %v5491
      %v5562 = vpack.c.b16 %v3177, %v3176
      %v5563 = vpack.c.b16 %v5494, %v5493
      %v5564 = vpack.c.b16 %v3179, %v3178
      %v5565 = vpack.c.b16 %v5496, %v5495
      %v5566 = vpack.c.b16 %v3181, %v3180
      %v5567 = vpack.c.b16 %v5498, %v5497
      %v5568 = vpack.c.b16 %v3183, %v3182
      %v5569 = vpack.c.b16 %v5500, %v5499
      %v5570 = vpack.c.b16 %v3185, %v3184
      %v5571 = vpack.c.b16 %v5502, %v5501
      %v5572 = vpack.c.b16 %v3187, %v3186
      %v5573 = vpack.c.b16 %v5504, %v5503
      %v5574 = vpack.c.b16 %v3189, %v3188
      %v5575 = vpack.c.b16 %v5506, %v5505
      %v5576 = vpack.c.b16 %v3191, %v3190
      %v5577 = vpack.c.b16 %v5508, %v5507
      %v5578 = vpack.c.b16 %v3193, %v3192
      %v5579 = vpack.c.b16 %v5510, %v5509
      %v5580 = vpack.c.b16 %v3195, %v3194
      %v5581 = vpack.c.b16 %v5512, %v5511
      %v5582 = vpack.c.b16 %v3197, %v3196
      %v5583 = vpack.c.b16 %v5514, %v5513
      %v5584 = vpack.c.b16 %v3199, %v3198
      %v5585 = vpack.c.b16 %v5516, %v5515
      %v5586 = vpack.c.b16 %v3201, %v3200
      %v5587 = vpack.c.b16 %v5518, %v5517
      %v5588 = vpack.c.b16 %v3203, %v3202
      %v5589 = vpack.c.b16 %v5520, %v5519
      %v5590 = vpack.c.b16 %v3205, %v3204
      %v5591 = vpack.c.b16 %v5522, %v5521
      %v5592 = vpack.c.b16 %v3207, %v3206
      %v5593 = vpack.c.b16 %v5524, %v5523
      %v5594 = vpack.c.b16 %v3209, %v3208
      %v5595 = vpack.c.b16 %v5526, %v5525
      %v5596 = vpack.c.b16 %v3211, %v3210
      %v5597 = vpack.c.b16 %v5528, %v5527
      %v5598 = vpack.c.b16 %v3213, %v3212
      %v5599 = vpack.c.b16 %v5530, %v5529
      %v5600 = vpack.c.b16 %v3215, %v3214
      %v5643 = vunpack.c.l.b16 %v5531
      %v5644 = vunpack.c.l.b16 %v5532
      %v5645 = vunpack.c.l.b16 %v5533
      %v5646 = vunpack.c.l.b16 %v5534
      %v5647 = vunpack.c.l.b16 %v5535
      %v5648 = vunpack.c.l.b16 %v5536
      %v5649 = vunpack.c.l.b16 %v5537
      %v5650 = vunpack.c.l.b16 %v5538
      %v5651 = vunpack.c.l.b16 %v5539
      %v5652 = vunpack.c.l.b16 %v5540
      %v5653 = vunpack.c.l.b16 %v5541
      %v5654 = vunpack.c.l.b16 %v5542
      %v5655 = vunpack.c.l.b16 %v5543
      %v5656 = vunpack.c.l.b16 %v5544
      %v5657 = vunpack.c.l.b16 %v5545
      %v5658 = vunpack.c.l.b16 %v5546
      %v5659 = vunpack.c.l.b16 %v5547
      %v5660 = vunpack.c.l.b16 %v5548
      %v5661 = vpack.c.b16 %v5644, %v5643
      %v5662 = vpack.c.b16 %v5646, %v5645
      %v5663 = vpack.c.b16 %v5648, %v5647
      %v5664 = vpack.c.b16 %v5650, %v5649
      %v5665 = vpack.c.b16 %v5652, %v5651
      %v5666 = vpack.c.b16 %v5654, %v5653
      %v5667 = vpack.c.b16 %v5656, %v5655
      %v5668 = vpack.c.b16 %v5658, %v5657
      %v5669 = vpack.c.b16 %v5660, %v5659
      %v5680 = vsel %vm4733, %v5554, 0
      %v5683 = vsel %vm4733, %v5556, 0
      %v5686 = vsel %vm4733, %v5558, 0
      %v5689 = vsel %vm4733, %v5560, 0
      %v5692 = vsel %vm4733, %v5562, 0
      %v5695 = vsel %vm4733, %v5564, 0
      %v5698 = vsel %vm4733, %v5566, 0
      %v5701 = vsel %vm4733, %v5568, 0
      %v5704 = vsel %vm4733, %v5570, 0
      %v5707 = vsel %vm4733, %v5572, 0
      %v5710 = vsel %vm4733, %v5574, 0
      %v5713 = vsel %vm4733, %v5576, 0
      %v5716 = vsel %vm4733, %v5578, 0
      %v5719 = vsel %vm4733, %v5580, 0
      %v5722 = vsel %vm4733, %v5582, 0
      %v5725 = vsel %vm4733, %v5584, 0
      %v5728 = vsel %vm4733, %v5586, 0
      %v5731 = vsel %vm4733, %v5588, 0
      %v5734 = vsel %vm4733, %v5590, 0
      %v5737 = vsel %vm4733, %v5592, 0
      %v5740 = vsel %vm4733, %v5594, 0
      %v5743 = vsel %vm4733, %v5596, 0
      %v5746 = vsel %vm4733, %v5598, 0
      %v5749 = vsel %vm4733, %v5600, 0
      %5751 = vmatpush.bf16.msra.mxu0 %v5668
      %5752 = vmatpush.bf16.msra.mxu0 %v5667
      %5753 = vmatpush.bf16.msra.mxu0 %v5666
      %5754 = vmatpush.bf16.msra.mxu0 %v5665
      %5755 = vmatpush.bf16.msra.mxu0 %v5664
      %5756 = vmatpush.bf16.msra.mxu0 %v5663
      %5757 = vmatpush.bf16.msra.mxu0 %v5662
      %5758 = vmatpush.bf16.msra.mxu0 %v5661
      %5759 = vmatmul.bf16.gmra.mxu0 %v5553
      %v5760 = vpop.f32.mrf.mxu0
      %v5761 = vadd.f32 %v5551, %v5760
      %v5762 = vpop.f32.mrf.mxu0
      %v5763 = vadd.f32 %v5551, %v5762
      %5764 = vmatmul.bf16.gmra.mxu0 %v5555
      %v5765 = vpop.f32.mrf.mxu0
      %v5766 = vadd.f32 %v5551, %v5765
      %v5767 = vpop.f32.mrf.mxu0
      %v5768 = vadd.f32 %v5551, %v5767
      %5769 = vmatmul.bf16.gmra.mxu0 %v5557
      %v5770 = vpop.f32.mrf.mxu0
      %v5771 = vadd.f32 %v5551, %v5770
      %v5772 = vpop.f32.mrf.mxu0
      %v5773 = vadd.f32 %v5551, %v5772
      %5774 = vmatmul.bf16.gmra.mxu0 %v5559
      %v5775 = vpop.f32.mrf.mxu0
      %v5776 = vadd.f32 %v5551, %v5775
      %v5777 = vpop.f32.mrf.mxu0
      %v5778 = vadd.f32 %v5551, %v5777
      %5779 = vmatmul.bf16.gmra.mxu0 %v5561
      %v5780 = vpop.f32.mrf.mxu0
      %v5781 = vadd.f32 %v5551, %v5780
      %v5782 = vpop.f32.mrf.mxu0
      %v5783 = vadd.f32 %v5551, %v5782
      %5784 = vmatmul.bf16.gmra.mxu0 %v5563
      %v5785 = vpop.f32.mrf.mxu0
      %v5786 = vadd.f32 %v5551, %v5785
      %v5787 = vpop.f32.mrf.mxu0
      %v5788 = vadd.f32 %v5551, %v5787
      %5789 = vmatmul.bf16.gmra.mxu0 %v5565
      %v5790 = vpop.f32.mrf.mxu0
      %v5791 = vadd.f32 %v5551, %v5790
      %v5792 = vpop.f32.mrf.mxu0
      %v5793 = vadd.f32 %v5551, %v5792
      %5794 = vmatmul.bf16.gmra.mxu0 %v5567
      %v5795 = vpop.f32.mrf.mxu0
      %v5796 = vadd.f32 %v5551, %v5795
      %v5797 = vpop.f32.mrf.mxu0
      %v5798 = vadd.f32 %v5551, %v5797
      %5799 = vmatmul.bf16.gmra.mxu0 %v5569
      %v5800 = vpop.f32.mrf.mxu0
      %v5801 = vadd.f32 %v5551, %v5800
      %v5802 = vpop.f32.mrf.mxu0
      %v5803 = vadd.f32 %v5551, %v5802
      %5804 = vmatmul.bf16.gmra.mxu0 %v5571
      %v5805 = vpop.f32.mrf.mxu0
      %v5806 = vadd.f32 %v5551, %v5805
      %v5807 = vpop.f32.mrf.mxu0
      %v5808 = vadd.f32 %v5551, %v5807
      %5809 = vmatmul.bf16.gmra.mxu0 %v5573
      %v5810 = vpop.f32.mrf.mxu0
      %v5811 = vadd.f32 %v5551, %v5810
      %v5812 = vpop.f32.mrf.mxu0
      %v5813 = vadd.f32 %v5551, %v5812
      %5814 = vmatmul.bf16.gmra.mxu0 %v5575
      %v5815 = vpop.f32.mrf.mxu0
      %v5816 = vadd.f32 %v5551, %v5815
      %v5817 = vpop.f32.mrf.mxu0
      %v5818 = vadd.f32 %v5551, %v5817
      %5819 = vmatmul.bf16.gmra.mxu0 %v5577
      %v5820 = vpop.f32.mrf.mxu0
      %v5821 = vadd.f32 %v5551, %v5820
      %v5822 = vpop.f32.mrf.mxu0
      %v5823 = vadd.f32 %v5551, %v5822
      %5824 = vmatmul.bf16.gmra.mxu0 %v5579
      %v5825 = vpop.f32.mrf.mxu0
      %v5826 = vadd.f32 %v5551, %v5825
      %v5827 = vpop.f32.mrf.mxu0
      %v5828 = vadd.f32 %v5551, %v5827
      %5829 = vmatmul.bf16.gmra.mxu0 %v5581
      %v5830 = vpop.f32.mrf.mxu0
      %v5831 = vadd.f32 %v5551, %v5830
      %v5832 = vpop.f32.mrf.mxu0
      %v5833 = vadd.f32 %v5551, %v5832
      %5834 = vmatmul.bf16.gmra.mxu0 %v5583
      %v5835 = vpop.f32.mrf.mxu0
      %v5836 = vadd.f32 %v5551, %v5835
      %v5837 = vpop.f32.mrf.mxu0
      %v5838 = vadd.f32 %v5551, %v5837
      %5839 = vmatmul.bf16.gmra.mxu0 %v5585
      %v5840 = vpop.f32.mrf.mxu0
      %v5841 = vadd.f32 %v5551, %v5840
      %v5842 = vpop.f32.mrf.mxu0
      %v5843 = vadd.f32 %v5551, %v5842
      %5844 = vmatmul.bf16.gmra.mxu0 %v5587
      %v5845 = vpop.f32.mrf.mxu0
      %v5846 = vadd.f32 %v5551, %v5845
      %v5847 = vpop.f32.mrf.mxu0
      %v5848 = vadd.f32 %v5551, %v5847
      %5849 = vmatmul.bf16.gmra.mxu0 %v5589
      %v5850 = vpop.f32.mrf.mxu0
      %v5851 = vadd.f32 %v5551, %v5850
      %v5852 = vpop.f32.mrf.mxu0
      %v5853 = vadd.f32 %v5551, %v5852
      %5854 = vmatmul.bf16.gmra.mxu0 %v5591
      %v5855 = vpop.f32.mrf.mxu0
      %v5856 = vadd.f32 %v5551, %v5855
      %v5857 = vpop.f32.mrf.mxu0
      %v5858 = vadd.f32 %v5551, %v5857
      %5859 = vmatmul.bf16.gmra.mxu0 %v5593
      %v5860 = vpop.f32.mrf.mxu0
      %v5861 = vadd.f32 %v5551, %v5860
      %v5862 = vpop.f32.mrf.mxu0
      %v5863 = vadd.f32 %v5551, %v5862
      %5864 = vmatmul.bf16.gmra.mxu0 %v5595
      %v5865 = vpop.f32.mrf.mxu0
      %v5866 = vadd.f32 %v5551, %v5865
      %v5867 = vpop.f32.mrf.mxu0
      %v5868 = vadd.f32 %v5551, %v5867
      %5869 = vmatmul.bf16.gmra.mxu0 %v5597
      %v5870 = vpop.f32.mrf.mxu0
      %v5871 = vadd.f32 %v5551, %v5870
      %v5872 = vpop.f32.mrf.mxu0
      %v5873 = vadd.f32 %v5551, %v5872
      %5874 = vmatmul.bf16.gmra.mxu0 %v5599
      %v5875 = vpop.f32.mrf.mxu0
      %v5876 = vadd.f32 %v5551, %v5875
      %v5877 = vpop.f32.mrf.mxu0
      %v5878 = vadd.f32 %v5551, %v5877
      %5879 = vdwg.mxu0
      %5880 = vmatpush.bf16.msra.mxu0 0
      %5881 = vmatpush.bf16.msra.mxu0 0
      %5882 = vmatpush.bf16.msra.mxu0 0
      %5883 = vmatpush.bf16.msra.mxu0 0
      %5884 = vmatpush.bf16.msra.mxu0 0
      %5885 = vmatpush.bf16.msra.mxu0 0
      %5886 = vmatpush.bf16.msra.mxu0 0
      %5887 = vmatpush.bf16.msra.mxu0 %v5669
      %5888 = vmatmul.bf16.gmra.mxu0 %v5680
      %v5889 = vpop.f32.mrf.mxu0
      %v5890 = vadd.f32 %v5761, %v5889
      %v5891 = vpop.f32.mrf.mxu0
      %v5892 = vadd.f32 %v5763, %v5891
      %5893 = vmatmul.bf16.gmra.mxu0 %v5683
      %v5894 = vpop.f32.mrf.mxu0
      %v5895 = vadd.f32 %v5766, %v5894
      %v5896 = vpop.f32.mrf.mxu0
      %v5897 = vadd.f32 %v5768, %v5896
      %5898 = vmatmul.bf16.gmra.mxu0 %v5686
      %v5899 = vpop.f32.mrf.mxu0
      %v5900 = vadd.f32 %v5771, %v5899
      %v5901 = vpop.f32.mrf.mxu0
      %v5902 = vadd.f32 %v5773, %v5901
      %5903 = vmatmul.bf16.gmra.mxu0 %v5689
      %v5904 = vpop.f32.mrf.mxu0
      %v5905 = vadd.f32 %v5776, %v5904
      %v5906 = vpop.f32.mrf.mxu0
      %v5907 = vadd.f32 %v5778, %v5906
      %5908 = vmatmul.bf16.gmra.mxu0 %v5692
      %v5909 = vpop.f32.mrf.mxu0
      %v5910 = vadd.f32 %v5781, %v5909
      %v5911 = vpop.f32.mrf.mxu0
      %v5912 = vadd.f32 %v5783, %v5911
      %5913 = vmatmul.bf16.gmra.mxu0 %v5695
      %v5914 = vpop.f32.mrf.mxu0
      %v5915 = vadd.f32 %v5786, %v5914
      %v5916 = vpop.f32.mrf.mxu0
      %v5917 = vadd.f32 %v5788, %v5916
      %5918 = vmatmul.bf16.gmra.mxu0 %v5698
      %v5919 = vpop.f32.mrf.mxu0
      %v5920 = vadd.f32 %v5791, %v5919
      %v5921 = vpop.f32.mrf.mxu0
      %v5922 = vadd.f32 %v5793, %v5921
      %5923 = vmatmul.bf16.gmra.mxu0 %v5701
      %v5924 = vpop.f32.mrf.mxu0
      %v5925 = vadd.f32 %v5796, %v5924
      %v5926 = vpop.f32.mrf.mxu0
      %v5927 = vadd.f32 %v5798, %v5926
      %5928 = vmatmul.bf16.gmra.mxu0 %v5704
      %v5929 = vpop.f32.mrf.mxu0
      %v5930 = vadd.f32 %v5801, %v5929
      %v5931 = vpop.f32.mrf.mxu0
      %v5932 = vadd.f32 %v5803, %v5931
      %5933 = vmatmul.bf16.gmra.mxu0 %v5707
      %v5934 = vpop.f32.mrf.mxu0
      %v5935 = vadd.f32 %v5806, %v5934
      %v5936 = vpop.f32.mrf.mxu0
      %v5937 = vadd.f32 %v5808, %v5936
      %5938 = vmatmul.bf16.gmra.mxu0 %v5710
      %v5939 = vpop.f32.mrf.mxu0
      %v5940 = vadd.f32 %v5811, %v5939
      %v5941 = vpop.f32.mrf.mxu0
      %v5942 = vadd.f32 %v5813, %v5941
      %5943 = vmatmul.bf16.gmra.mxu0 %v5713
      %v5944 = vpop.f32.mrf.mxu0
      %v5945 = vadd.f32 %v5816, %v5944
      %v5946 = vpop.f32.mrf.mxu0
      %v5947 = vadd.f32 %v5818, %v5946
      %5948 = vmatmul.bf16.gmra.mxu0 %v5716
      %v5949 = vpop.f32.mrf.mxu0
      %v5950 = vadd.f32 %v5821, %v5949
      %v5951 = vpop.f32.mrf.mxu0
      %v5952 = vadd.f32 %v5823, %v5951
      %5953 = vmatmul.bf16.gmra.mxu0 %v5719
      %v5954 = vpop.f32.mrf.mxu0
      %v5955 = vadd.f32 %v5826, %v5954
      %v5956 = vpop.f32.mrf.mxu0
      %v5957 = vadd.f32 %v5828, %v5956
      %5958 = vmatmul.bf16.gmra.mxu0 %v5722
      %v5959 = vpop.f32.mrf.mxu0
      %v5960 = vadd.f32 %v5831, %v5959
      %v5961 = vpop.f32.mrf.mxu0
      %v5962 = vadd.f32 %v5833, %v5961
      %5963 = vmatmul.bf16.gmra.mxu0 %v5725
      %v5964 = vpop.f32.mrf.mxu0
      %v5965 = vadd.f32 %v5836, %v5964
      %v5966 = vpop.f32.mrf.mxu0
      %v5967 = vadd.f32 %v5838, %v5966
      %5968 = vmatmul.bf16.gmra.mxu0 %v5728
      %v5969 = vpop.f32.mrf.mxu0
      %v5970 = vadd.f32 %v5841, %v5969
      %v5971 = vpop.f32.mrf.mxu0
      %v5972 = vadd.f32 %v5843, %v5971
      %5973 = vmatmul.bf16.gmra.mxu0 %v5731
      %v5974 = vpop.f32.mrf.mxu0
      %v5975 = vadd.f32 %v5846, %v5974
      %v5976 = vpop.f32.mrf.mxu0
      %v5977 = vadd.f32 %v5848, %v5976
      %5978 = vmatmul.bf16.gmra.mxu0 %v5734
      %v5979 = vpop.f32.mrf.mxu0
      %v5980 = vadd.f32 %v5851, %v5979
      %v5981 = vpop.f32.mrf.mxu0
      %v5982 = vadd.f32 %v5853, %v5981
      %5983 = vmatmul.bf16.gmra.mxu0 %v5737
      %v5984 = vpop.f32.mrf.mxu0
      %v5985 = vadd.f32 %v5856, %v5984
      %v5986 = vpop.f32.mrf.mxu0
      %v5987 = vadd.f32 %v5858, %v5986
      %5988 = vmatmul.bf16.gmra.mxu0 %v5740
      %v5989 = vpop.f32.mrf.mxu0
      %v5990 = vadd.f32 %v5861, %v5989
      %v5991 = vpop.f32.mrf.mxu0
      %v5992 = vadd.f32 %v5863, %v5991
      %5993 = vmatmul.bf16.gmra.mxu0 %v5743
      %v5994 = vpop.f32.mrf.mxu0
      %v5995 = vadd.f32 %v5866, %v5994
      %v5996 = vpop.f32.mrf.mxu0
      %v5997 = vadd.f32 %v5868, %v5996
      %5998 = vmatmul.bf16.gmra.mxu0 %v5746
      %v5999 = vpop.f32.mrf.mxu0
      %v6000 = vadd.f32 %v5871, %v5999
      %v6001 = vpop.f32.mrf.mxu0
      %v6002 = vadd.f32 %v5873, %v6001
      %6003 = vmatmul.bf16.gmra.mxu0 %v5749
      %v6004 = vpop.f32.mrf.mxu0
      %v6005 = vadd.f32 %v5876, %v6004
      %v6006 = vpop.f32.mrf.mxu0
      %v6007 = vadd.f32 %v5878, %v6006
      %6008 = vdwg.mxu0
      %v6009 = vmax.f32 %v5890, 0.0
      %v6010 = vmax.f32 %v5892, 0.0
      %v6011 = vmax.f32 %v5895, 0.0
      %v6012 = vmax.f32 %v5897, 0.0
      %v6013 = vmax.f32 %v5900, 0.0
      %v6014 = vmax.f32 %v5902, 0.0
      %v6015 = vmax.f32 %v5905, 0.0
      %v6016 = vmax.f32 %v5907, 0.0
      %v6017 = vmax.f32 %v5910, 0.0
      %v6018 = vmax.f32 %v5912, 0.0
      %v6019 = vmax.f32 %v5915, 0.0
      %v6020 = vmax.f32 %v5917, 0.0
      %v6021 = vmax.f32 %v5920, 0.0
      %v6022 = vmax.f32 %v5922, 0.0
      %v6023 = vmax.f32 %v5925, 0.0
      %v6024 = vmax.f32 %v5927, 0.0
      %v6025 = vmax.f32 %v5930, 0.0
      %v6026 = vmax.f32 %v5932, 0.0
      %v6027 = vmax.f32 %v5935, 0.0
      %v6028 = vmax.f32 %v5937, 0.0
      %v6029 = vmax.f32 %v5940, 0.0
      %v6030 = vmax.f32 %v5942, 0.0
      %v6031 = vmax.f32 %v5945, 0.0
      %v6032 = vmax.f32 %v5947, 0.0
      %v6033 = vmax.f32 %v5950, 0.0
      %v6034 = vmax.f32 %v5952, 0.0
      %v6035 = vmax.f32 %v5955, 0.0
      %v6036 = vmax.f32 %v5957, 0.0
      %v6037 = vmax.f32 %v5960, 0.0
      %v6038 = vmax.f32 %v5962, 0.0
      %v6039 = vmax.f32 %v5965, 0.0
      %v6040 = vmax.f32 %v5967, 0.0
      %v6041 = vmax.f32 %v5970, 0.0
      %v6042 = vmax.f32 %v5972, 0.0
      %v6043 = vmax.f32 %v5975, 0.0
      %v6044 = vmax.f32 %v5977, 0.0
      %v6045 = vmax.f32 %v5980, 0.0
      %v6046 = vmax.f32 %v5982, 0.0
      %v6047 = vmax.f32 %v5985, 0.0
      %v6048 = vmax.f32 %v5987, 0.0
      %v6049 = vmax.f32 %v5990, 0.0
      %v6050 = vmax.f32 %v5992, 0.0
      %v6051 = vmax.f32 %v5995, 0.0
      %v6052 = vmax.f32 %v5997, 0.0
      %v6053 = vmax.f32 %v6000, 0.0
      %v6054 = vmax.f32 %v6002, 0.0
      %v6055 = vmax.f32 %v6005, 0.0
      %v6056 = vmax.f32 %v6007, 0.0
      %v6057 = vsel %vm4863, %v6009, 0.0
      %v6058 = vsel %vm4863, %v6010, 0.0
      %v6059 = vadd.f32 %v6057, %v6058
      %v6060 = vsel %vm4863, %v6011, 0.0
      %v6061 = vadd.f32 %v6059, %v6060
      %v6062 = vsel %vm4863, %v6012, 0.0
      %v6063 = vadd.f32 %v6061, %v6062
      %v6064 = vsel %vm4863, %v6013, 0.0
      %v6065 = vadd.f32 %v6063, %v6064
      %v6066 = vsel %vm4863, %v6014, 0.0
      %v6067 = vadd.f32 %v6065, %v6066
      %v6068 = vsel %vm4863, %v6015, 0.0
      %v6069 = vadd.f32 %v6067, %v6068
      %v6070 = vsel %vm4863, %v6016, 0.0
      %v6071 = vadd.f32 %v6069, %v6070
      %v6072 = vrot.slane %v6071, 4
      %v6073 = vadd.f32 %v6071, %v6072
      %v6074 = vrot.slane %v6073, 2
      %v6075 = vadd.f32 %v6073, %v6074
      %v6076 = vrot.slane %v6075, 1
      %v6077 = vadd.f32 %v6075, %v6076
      %v6078 = vsel %vm4863, %v6017, 0.0
      %v6079 = vsel %vm4863, %v6018, 0.0
      %v6080 = vadd.f32 %v6078, %v6079
      %v6081 = vsel %vm4863, %v6019, 0.0
      %v6082 = vadd.f32 %v6080, %v6081
      %v6083 = vsel %vm4863, %v6020, 0.0
      %v6084 = vadd.f32 %v6082, %v6083
      %v6085 = vsel %vm4863, %v6021, 0.0
      %v6086 = vadd.f32 %v6084, %v6085
      %v6087 = vsel %vm4863, %v6022, 0.0
      %v6088 = vadd.f32 %v6086, %v6087
      %v6089 = vsel %vm4863, %v6023, 0.0
      %v6090 = vadd.f32 %v6088, %v6089
      %v6091 = vsel %vm4863, %v6024, 0.0
      %v6092 = vadd.f32 %v6090, %v6091
      %v6093 = vrot.slane %v6092, 4
      %v6094 = vadd.f32 %v6092, %v6093
      %v6095 = vrot.slane %v6094, 2
      %v6096 = vadd.f32 %v6094, %v6095
      %v6097 = vrot.slane %v6096, 1
      %v6098 = vadd.f32 %v6096, %v6097
      %v6099 = vsel %vm4863, %v6025, 0.0
      %v6100 = vsel %vm4863, %v6026, 0.0
      %v6101 = vadd.f32 %v6099, %v6100
      %v6102 = vsel %vm4863, %v6027, 0.0
      %v6103 = vadd.f32 %v6101, %v6102
      %v6104 = vsel %vm4863, %v6028, 0.0
      %v6105 = vadd.f32 %v6103, %v6104
      %v6106 = vsel %vm4863, %v6029, 0.0
      %v6107 = vadd.f32 %v6105, %v6106
      %v6108 = vsel %vm4863, %v6030, 0.0
      %v6109 = vadd.f32 %v6107, %v6108
      %v6110 = vsel %vm4863, %v6031, 0.0
      %v6111 = vadd.f32 %v6109, %v6110
      %v6112 = vsel %vm4863, %v6032, 0.0
      %v6113 = vadd.f32 %v6111, %v6112
      %v6114 = vrot.slane %v6113, 4
      %v6115 = vadd.f32 %v6113, %v6114
      %v6116 = vrot.slane %v6115, 2
      %v6117 = vadd.f32 %v6115, %v6116
      %v6118 = vrot.slane %v6117, 1
      %v6119 = vadd.f32 %v6117, %v6118
      %v6120 = vsel %vm4863, %v6033, 0.0
      %v6121 = vsel %vm4863, %v6034, 0.0
      %v6122 = vadd.f32 %v6120, %v6121
      %v6123 = vsel %vm4863, %v6035, 0.0
      %v6124 = vadd.f32 %v6122, %v6123
      %v6125 = vsel %vm4863, %v6036, 0.0
      %v6126 = vadd.f32 %v6124, %v6125
      %v6127 = vsel %vm4863, %v6037, 0.0
      %v6128 = vadd.f32 %v6126, %v6127
      %v6129 = vsel %vm4863, %v6038, 0.0
      %v6130 = vadd.f32 %v6128, %v6129
      %v6131 = vsel %vm4863, %v6039, 0.0
      %v6132 = vadd.f32 %v6130, %v6131
      %v6133 = vsel %vm4863, %v6040, 0.0
      %v6134 = vadd.f32 %v6132, %v6133
      %v6135 = vrot.slane %v6134, 4
      %v6136 = vadd.f32 %v6134, %v6135
      %v6137 = vrot.slane %v6136, 2
      %v6138 = vadd.f32 %v6136, %v6137
      %v6139 = vrot.slane %v6138, 1
      %v6140 = vadd.f32 %v6138, %v6139
      %v6141 = vsel %vm4863, %v6041, 0.0
      %v6142 = vsel %vm4863, %v6042, 0.0
      %v6143 = vadd.f32 %v6141, %v6142
      %v6144 = vsel %vm4863, %v6043, 0.0
      %v6145 = vadd.f32 %v6143, %v6144
      %v6146 = vsel %vm4863, %v6044, 0.0
      %v6147 = vadd.f32 %v6145, %v6146
      %v6148 = vsel %vm4863, %v6045, 0.0
      %v6149 = vadd.f32 %v6147, %v6148
      %v6150 = vsel %vm4863, %v6046, 0.0
      %v6151 = vadd.f32 %v6149, %v6150
      %v6152 = vsel %vm4863, %v6047, 0.0
      %v6153 = vadd.f32 %v6151, %v6152
      %v6154 = vsel %vm4863, %v6048, 0.0
      %v6155 = vadd.f32 %v6153, %v6154
      %v6156 = vrot.slane %v6155, 4
      %v6157 = vadd.f32 %v6155, %v6156
      %v6158 = vrot.slane %v6157, 2
      %v6159 = vadd.f32 %v6157, %v6158
      %v6160 = vrot.slane %v6159, 1
      %v6161 = vadd.f32 %v6159, %v6160
      %v6162 = vsel %vm4863, %v6049, 0.0
      %v6163 = vsel %vm4863, %v6050, 0.0
      %v6164 = vadd.f32 %v6162, %v6163
      %v6165 = vsel %vm4863, %v6051, 0.0
      %v6166 = vadd.f32 %v6164, %v6165
      %v6167 = vsel %vm4863, %v6052, 0.0
      %v6168 = vadd.f32 %v6166, %v6167
      %v6169 = vsel %vm4863, %v6053, 0.0
      %v6170 = vadd.f32 %v6168, %v6169
      %v6171 = vsel %vm4863, %v6054, 0.0
      %v6172 = vadd.f32 %v6170, %v6171
      %v6173 = vsel %vm4863, %v6055, 0.0
      %v6174 = vadd.f32 %v6172, %v6173
      %v6175 = vsel %vm4863, %v6056, 0.0
      %v6176 = vadd.f32 %v6174, %v6175
      %v6177 = vrot.slane %v6176, 4
      %v6178 = vadd.f32 %v6176, %v6177
      %v6179 = vrot.slane %v6178, 2
      %v6180 = vadd.f32 %v6178, %v6179
      %v6181 = vrot.slane %v6180, 1
      %v6182 = vadd.f32 %v6180, %v6181
      %v6183 = vrcp.pop 64.0
      %v6184 = vmul.f32 64.0, %v6183
      %v6185 = vsub.f32 1.0, %v6184
      %v6186 = vmul.f32 %v6183, %v6185
      %v6187 = vadd.f32 %v6183, %v6186
      %vm6188 = vweird.f32 %v6183
      %v6189 = vsel %vm6188, %v6183, %v6187
      %v6190 = vmul.f32 %v6077, %v6189
      %v6191 = vmul.f32 %v6098, %v6189
      %v6192 = vmul.f32 %v6119, %v6189
      %v6193 = vmul.f32 %v6140, %v6189
      %v6194 = vmul.f32 %v6161, %v6189
      %v6195 = vmul.f32 %v6182, %v6189
      %vm6202 = vcmask 1041409
      %v6203 = vsel %vm6202, %v6191, %v6190
      %vm6204 = vcmask 1042434
      %v6205 = vsel %vm6204, %v6192, %v6203
      %vm6206 = vcmask 1043459
      %v6207 = vsel %vm6206, %v6193, %v6205
      %vm6208 = vcmask 1044484
      %v6209 = vsel %vm6208, %v6194, %v6207
      %vm6210 = vcmask 1045509
      %v6211 = vsel %vm6210, %v6195, %v6209
      %vm6213 = vcmask 259072
      %6214 = vst.msk [vmem:[%s290] sm:$0x3f] %vm6213, %v6211
      %p6215 = scmp.lt.s32.totalorder %s16, 1
      %s6216 = scalar_select %p6215, %s16, 1
      %s6217 = smul.addr %s6216, 8
      %s6218 = scalar_lea.vmem %s5, %s6217
      // Predicated region
      $region41: #{drn22_lstm_forward.2} parent=39 // pred_check
        %p6219 = pneg %p164
      $region42: #{drn22_lstm_forward.2} parent=39 // pred_check_branch
        %6221 = sbr.rel (%p6219) target = $region44
      $region43: #{drn22_lstm_forward.2} parent=39 // pred_region
        _
      $region44: #{drn22_lstm_forward.2} parent=39 // pred_fallthru
        _
    $region40: #{drn22_lstm_forward.2} parent=5 // pred_fallthru
      _
    %p6222 = scmp.le.s32.totalorder 2, %s11
    // Predicated region
    $region45: #{drn22_lstm_forward.2} parent=5 // pred_check
      %p6223 = pneg %p6222
    $region46: #{drn22_lstm_forward.2} parent=5 // pred_check_branch
      %6225 = sbr.rel (%p6223) target = $region48
    $region47: #{drn22_lstm_forward.2} parent=5 // pred_region
      %s6226 = ssub.s32 %s11, 2
      // Predicated region
      $region49: #{drn22_lstm_forward.2} parent=47 // pred_check
        %p6227 = pneg %p170
      $region50: #{drn22_lstm_forward.2} parent=47 // pred_check_branch
        %6229 = sbr.rel (%p6227) target = $region52
      $region51: #{drn22_lstm_forward.2} parent=47 // pred_region
        %p6230 = scmp.lt.s32.totalorder %s17, 1
        %s6231 = scalar_select %p6230, %s17, 1
        %s6232 = smul.addr %s6231, 8
        %s6233 = scalar_lea.vmem %s5, %s6232
      $region52: #{drn22_lstm_forward.2} parent=47 // pred_fallthru
        _
    $region48: #{drn22_lstm_forward.2} parent=5 // pred_fallthru
      _
  $region6: #{drn22_lstm_forward.2} parent=0 // loop_footer
    %s15 = sadd.s32 1, %s11
  $region7: #{drn22_lstm_forward.2} parent=0 // loop_footer_branch
    %10 = sbr.rel target = $region3
  $region8: #{drn22_lstm_forward.2} parent=0 // loop_exit
    _

</llo_original>
